<compile_context>
chip_gen: v7x
topology: tpu7x:2x2x1
jax: 0.10.0
libtpu: 0.0.40
codegen_flags: <defaults>
</compile_context>

<pallas_src>
import functools

import jax
import jax.numpy as jnp
from jax import lax
from jax.experimental import pallas as pl
from jax.experimental.pallas import tpu as pltpu


# --------------------------- fused conv + GN kernel ---------------------------

def _conv_gn_kernel(x_ref, w_ref, g_ref, b_ref, a_ref, o_ref, acc_ref, *,
                    KH, KW, OH, OW, stride, dilation, apply_norm, eps):
    """One batch element: im2col-free conv2d, then (optional) GroupNorm.

    x_ref  : (1, Hp, Wp, C)    spatially padded NHWC input slab (VMEM)
    w_ref  : (KH*KW, C, OCp)   weights, (kh, kw)-major, OC padded to OCp lanes
    g_ref  : (1, OCp)          gamma (0 on padded channels)
    b_ref  : (1, OCp)          beta  (0 on padded channels)
    a_ref  : (OCp, OCp)        group-averaging matrix: 1/(HW*Cg) within a group
    o_ref  : (1, OH*OW, OCp)   output block (lane-dense)
    acc_ref: (OH*OW, OCp) f32  VMEM accumulator scratch
    """
    HW = OH * OW

    if stride == 1:
        def _window(kh, kw):
            h0, w0 = kh * dilation, kw * dilation
            return x_ref[0, h0:h0 + OH, w0:w0 + OW, :]
    else:
        xi = x_ref[0]

        def _window(kh, kw):
            h0, w0 = kh * dilation, kw * dilation
            return lax.slice(
                xi, (h0, w0, 0),
                (h0 + (OH - 1) * stride + 1, w0 + (OW - 1) * stride + 1,
                 xi.shape[-1]),
                (stride, stride, 1))

    # Accumulate the KH*KW shifted-window matmuls in f32 VMEM scratch.
    acc_ref[...] = jnp.zeros_like(acc_ref)
    for kh in range(KH):
        for kw in range(KW):
            win = _window(kh, kw)                       # (OH, OW, C)
            a = win.reshape(HW, win.shape[-1])          # (HW, C) — lanes = C
            acc_ref[...] += jnp.dot(a, w_ref[kh * KW + kw],
                                    preferred_element_type=jnp.float32)

    acc = acc_ref[...]                                  # (HW, OCp) f32

    if apply_norm:
        # Per-channel sums over HW (sublane reduction), then one small matmul
        # against the group-averaging matrix broadcasts each group's statistics
        # back to its channels — no lane slicing, no transposes.
        s1 = jnp.sum(acc, axis=0, keepdims=True)                      # (1, OCp)
        s2 = jnp.sum(acc * acc, axis=0, keepdims=True)                # (1, OCp)
        mean = jnp.dot(s1, a_ref[...], preferred_element_type=jnp.float32)
        ex2 = jnp.dot(s2, a_ref[...], preferred_element_type=jnp.float32)
        var = ex2 - mean * mean                 # biased variance (PyTorch GN)
        inv = lax.rsqrt(var + eps)
        scale = g_ref[...] * inv                                      # (1, OCp)
        shift = b_ref[...] - mean * scale
        acc = acc * scale + shift               # single fused mul-add per elem

    o_ref[0] = acc.astype(o_ref.dtype)


def conv2d_groupnorm_pallas(x_nchw, w_oihw, gamma=None, beta=None, *,
                            stride=1, padding=0, dilation=1,
                            num_groups=1, eps=1e-5, apply_norm=False):
    N, C, H, W = x_nchw.shape
    OC, IC, KH, KW = w_oihw.shape
    assert IC == C
    OH = (H + 2 * padding - dilation * (KH - 1) - 1) // stride + 1
    OW = (W + 2 * padding - dilation * (KW - 1) - 1) // stride + 1
    HW = OH * OW
    OCp = pl.cdiv(OC, 128) * 128            # lane-dense output channel count

    # Single cheap layout pass in the wrapper (no KH*KW im2col blowup in HBM).
    x = jnp.transpose(x_nchw, (0, 2, 3, 1))                       # NHWC
    xp = jnp.pad(x, ((0, 0), (padding, padding), (padding, padding), (0, 0)))
    Hp, Wp = xp.shape[1], xp.shape[2]

    wk = jnp.transpose(w_oihw, (2, 3, 1, 0)).reshape(KH * KW, C, OC)
    wk = jnp.pad(wk, ((0, 0), (0, 0), (0, OCp - OC)))             # pad OC lanes

    cidx = jnp.arange(OCp)
    if apply_norm:
        Cg = OC // num_groups
        grp = cidx // Cg
        real = cidx < OC
        same = (grp[:, None] == grp[None, :]) & real[:, None] & real[None, :]
        amat = same.astype(jnp.float32) / float(HW * Cg)
        g = jnp.pad(gamma.astype(jnp.float32), (0, OCp - OC)).reshape(1, OCp)
        b = jnp.pad(beta.astype(jnp.float32), (0, OCp - OC)).reshape(1, OCp)
    else:
        amat = jnp.zeros((OCp, OCp), jnp.float32)
        g = jnp.zeros((1, OCp), jnp.float32)
        b = jnp.zeros((1, OCp), jnp.float32)

    kernel = functools.partial(
        _conv_gn_kernel, KH=KH, KW=KW, OH=OH, OW=OW, stride=stride,
        dilation=dilation, apply_norm=apply_norm, eps=eps)

    # Explicit VMEM budget (double-buffered tiles + scratch, with headroom).
    est = 4 * (Hp * Wp * C + KH * KW * C * OCp + 3 * OCp + OCp * OCp
               + 2 * HW * OCp)
    vmem_limit = int(min(max(4 * est, 16 * 2**20), 100 * 2**20))
    # TODO(synk): for activations too large for VMEM (big H*W / OC), tile OH with
    # halo DMA and switch GroupNorm to a two-pass sum/sumsq accumulation.

    out = pl.pallas_call(
        kernel,
        out_shape=jax.ShapeDtypeStruct((N, HW, OCp), x_nchw.dtype),
        grid=(N,),
        in_specs=[
            pl.BlockSpec((1, Hp, Wp, C), lambda n: (n, 0, 0, 0)),
            pl.BlockSpec((KH * KW, C, OCp), lambda n: (0, 0, 0)),
            pl.BlockSpec((1, OCp), lambda n: (0, 0)),
            pl.BlockSpec((1, OCp), lambda n: (0, 0)),
            pl.BlockSpec((OCp, OCp), lambda n: (0, 0)),
        ],
        out_specs=pl.BlockSpec((1, HW, OCp), lambda n: (n, 0, 0)),
        scratch_shapes=[pltpu.VMEM((HW, OCp), jnp.float32)],
        compiler_params=pltpu.CompilerParams(
            dimension_semantics=("parallel",),
            vmem_limit_bytes=vmem_limit),
    )(xp, wk, g, b, amat)

    # Single layout transpose at module output: drop lane padding, back to NCHW.
    out = out[:, :, :OC].reshape(N, OH, OW, OC)
    return jnp.transpose(out, (0, 3, 1, 2))


# ------------------------------- module port ----------------------------------

class BaseConvLayer2dPallas:
    """Pallas port of BaseConvLayer2d (standard conv path; norm in {'none','gn','ln'})."""

    def __init__(self, in_channels, out_channels, kernel_size=(3, 3), stride=1,
                 padding=0, dilation=1, depthwise_separable=False,
                 enable_ReLU=False, norm='none', group_size=1, dropout=0.0,
                 bias=False, *, key):
        if depthwise_separable:
            # TODO(synk): depthwise-separable conv path not ported (not exercised here).
            raise NotImplementedError
        if norm == 'bn':
            # TODO(synk): BatchNorm2d running-stat / batch-stat semantics not ported.
            raise NotImplementedError
        if dropout > 0:
            # TODO(synk): train-mode Dropout RNG mask not ported; only dropout=0 supported.
            raise NotImplementedError
        assert not bias  # bias only exists on the DW-separable pointwise path anyway

        if isinstance(kernel_size, int):
            kernel_size = (kernel_size, kernel_size)
        kh, kw = kernel_size
        self.stride, self.padding, self.dilation = stride, padding, dilation
        self.enable_relu = enable_ReLU
        self.norm = norm

        # Deterministic init mimicking PyTorch Conv2d's uniform(-1/sqrt(fan_in), ...)
        fan_in = in_channels * kh * kw
        bound = 1.0 / (fan_in ** 0.5)
        self.weight = jax.random.uniform(
            key, (out_channels, in_channels, kh, kw), jnp.float32, -bound, bound)

        if norm in ('gn', 'ln'):
            # 'ln' in the source is literally nn.GroupNorm(1, C): normalize over (C,H,W).
            self.num_groups = group_size if norm == 'gn' else 1
            self.gamma = jnp.ones((out_channels,), jnp.float32)
            self.beta = jnp.zeros((out_channels,), jnp.float32)
        else:
            self.num_groups = 1
            self.gamma = None
            self.beta = None

    def __call__(self, x):
        # Faithful to the PyTorch source bug: `x = self.relu(X)` (lowercase) is
        # discarded, so ReLU never affects the returned tensor — kept a no-op.
        return conv2d_groupnorm_pallas(
            x, self.weight, self.gamma, self.beta,
            stride=self.stride, padding=self.padding, dilation=self.dilation,
            num_groups=self.num_groups, eps=1e-5,
            apply_norm=self.norm in ('gn', 'ln'))


# ------------------------------- demo / check ----------------------------------

if __name__ == "__main__":
    key = jax.random.PRNGKey(0)
    kx, kw = jax.random.split(key)
    x = jax.random.normal(kx, (2, 4, 16, 16), jnp.float32)   # NCHW, like PyTorch

    layer = BaseConvLayer2dPallas(
        in_channels=4, out_channels=8, kernel_size=(3, 3), stride=1, padding=1,
        dilation=1, depthwise_separable=False, enable_ReLU=True, norm='gn',
        group_size=2, dropout=0.0, bias=False, key=kw)

    out = jax.block_until_ready(layer(x))
    assert out.shape == (2, 8, 16, 16) and out.dtype == jnp.float32

    # Pure-JAX reference (conv -> [ReLU discarded] -> GroupNorm)
    ref = lax.conv_general_dilated(
        x, layer.weight, window_strides=(1, 1), padding=((1, 1), (1, 1)),
        rhs_dilation=(1, 1), dimension_numbers=('NCHW', 'OIHW', 'NCHW'))
    N, C, H, W = ref.shape
    G = 2
    r = ref.reshape(N, G, (C // G) * H * W)
    mean = r.mean(-1, keepdims=True)
    var = r.var(-1, keepdims=True)
    rn = ((r - mean) / jnp.sqrt(var + 1e-5)).reshape(N, C, H, W)
    rn = rn * layer.gamma[None, :, None, None] + layer.beta[None, :, None, None]

    assert jnp.allclose(out, rn, atol=1e-4, rtol=1e-4)
    print("KERNEL_OK")
</pallas_src>

<mosaic_0001>
module attributes {stable_mosaic.version = 11 : i64} {
  func.func @_conv_gn_kernel(%arg0: i32, %arg1: memref<1x18x18x4xf32, #tpu.memory_space<vmem>>, %arg2: memref<9x4x128xf32, #tpu.memory_space<vmem>>, %arg3: memref<1x128xf32, #tpu.memory_space<vmem>>, %arg4: memref<1x128xf32, #tpu.memory_space<vmem>>, %arg5: memref<128x128xf32, #tpu.memory_space<vmem>>, %arg6: memref<1x256x128xf32, #tpu.memory_space<vmem>>, %arg7: memref<256x128xf32, #tpu.memory_space<vmem>>) attributes {dimension_semantics = [#tpu.dimension_semantics<parallel>], iteration_bounds = array<i64: 2>, scalar_prefetch = 0 : i64, scratch_operands = 1 : i64, tpu.core_type = #tpu.core_type<tc>, window_params = [{transform_indices = @transform_0, window_bounds = array<i64: 1, 18, 18, 4>}, {pipeline_mode = #tpu.pipeline_mode<synchronous>, transform_indices = @transform_1, window_bounds = array<i64: 9, 4, 128>}, {pipeline_mode = #tpu.pipeline_mode<synchronous>, transform_indices = @transform_2, window_bounds = array<i64: 1, 128>}, {pipeline_mode = #tpu.pipeline_mode<synchronous>, transform_indices = @transform_3, window_bounds = array<i64: 1, 128>}, {pipeline_mode = #tpu.pipeline_mode<synchronous>, transform_indices = @transform_4, window_bounds = array<i64: 128, 128>}, {transform_indices = @transform_5, window_bounds = array<i64: 1, 256, 128>}]} {
    %cst = arith.constant 0.000000e+00 : f32
    %0 = vector.broadcast %cst : f32 to vector<256x128xf32>
    %c0 = arith.constant 0 : index
    %c0_0 = arith.constant 0 : index
    %1 = vector.load %arg7[%c0, %c0_0] : memref<256x128xf32, #tpu.memory_space<vmem>>, vector<256x128xf32>
    tpu.vector_store %arg7[%c0, %c0_0], %0 {strides = array<i32>} : memref<256x128xf32, #tpu.memory_space<vmem>>, vector<256x128xf32>,
    %c0_1 = arith.constant 0 : index
    %c0_2 = arith.constant 0 : index
    %c0_3 = arith.constant 0 : index
    %c0_4 = arith.constant 0 : index
    %2 = vector.load %arg1[%c0_1, %c0_2, %c0_3, %c0_4] : memref<1x18x18x4xf32, #tpu.memory_space<vmem>>, vector<1x16x16x4xf32>
    %3 = vector.shape_cast %2 : vector<1x16x16x4xf32> to vector<16x16x4xf32>
    %4 = vector.shape_cast %3 : vector<16x16x4xf32> to vector<256x4xf32>
    %c0_5 = arith.constant 0 : index
    %c0_6 = arith.constant 0 : index
    %5 = vector.load %arg7[%c0_5, %c0_6] : memref<256x128xf32, #tpu.memory_space<vmem>>, vector<256x128xf32>
    %c0_7 = arith.constant 0 : index
    %c0_8 = arith.constant 0 : index
    %c0_9 = arith.constant 0 : index
    %6 = vector.load %arg2[%c0_7, %c0_8, %c0_9] : memref<9x4x128xf32, #tpu.memory_space<vmem>>, vector<1x4x128xf32>
    %7 = vector.shape_cast %6 : vector<1x4x128xf32> to vector<4x128xf32>
    %cst_10 = arith.constant dense<0.000000e+00> : vector<256x128xf32>
    %8 = tpu.matmul %4, %7, %cst_10 {dimension_numbers = #tpu.dot_dimension_numbers<[1], [0], [0], [1], [0, 0, 1, 1], [], []>} : vector<256x4xf32>, vector<4x128xf32>, vector<256x128xf32> -> vector<256x128xf32>
    %9 = arith.addf %5, %8 : vector<256x128xf32>
    %c0_11 = arith.constant 0 : index
    %c0_12 = arith.constant 0 : index
    %10 = vector.load %arg7[%c0_11, %c0_12] : memref<256x128xf32, #tpu.memory_space<vmem>>, vector<256x128xf32>
    tpu.vector_store %arg7[%c0_11, %c0_12], %9 {strides = array<i32>} : memref<256x128xf32, #tpu.memory_space<vmem>>, vector<256x128xf32>,
    %c0_13 = arith.constant 0 : index
    %c0_14 = arith.constant 0 : index
    %c1 = arith.constant 1 : index
    %c0_15 = arith.constant 0 : index
    %11 = vector.load %arg1[%c0_13, %c0_14, %c1, %c0_15] : memref<1x18x18x4xf32, #tpu.memory_space<vmem>>, vector<1x16x16x4xf32>
    %12 = vector.shape_cast %11 : vector<1x16x16x4xf32> to vector<16x16x4xf32>
    %13 = vector.shape_cast %12 : vector<16x16x4xf32> to vector<256x4xf32>
    %c0_16 = arith.constant 0 : index
    %c0_17 = arith.constant 0 : index
    %14 = vector.load %arg7[%c0_16, %c0_17] : memref<256x128xf32, #tpu.memory_space<vmem>>, vector<256x128xf32>
    %c1_18 = arith.constant 1 : index
    %c0_19 = arith.constant 0 : index
    %c0_20 = arith.constant 0 : index
    %15 = vector.load %arg2[%c1_18, %c0_19, %c0_20] : memref<9x4x128xf32, #tpu.memory_space<vmem>>, vector<1x4x128xf32>
    %16 = vector.shape_cast %15 : vector<1x4x128xf32> to vector<4x128xf32>
    %cst_21 = arith.constant dense<0.000000e+00> : vector<256x128xf32>
    %17 = tpu.matmul %13, %16, %cst_21 {dimension_numbers = #tpu.dot_dimension_numbers<[1], [0], [0], [1], [0, 0, 1, 1], [], []>} : vector<256x4xf32>, vector<4x128xf32>, vector<256x128xf32> -> vector<256x128xf32>
    %18 = arith.addf %14, %17 : vector<256x128xf32>
    %c0_22 = arith.constant 0 : index
    %c0_23 = arith.constant 0 : index
    %19 = vector.load %arg7[%c0_22, %c0_23] : memref<256x128xf32, #tpu.memory_space<vmem>>, vector<256x128xf32>
    tpu.vector_store %arg7[%c0_22, %c0_23], %18 {strides = array<i32>} : memref<256x128xf32, #tpu.memory_space<vmem>>, vector<256x128xf32>,
    %c0_24 = arith.constant 0 : index
    %c0_25 = arith.constant 0 : index
    %c2 = arith.constant 2 : index
    %c0_26 = arith.constant 0 : index
    %20 = vector.load %arg1[%c0_24, %c0_25, %c2, %c0_26] : memref<1x18x18x4xf32, #tpu.memory_space<vmem>>, vector<1x16x16x4xf32>
    %21 = vector.shape_cast %20 : vector<1x16x16x4xf32> to vector<16x16x4xf32>
    %22 = vector.shape_cast %21 : vector<16x16x4xf32> to vector<256x4xf32>
    %c0_27 = arith.constant 0 : index
    %c0_28 = arith.constant 0 : index
    %23 = vector.load %arg7[%c0_27, %c0_28] : memref<256x128xf32, #tpu.memory_space<vmem>>, vector<256x128xf32>
    %c2_29 = arith.constant 2 : index
    %c0_30 = arith.constant 0 : index
    %c0_31 = arith.constant 0 : index
    %24 = vector.load %arg2[%c2_29, %c0_30, %c0_31] : memref<9x4x128xf32, #tpu.memory_space<vmem>>, vector<1x4x128xf32>
    %25 = vector.shape_cast %24 : vector<1x4x128xf32> to vector<4x128xf32>
    %cst_32 = arith.constant dense<0.000000e+00> : vector<256x128xf32>
    %26 = tpu.matmul %22, %25, %cst_32 {dimension_numbers = #tpu.dot_dimension_numbers<[1], [0], [0], [1], [0, 0, 1, 1], [], []>} : vector<256x4xf32>, vector<4x128xf32>, vector<256x128xf32> -> vector<256x128xf32>
    %27 = arith.addf %23, %26 : vector<256x128xf32>
    %c0_33 = arith.constant 0 : index
    %c0_34 = arith.constant 0 : index
    %28 = vector.load %arg7[%c0_33, %c0_34] : memref<256x128xf32, #tpu.memory_space<vmem>>, vector<256x128xf32>
    tpu.vector_store %arg7[%c0_33, %c0_34], %27 {strides = array<i32>} : memref<256x128xf32, #tpu.memory_space<vmem>>, vector<256x128xf32>,
    %c0_35 = arith.constant 0 : index
    %c1_36 = arith.constant 1 : index
    %c0_37 = arith.constant 0 : index
    %c0_38 = arith.constant 0 : index
    %29 = vector.load %arg1[%c0_35, %c1_36, %c0_37, %c0_38] : memref<1x18x18x4xf32, #tpu.memory_space<vmem>>, vector<1x16x16x4xf32>
    %30 = vector.shape_cast %29 : vector<1x16x16x4xf32> to vector<16x16x4xf32>
    %31 = vector.shape_cast %30 : vector<16x16x4xf32> to vector<256x4xf32>
    %c0_39 = arith.constant 0 : index
    %c0_40 = arith.constant 0 : index
    %32 = vector.load %arg7[%c0_39, %c0_40] : memref<256x128xf32, #tpu.memory_space<vmem>>, vector<256x128xf32>
    %c3 = arith.constant 3 : index
    %c0_41 = arith.constant 0 : index
    %c0_42 = arith.constant 0 : index
    %33 = vector.load %arg2[%c3, %c0_41, %c0_42] : memref<9x4x128xf32, #tpu.memory_space<vmem>>, vector<1x4x128xf32>
    %34 = vector.shape_cast %33 : vector<1x4x128xf32> to vector<4x128xf32>
    %cst_43 = arith.constant dense<0.000000e+00> : vector<256x128xf32>
    %35 = tpu.matmul %31, %34, %cst_43 {dimension_numbers = #tpu.dot_dimension_numbers<[1], [0], [0], [1], [0, 0, 1, 1], [], []>} : vector<256x4xf32>, vector<4x128xf32>, vector<256x128xf32> -> vector<256x128xf32>
    %36 = arith.addf %32, %35 : vector<256x128xf32>
    %c0_44 = arith.constant 0 : index
    %c0_45 = arith.constant 0 : index
    %37 = vector.load %arg7[%c0_44, %c0_45] : memref<256x128xf32, #tpu.memory_space<vmem>>, vector<256x128xf32>
    tpu.vector_store %arg7[%c0_44, %c0_45], %36 {strides = array<i32>} : memref<256x128xf32, #tpu.memory_space<vmem>>, vector<256x128xf32>,
    %c0_46 = arith.constant 0 : index
    %c1_47 = arith.constant 1 : index
    %c1_48 = arith.constant 1 : index
    %c0_49 = arith.constant 0 : index
    %38 = vector.load %arg1[%c0_46, %c1_47, %c1_48, %c0_49] : memref<1x18x18x4xf32, #tpu.memory_space<vmem>>, vector<1x16x16x4xf32>
    %39 = vector.shape_cast %38 : vector<1x16x16x4xf32> to vector<16x16x4xf32>
    %40 = vector.shape_cast %39 : vector<16x16x4xf32> to vector<256x4xf32>
    %c0_50 = arith.constant 0 : index
    %c0_51 = arith.constant 0 : index
    %41 = vector.load %arg7[%c0_50, %c0_51] : memref<256x128xf32, #tpu.memory_space<vmem>>, vector<256x128xf32>
    %c4 = arith.constant 4 : index
    %c0_52 = arith.constant 0 : index
    %c0_53 = arith.constant 0 : index
    %42 = vector.load %arg2[%c4, %c0_52, %c0_53] : memref<9x4x128xf32, #tpu.memory_space<vmem>>, vector<1x4x128xf32>
    %43 = vector.shape_cast %42 : vector<1x4x128xf32> to vector<4x128xf32>
    %cst_54 = arith.constant dense<0.000000e+00> : vector<256x128xf32>
    %44 = tpu.matmul %40, %43, %cst_54 {dimension_numbers = #tpu.dot_dimension_numbers<[1], [0], [0], [1], [0, 0, 1, 1], [], []>} : vector<256x4xf32>, vector<4x128xf32>, vector<256x128xf32> -> vector<256x128xf32>
    %45 = arith.addf %41, %44 : vector<256x128xf32>
    %c0_55 = arith.constant 0 : index
    %c0_56 = arith.constant 0 : index
    %46 = vector.load %arg7[%c0_55, %c0_56] : memref<256x128xf32, #tpu.memory_space<vmem>>, vector<256x128xf32>
    tpu.vector_store %arg7[%c0_55, %c0_56], %45 {strides = array<i32>} : memref<256x128xf32, #tpu.memory_space<vmem>>, vector<256x128xf32>,
    %c0_57 = arith.constant 0 : index
    %c1_58 = arith.constant 1 : index
    %c2_59 = arith.constant 2 : index
    %c0_60 = arith.constant 0 : index
    %47 = vector.load %arg1[%c0_57, %c1_58, %c2_59, %c0_60] : memref<1x18x18x4xf32, #tpu.memory_space<vmem>>, vector<1x16x16x4xf32>
    %48 = vector.shape_cast %47 : vector<1x16x16x4xf32> to vector<16x16x4xf32>
    %49 = vector.shape_cast %48 : vector<16x16x4xf32> to vector<256x4xf32>
    %c0_61 = arith.constant 0 : index
    %c0_62 = arith.constant 0 : index
    %50 = vector.load %arg7[%c0_61, %c0_62] : memref<256x128xf32, #tpu.memory_space<vmem>>, vector<256x128xf32>
    %c5 = arith.constant 5 : index
    %c0_63 = arith.constant 0 : index
    %c0_64 = arith.constant 0 : index
    %51 = vector.load %arg2[%c5, %c0_63, %c0_64] : memref<9x4x128xf32, #tpu.memory_space<vmem>>, vector<1x4x128xf32>
    %52 = vector.shape_cast %51 : vector<1x4x128xf32> to vector<4x128xf32>
    %cst_65 = arith.constant dense<0.000000e+00> : vector<256x128xf32>
    %53 = tpu.matmul %49, %52, %cst_65 {dimension_numbers = #tpu.dot_dimension_numbers<[1], [0], [0], [1], [0, 0, 1, 1], [], []>} : vector<256x4xf32>, vector<4x128xf32>, vector<256x128xf32> -> vector<256x128xf32>
    %54 = arith.addf %50, %53 : vector<256x128xf32>
    %c0_66 = arith.constant 0 : index
    %c0_67 = arith.constant 0 : index
    %55 = vector.load %arg7[%c0_66, %c0_67] : memref<256x128xf32, #tpu.memory_space<vmem>>, vector<256x128xf32>
    tpu.vector_store %arg7[%c0_66, %c0_67], %54 {strides = array<i32>} : memref<256x128xf32, #tpu.memory_space<vmem>>, vector<256x128xf32>,
    %c0_68 = arith.constant 0 : index
    %c2_69 = arith.constant 2 : index
    %c0_70 = arith.constant 0 : index
    %c0_71 = arith.constant 0 : index
    %56 = vector.load %arg1[%c0_68, %c2_69, %c0_70, %c0_71] : memref<1x18x18x4xf32, #tpu.memory_space<vmem>>, vector<1x16x16x4xf32>
    %57 = vector.shape_cast %56 : vector<1x16x16x4xf32> to vector<16x16x4xf32>
    %58 = vector.shape_cast %57 : vector<16x16x4xf32> to vector<256x4xf32>
    %c0_72 = arith.constant 0 : index
    %c0_73 = arith.constant 0 : index
    %59 = vector.load %arg7[%c0_72, %c0_73] : memref<256x128xf32, #tpu.memory_space<vmem>>, vector<256x128xf32>
    %c6 = arith.constant 6 : index
    %c0_74 = arith.constant 0 : index
    %c0_75 = arith.constant 0 : index
    %60 = vector.load %arg2[%c6, %c0_74, %c0_75] : memref<9x4x128xf32, #tpu.memory_space<vmem>>, vector<1x4x128xf32>
    %61 = vector.shape_cast %60 : vector<1x4x128xf32> to vector<4x128xf32>
    %cst_76 = arith.constant dense<0.000000e+00> : vector<256x128xf32>
    %62 = tpu.matmul %58, %61, %cst_76 {dimension_numbers = #tpu.dot_dimension_numbers<[1], [0], [0], [1], [0, 0, 1, 1], [], []>} : vector<256x4xf32>, vector<4x128xf32>, vector<256x128xf32> -> vector<256x128xf32>
    %63 = arith.addf %59, %62 : vector<256x128xf32>
    %c0_77 = arith.constant 0 : index
    %c0_78 = arith.constant 0 : index
    %64 = vector.load %arg7[%c0_77, %c0_78] : memref<256x128xf32, #tpu.memory_space<vmem>>, vector<256x128xf32>
    tpu.vector_store %arg7[%c0_77, %c0_78], %63 {strides = array<i32>} : memref<256x128xf32, #tpu.memory_space<vmem>>, vector<256x128xf32>,
    %c0_79 = arith.constant 0 : index
    %c2_80 = arith.constant 2 : index
    %c1_81 = arith.constant 1 : index
    %c0_82 = arith.constant 0 : index
    %65 = vector.load %arg1[%c0_79, %c2_80, %c1_81, %c0_82] : memref<1x18x18x4xf32, #tpu.memory_space<vmem>>, vector<1x16x16x4xf32>
    %66 = vector.shape_cast %65 : vector<1x16x16x4xf32> to vector<16x16x4xf32>
    %67 = vector.shape_cast %66 : vector<16x16x4xf32> to vector<256x4xf32>
    %c0_83 = arith.constant 0 : index
    %c0_84 = arith.constant 0 : index
    %68 = vector.load %arg7[%c0_83, %c0_84] : memref<256x128xf32, #tpu.memory_space<vmem>>, vector<256x128xf32>
    %c7 = arith.constant 7 : index
    %c0_85 = arith.constant 0 : index
    %c0_86 = arith.constant 0 : index
    %69 = vector.load %arg2[%c7, %c0_85, %c0_86] : memref<9x4x128xf32, #tpu.memory_space<vmem>>, vector<1x4x128xf32>
    %70 = vector.shape_cast %69 : vector<1x4x128xf32> to vector<4x128xf32>
    %cst_87 = arith.constant dense<0.000000e+00> : vector<256x128xf32>
    %71 = tpu.matmul %67, %70, %cst_87 {dimension_numbers = #tpu.dot_dimension_numbers<[1], [0], [0], [1], [0, 0, 1, 1], [], []>} : vector<256x4xf32>, vector<4x128xf32>, vector<256x128xf32> -> vector<256x128xf32>
    %72 = arith.addf %68, %71 : vector<256x128xf32>
    %c0_88 = arith.constant 0 : index
    %c0_89 = arith.constant 0 : index
    %73 = vector.load %arg7[%c0_88, %c0_89] : memref<256x128xf32, #tpu.memory_space<vmem>>, vector<256x128xf32>
    tpu.vector_store %arg7[%c0_88, %c0_89], %72 {strides = array<i32>} : memref<256x128xf32, #tpu.memory_space<vmem>>, vector<256x128xf32>,
    %c0_90 = arith.constant 0 : index
    %c2_91 = arith.constant 2 : index
    %c2_92 = arith.constant 2 : index
    %c0_93 = arith.constant 0 : index
    %74 = vector.load %arg1[%c0_90, %c2_91, %c2_92, %c0_93] : memref<1x18x18x4xf32, #tpu.memory_space<vmem>>, vector<1x16x16x4xf32>
    %75 = vector.shape_cast %74 : vector<1x16x16x4xf32> to vector<16x16x4xf32>
    %76 = vector.shape_cast %75 : vector<16x16x4xf32> to vector<256x4xf32>
    %c0_94 = arith.constant 0 : index
    %c0_95 = arith.constant 0 : index
    %77 = vector.load %arg7[%c0_94, %c0_95] : memref<256x128xf32, #tpu.memory_space<vmem>>, vector<256x128xf32>
    %c8 = arith.constant 8 : index
    %c0_96 = arith.constant 0 : index
    %c0_97 = arith.constant 0 : index
    %78 = vector.load %arg2[%c8, %c0_96, %c0_97] : memref<9x4x128xf32, #tpu.memory_space<vmem>>, vector<1x4x128xf32>
    %79 = vector.shape_cast %78 : vector<1x4x128xf32> to vector<4x128xf32>
    %cst_98 = arith.constant dense<0.000000e+00> : vector<256x128xf32>
    %80 = tpu.matmul %76, %79, %cst_98 {dimension_numbers = #tpu.dot_dimension_numbers<[1], [0], [0], [1], [0, 0, 1, 1], [], []>} : vector<256x4xf32>, vector<4x128xf32>, vector<256x128xf32> -> vector<256x128xf32>
    %81 = arith.addf %77, %80 : vector<256x128xf32>
    %c0_99 = arith.constant 0 : index
    %c0_100 = arith.constant 0 : index
    %82 = vector.load %arg7[%c0_99, %c0_100] : memref<256x128xf32, #tpu.memory_space<vmem>>, vector<256x128xf32>
    tpu.vector_store %arg7[%c0_99, %c0_100], %81 {strides = array<i32>} : memref<256x128xf32, #tpu.memory_space<vmem>>, vector<256x128xf32>,
    %c0_101 = arith.constant 0 : index
    %c0_102 = arith.constant 0 : index
    %83 = vector.load %arg7[%c0_101, %c0_102] : memref<256x128xf32, #tpu.memory_space<vmem>>, vector<256x128xf32>
    %cst_103 = arith.constant dense<0.000000e+00> : vector<128xf32>
    %84 = vector.multi_reduction <add>, %83, %cst_103 [0] : vector<256x128xf32> to vector<128xf32>
    %85 = vector.shape_cast %84 : vector<128xf32> to vector<1x128xf32>
    %86 = arith.mulf %83, %83 : vector<256x128xf32>
    %cst_104 = arith.constant dense<0.000000e+00> : vector<128xf32>
    %87 = vector.multi_reduction <add>, %86, %cst_104 [0] : vector<256x128xf32> to vector<128xf32>
    %88 = vector.shape_cast %87 : vector<128xf32> to vector<1x128xf32>
    %c0_105 = arith.constant 0 : index
    %c0_106 = arith.constant 0 : index
    %89 = vector.load %arg5[%c0_105, %c0_106] : memref<128x128xf32, #tpu.memory_space<vmem>>, vector<128x128xf32>
    %cst_107 = arith.constant dense<0.000000e+00> : vector<1x128xf32>
    %90 = tpu.matmul %85, %89, %cst_107 {dimension_numbers = #tpu.dot_dimension_numbers<[1], [0], [0], [1], [0, 0, 1, 1], [], []>} : vector<1x128xf32>, vector<128x128xf32>, vector<1x128xf32> -> vector<1x128xf32>
    %c0_108 = arith.constant 0 : index
    %c0_109 = arith.constant 0 : index
    %91 = vector.load %arg5[%c0_108, %c0_109] : memref<128x128xf32, #tpu.memory_space<vmem>>, vector<128x128xf32>
    %cst_110 = arith.constant dense<0.000000e+00> : vector<1x128xf32>
    %92 = tpu.matmul %88, %91, %cst_110 {dimension_numbers = #tpu.dot_dimension_numbers<[1], [0], [0], [1], [0, 0, 1, 1], [], []>} : vector<1x128xf32>, vector<128x128xf32>, vector<1x128xf32> -> vector<1x128xf32>
    %93 = arith.mulf %90, %90 : vector<1x128xf32>
    %94 = arith.subf %92, %93 : vector<1x128xf32>
    %cst_111 = arith.constant 9.99999974E-6 : f32
    %95 = vector.broadcast %cst_111 : f32 to vector<1x128xf32>
    %96 = arith.addf %94, %95 : vector<1x128xf32>
    %97 = math.rsqrt %96 : vector<1x128xf32>
    %c0_112 = arith.constant 0 : index
    %c0_113 = arith.constant 0 : index
    %98 = vector.load %arg3[%c0_112, %c0_113] : memref<1x128xf32, #tpu.memory_space<vmem>>, vector<1x128xf32>
    %99 = arith.mulf %98, %97 : vector<1x128xf32>
    %c0_114 = arith.constant 0 : index
    %c0_115 = arith.constant 0 : index
    %100 = vector.load %arg4[%c0_114, %c0_115] : memref<1x128xf32, #tpu.memory_space<vmem>>, vector<1x128xf32>
    %101 = arith.mulf %90, %99 : vector<1x128xf32>
    %102 = arith.subf %100, %101 : vector<1x128xf32>
    %103 = vector.broadcast %99 : vector<1x128xf32> to vector<256x128xf32>
    %104 = arith.mulf %83, %103 : vector<256x128xf32>
    %105 = vector.broadcast %102 : vector<1x128xf32> to vector<256x128xf32>
    %106 = arith.addf %104, %105 : vector<256x128xf32>
    %c0_116 = arith.constant 0 : index
    %c0_117 = arith.constant 0 : index
    %c0_118 = arith.constant 0 : index
    %107 = vector.load %arg6[%c0_116, %c0_117, %c0_118] : memref<1x256x128xf32, #tpu.memory_space<vmem>>, vector<1x256x128xf32>
    %108 = vector.shape_cast %107 : vector<1x256x128xf32> to vector<256x128xf32>
    %109 = vector.shape_cast %106 : vector<256x128xf32> to vector<1x256x128xf32>
    tpu.vector_store %arg6[%c0_116, %c0_117, %c0_118], %109 {strides = array<i32>} : memref<1x256x128xf32, #tpu.memory_space<vmem>>, vector<1x256x128xf32>,
    return
  }
  func.func @transform_0(%arg0: i32) -> (i32, i32, i32, i32) {
    %c0_i32 = arith.constant 0 : i32
    %c0_i32_0 = arith.constant 0 : i32
    %c0_i32_1 = arith.constant 0 : i32
    %c0_i32_2 = arith.constant 0 : i32
    return %arg0, %c0_i32, %c0_i32_0, %c0_i32_1 : i32, i32, i32, i32
  }
  func.func @transform_1(%arg0: i32) -> (i32, i32, i32) {
    %c0_i32 = arith.constant 0 : i32
    %c0_i32_0 = arith.constant 0 : i32
    %c0_i32_1 = arith.constant 0 : i32
    %c0_i32_2 = arith.constant 0 : i32
    return %c0_i32, %c0_i32_0, %c0_i32_1 : i32, i32, i32
  }
  func.func @transform_2(%arg0: i32) -> (i32, i32) {
    %c0_i32 = arith.constant 0 : i32
    %c0_i32_0 = arith.constant 0 : i32
    %c0_i32_1 = arith.constant 0 : i32
    return %c0_i32, %c0_i32_0 : i32, i32
  }
  func.func @transform_3(%arg0: i32) -> (i32, i32) {
    %c0_i32 = arith.constant 0 : i32
    %c0_i32_0 = arith.constant 0 : i32
    %c0_i32_1 = arith.constant 0 : i32
    return %c0_i32, %c0_i32_0 : i32, i32
  }
  func.func @transform_4(%arg0: i32) -> (i32, i32) {
    %c0_i32 = arith.constant 0 : i32
    %c0_i32_0 = arith.constant 0 : i32
    %c0_i32_1 = arith.constant 0 : i32
    return %c0_i32, %c0_i32_0 : i32, i32
  }
  func.func @transform_5(%arg0: i32) -> (i32, i32, i32) {
    %c0_i32 = arith.constant 0 : i32
    %c0_i32_0 = arith.constant 0 : i32
    %c0_i32_1 = arith.constant 0 : i32
    return %arg0, %c0_i32, %c0_i32_0 : i32, i32, i32
  }
}

</mosaic_0001>

<llo_original>
// kernel: tpu_custom_call.1
$region0: #{tpu_custom_call.1}
  #allocation0 [shape = 'u32[]', space=smem, size = 0x4, offset = 0x4, fixed_abs, tag = 'smem constant byte address 0x4 - core index']
  #allocation1 [shape = 'u32[144,128]{1,0:T(1,128)}', space=vmem, size = 0x12000, scoped, tag = 'internal scratch']
  #allocation2 [shape = 'f32[256,128]{1,0:T(8,128)}', space=vmem, size = 0x20000, scoped, tag = 'scratch operand']
  %s0 = inlined_call_operand.vmem [shape: f32[2,18,18,4], index: 0, kind: input, shape index: {}]
  %s1 = inlined_call_operand.vmem [shape: f32[9,4,128], index: 1, kind: input, shape index: {}]
  %s2 = inlined_call_operand.vmem [shape: f32[1,128], index: 2, kind: input, shape index: {}]
  %s3 = inlined_call_operand.vmem [shape: f32[1,128], index: 3, kind: input, shape index: {}]
  %s4 = inlined_call_operand.vmem [shape: f32[128,128], index: 4, kind: input, shape index: {}]
  %s5 = inlined_call_operand.hbm [shape: f32[2,256,128], index: 5, kind: output, shape index: {}]
  %s6 = sld [smem:[#allocation0]]
  $region53: #{tpu_custom_call.1} parent=0
    _
  %s8 = ssub.s32 1, %s6
  %s9 = scalar_select 0, %s8, %s6
  $region1: #{tpu_custom_call.1} parent=0
    #allocation3 [shape = 'u8[262144]{0}', space=vmem, size = 0x40000, scoped, tag = 'output window, operand 0']
    #allocation4 [shape = 's32[2]{0}', space=sflag, size = 0x8, scoped, tag = 'scoped memory for tpu_custom_call.1']
    %10 = vsyncpa [#allocation4], 0
    %s11 = scalar_lea.sflag [#allocation4], 1
    %12 = vsyncpa %s11, 0
    loop: start=0, step=1, limit=4
    $region2: #{tpu_custom_call.1} parent=1 // loop_pre_header
      _
    $region3: #{tpu_custom_call.1} parent=1 // loop_header
      %s14 = sphi 0, %s18
      %p15 = scmp.ge.s32.totalorder %s14, 4
      %s24 = sphi 0, %s26
      %s27 = sphi 0, %s24
      %s28 = sphi 0, %s27
      %s44 = sphi 0, %s28
      %s48 = sphi 0, %s48
      %s50 = sphi 0, %s48
      %s51 = sphi 0, %s50
      %s65 = sphi 0, %s51
      %s69 = sphi 0, %s69
      %s71 = sphi 0, %s69
      %s72 = sphi 0, %s71
      %s86 = sphi 0, %s72
      %s90 = sphi 0, %s90
      %s92 = sphi 0, %s90
      %s93 = sphi 0, %s92
      %s107 = sphi 0, %s93
      %s111 = sphi 0, %s111
      %s113 = sphi 0, %s111
      %s114 = sphi 0, %s113
      %s128 = sphi 0, %s114
      %s134 = sphi 0, %s136
      %s137 = sphi 0, %s134
      %s138 = sphi 0, %s137
      %s154 = sphi 0, %s138
    $region4: #{tpu_custom_call.1} parent=1 // loop_header_branch
      %17 = sbr.rel (%p15) target = $region8
    $region5: #{tpu_custom_call.1} parent=1 // loop_body
      %s19 = ssub.s32 %s14, 1
      %s20 = ssub.s32 %s14, 2
      %s21 = sadd.s32 %s14, 1
      %s22 = ssub.s32 %s14, %s21
      %p23 = scmp.eq.s32.totalorder %s22, 0
      %s25 = sadd.s32 %s24, 1
      %s26 = scalar_select %p23, %s24, %s25
      %p29 = pneg %p23
      %p30 = scmp.eq.s32.totalorder %s14, 1
      %p31 = por %p29, %p30
      %p32 = scmp.ne.s32.totalorder %s24, %s27
      %p33 = scmp.eq.s32.totalorder %s14, 0
      %p34 = por %p32, %p33
      %p35 = scmp.ne.s32.totalorder %s24, %s27
      %p36 = scmp.eq.s32.totalorder %s19, 1
      %p37 = por %p35, %p36
      %p38 = scmp.ne.s32.totalorder %s27, %s28
      %p39 = scmp.eq.s32.totalorder %s19, 0
      %p40 = por %p38, %p39
      %p41 = scmp.ne.s32.totalorder %s27, %s28
      %p42 = scmp.eq.s32.totalorder %s20, 1
      %p43 = por %p41, %p42
      %p45 = scmp.ne.s32.totalorder %s28, %s44
      %p46 = scmp.eq.s32.totalorder %s20, 0
      %p47 = por %p45, %p46
      %s49 = sadd.s32 %s48, 1
      %p52 = scmp.eq.s32.totalorder %s14, 1
      %p53 = scmp.ne.s32.totalorder %s48, %s50
      %p54 = scmp.eq.s32.totalorder %s14, 0
      %p55 = por %p53, %p54
      %p56 = scmp.ne.s32.totalorder %s48, %s50
      %p57 = scmp.eq.s32.totalorder %s19, 1
      %p58 = por %p56, %p57
      %p59 = scmp.ne.s32.totalorder %s50, %s51
      %p60 = scmp.eq.s32.totalorder %s19, 0
      %p61 = por %p59, %p60
      %p62 = scmp.ne.s32.totalorder %s50, %s51
      %p63 = scmp.eq.s32.totalorder %s20, 1
      %p64 = por %p62, %p63
      %p66 = scmp.ne.s32.totalorder %s51, %s65
      %p67 = scmp.eq.s32.totalorder %s20, 0
      %p68 = por %p66, %p67
      %s70 = sadd.s32 %s69, 1
      %p73 = scmp.eq.s32.totalorder %s14, 1
      %p74 = scmp.ne.s32.totalorder %s69, %s71
      %p75 = scmp.eq.s32.totalorder %s14, 0
      %p76 = por %p74, %p75
      %p77 = scmp.ne.s32.totalorder %s69, %s71
      %p78 = scmp.eq.s32.totalorder %s19, 1
      %p79 = por %p77, %p78
      %p80 = scmp.ne.s32.totalorder %s71, %s72
      %p81 = scmp.eq.s32.totalorder %s19, 0
      %p82 = por %p80, %p81
      %p83 = scmp.ne.s32.totalorder %s71, %s72
      %p84 = scmp.eq.s32.totalorder %s20, 1
      %p85 = por %p83, %p84
      %p87 = scmp.ne.s32.totalorder %s72, %s86
      %p88 = scmp.eq.s32.totalorder %s20, 0
      %p89 = por %p87, %p88
      %s91 = sadd.s32 %s90, 1
      %p94 = scmp.eq.s32.totalorder %s14, 1
      %p95 = scmp.ne.s32.totalorder %s90, %s92
      %p96 = scmp.eq.s32.totalorder %s14, 0
      %p97 = por %p95, %p96
      %p98 = scmp.ne.s32.totalorder %s90, %s92
      %p99 = scmp.eq.s32.totalorder %s19, 1
      %p100 = por %p98, %p99
      %p101 = scmp.ne.s32.totalorder %s92, %s93
      %p102 = scmp.eq.s32.totalorder %s19, 0
      %p103 = por %p101, %p102
      %p104 = scmp.ne.s32.totalorder %s92, %s93
      %p105 = scmp.eq.s32.totalorder %s20, 1
      %p106 = por %p104, %p105
      %p108 = scmp.ne.s32.totalorder %s93, %s107
      %p109 = scmp.eq.s32.totalorder %s20, 0
      %p110 = por %p108, %p109
      %s112 = sadd.s32 %s111, 1
      %p115 = scmp.eq.s32.totalorder %s14, 1
      %p116 = scmp.ne.s32.totalorder %s111, %s113
      %p117 = scmp.eq.s32.totalorder %s14, 0
      %p118 = por %p116, %p117
      %p119 = scmp.ne.s32.totalorder %s111, %s113
      %p120 = scmp.eq.s32.totalorder %s19, 1
      %p121 = por %p119, %p120
      %p122 = scmp.ne.s32.totalorder %s113, %s114
      %p123 = scmp.eq.s32.totalorder %s19, 0
      %p124 = por %p122, %p123
      %p125 = scmp.ne.s32.totalorder %s113, %s114
      %p126 = scmp.eq.s32.totalorder %s20, 1
      %p127 = por %p125, %p126
      %p129 = scmp.ne.s32.totalorder %s114, %s128
      %p130 = scmp.eq.s32.totalorder %s20, 0
      %p131 = por %p129, %p130
      %s132 = ssub.s32 %s14, %s21
      %p133 = scmp.eq.s32.totalorder %s132, 0
      %s135 = sadd.s32 %s134, 1
      %s136 = scalar_select %p133, %s134, %s135
      %p139 = pneg %p133
      %p140 = scmp.eq.s32.totalorder %s14, 1
      %p141 = por %p139, %p140
      %p142 = scmp.ne.s32.totalorder %s134, %s137
      %p143 = scmp.eq.s32.totalorder %s14, 0
      %p144 = por %p142, %p143
      %p145 = scmp.ne.s32.totalorder %s134, %s137
      %p146 = scmp.eq.s32.totalorder %s19, 1
      %p147 = por %p145, %p146
      %p148 = scmp.ne.s32.totalorder %s137, %s138
      %p149 = scmp.eq.s32.totalorder %s19, 0
      %p150 = por %p148, %p149
      %p151 = scmp.ne.s32.totalorder %s137, %s138
      %p152 = scmp.eq.s32.totalorder %s20, 1
      %p153 = por %p151, %p152
      %p155 = scmp.ne.s32.totalorder %s138, %s154
      %p156 = scmp.eq.s32.totalorder %s20, 0
      %p157 = por %p155, %p156
      %p158 = scmp.le.s32.totalorder 1, %s14
      %p159 = scmp.lt.s32.totalorder %s14, 3
      %p160 = pnand %p158, %p159
      %p161 = pneg %p160
      // Predicated region
      $region9: #{tpu_custom_call.1} parent=5 // pred_check
        _
      $region10: #{tpu_custom_call.1} parent=5 // pred_check_branch
        %163 = sbr.rel (%p160) target = $region12
      $region11: #{tpu_custom_call.1} parent=5 // pred_region
        %s164 = ssub.s32 %s14, 1
        // Predicated region
        $region13: #{tpu_custom_call.1} parent=11 // pred_check
          %p165 = pneg %p61
        $region14: #{tpu_custom_call.1} parent=11 // pred_check_branch
          %167 = sbr.rel (%p165) target = $region16
        $region15: #{tpu_custom_call.1} parent=11 // pred_region
          _
        $region16: #{tpu_custom_call.1} parent=11 // pred_fallthru
          _
        // Predicated region
        $region17: #{tpu_custom_call.1} parent=11 // pred_check
          %p168 = pneg %p82
        $region18: #{tpu_custom_call.1} parent=11 // pred_check_branch
          %170 = sbr.rel (%p168) target = $region20
        $region19: #{tpu_custom_call.1} parent=11 // pred_region
          _
        $region20: #{tpu_custom_call.1} parent=11 // pred_fallthru
          _
        // Predicated region
        $region21: #{tpu_custom_call.1} parent=11 // pred_check
          %p171 = pneg %p103
        $region22: #{tpu_custom_call.1} parent=11 // pred_check_branch
          %173 = sbr.rel (%p171) target = $region24
        $region23: #{tpu_custom_call.1} parent=11 // pred_region
          _
        $region24: #{tpu_custom_call.1} parent=11 // pred_fallthru
          _
        // Predicated region
        $region25: #{tpu_custom_call.1} parent=11 // pred_check
          %p174 = pneg %p124
        $region26: #{tpu_custom_call.1} parent=11 // pred_check_branch
          %176 = sbr.rel (%p174) target = $region28
        $region27: #{tpu_custom_call.1} parent=11 // pred_region
          _
        $region28: #{tpu_custom_call.1} parent=11 // pred_fallthru
          _
      $region12: #{tpu_custom_call.1} parent=5 // pred_fallthru
        _
      %p177 = scmp.lt.s32.totalorder %s14, 2
      // Predicated region
      $region29: #{tpu_custom_call.1} parent=5 // pred_check
        %p178 = pneg %p177
      $region30: #{tpu_custom_call.1} parent=5 // pred_check_branch
        %180 = sbr.rel (%p178) target = $region32
      $region31: #{tpu_custom_call.1} parent=5 // pred_region
        // Predicated region
        $region33: #{tpu_custom_call.1} parent=31 // pred_check
          %p181 = pneg %p34
        $region34: #{tpu_custom_call.1} parent=31 // pred_check_branch
          %183 = sbr.rel (%p181) target = $region36
        $region35: #{tpu_custom_call.1} parent=31 // pred_region
          %p184 = scmp.lt.s32.totalorder %s14, 1
          %s185 = scalar_select %p184, %s14, 1
          %s186 = smul.addr %s185, 54
          %s187 = smul.addr %s186, 8
          %s188 = scalar_lea.vmem %s0, %s187
        $region36: #{tpu_custom_call.1} parent=31 // pred_fallthru
          _
      $region32: #{tpu_custom_call.1} parent=5 // pred_fallthru
        _
      %p189 = scmp.le.s32.totalorder 1, %s14
      %p190 = scmp.lt.s32.totalorder %s14, 3
      %p191 = pnand %p189, %p190
      %p192 = pneg %p191
      // Predicated region
      $region37: #{tpu_custom_call.1} parent=5 // pred_check
        _
      $region38: #{tpu_custom_call.1} parent=5 // pred_check_branch
        %194 = sbr.rel (%p191) target = $region40
      $region39: #{tpu_custom_call.1} parent=5 // pred_region
        %s195 = ssub.s32 %s14, 1
        %p196 = scmp.lt.s32.totalorder %s19, 1
        %s197 = scalar_select %p196, %s19, 1
        %s198 = smul.addr %s197, 54
        %s199 = smul.addr %s198, 8
        %s200 = scalar_lea.vmem %s0, %s199
        %p201 = pneg %p40
        %p202 = pneg %p37
        %p203 = pneg %p61
        %p204 = pneg %p58
        %p205 = pneg %p82
        %p206 = pneg %p79
        %p207 = pneg %p103
        %p208 = pneg %p100
        %p209 = pneg %p124
        %p210 = pneg %p121
        %p211 = pneg %p150
        %p212 = pneg %p147
        %s213 = sand.u32 %s137, 1
        %s214 = scalar_lea.sflag [#allocation4], %s213
        %s215 = sand.u32 %s137, 1
        %s216 = smul.addr %s215, 256
        %s217 = scalar_lea.vmem [#allocation3], %s216
        %p218 = scmp.lt.s32.totalorder %s19, 1
        %s219 = scalar_select %p218, %s19, 1
        %s220 = smul.addr %s219, 54
        %s221 = smul.addr %s220, 8
        %s222 = scalar_lea.vmem %s0, %s221
        %223 = vst [vmem:[#allocation2] sm:$0xff] 0.0
        %224 = vst [vmem:[#allocation2 + $0x8] sm:$0xff] 0.0
        %225 = vst [vmem:[#allocation2 + $0x10] sm:$0xff] 0.0
        %226 = vst [vmem:[#allocation2 + $0x18] sm:$0xff] 0.0
        %227 = vst [vmem:[#allocation2 + $0x20] sm:$0xff] 0.0
        %228 = vst [vmem:[#allocation2 + $0x28] sm:$0xff] 0.0
        %229 = vst [vmem:[#allocation2 + $0x30] sm:$0xff] 0.0
        %230 = vst [vmem:[#allocation2 + $0x38] sm:$0xff] 0.0
        %231 = vst [vmem:[#allocation2 + $0x40] sm:$0xff] 0.0
        %232 = vst [vmem:[#allocation2 + $0x48] sm:$0xff] 0.0
        %233 = vst [vmem:[#allocation2 + $0x50] sm:$0xff] 0.0
        %234 = vst [vmem:[#allocation2 + $0x58] sm:$0xff] 0.0
        %235 = vst [vmem:[#allocation2 + $0x60] sm:$0xff] 0.0
        %236 = vst [vmem:[#allocation2 + $0x68] sm:$0xff] 0.0
        %237 = vst [vmem:[#allocation2 + $0x70] sm:$0xff] 0.0
        %238 = vst [vmem:[#allocation2 + $0x78] sm:$0xff] 0.0
        %239 = vst [vmem:[#allocation2 + $0x80] sm:$0xff] 0.0
        %240 = vst [vmem:[#allocation2 + $0x88] sm:$0xff] 0.0
        %241 = vst [vmem:[#allocation2 + $0x90] sm:$0xff] 0.0
        %242 = vst [vmem:[#allocation2 + $0x98] sm:$0xff] 0.0
        %243 = vst [vmem:[#allocation2 + $0xa0] sm:$0xff] 0.0
        %244 = vst [vmem:[#allocation2 + $0xa8] sm:$0xff] 0.0
        %245 = vst [vmem:[#allocation2 + $0xb0] sm:$0xff] 0.0
        %246 = vst [vmem:[#allocation2 + $0xb8] sm:$0xff] 0.0
        %247 = vst [vmem:[#allocation2 + $0xc0] sm:$0xff] 0.0
        %248 = vst [vmem:[#allocation2 + $0xc8] sm:$0xff] 0.0
        %249 = vst [vmem:[#allocation2 + $0xd0] sm:$0xff] 0.0
        %250 = vst [vmem:[#allocation2 + $0xd8] sm:$0xff] 0.0
        %251 = vst [vmem:[#allocation2 + $0xe0] sm:$0xff] 0.0
        %252 = vst [vmem:[#allocation2 + $0xe8] sm:$0xff] 0.0
        %253 = vst [vmem:[#allocation2 + $0xf0] sm:$0xff] 0.0
        %254 = vst [vmem:[#allocation2 + $0xf8] sm:$0xff] 0.0
        %v255 = vld [vmem:[%s222] sm:$0xff]
        %v256 = vld [vmem:[%s222 + $0x8] sm:$0xff]
        %v257 = vld [vmem:[%s222 + $0x18] sm:$0xff]
        %v258 = vld [vmem:[%s222 + $0x20] sm:$0xff]
        %v259 = vld [vmem:[%s222 + $0x30] sm:$0xff]
        %v260 = vld [vmem:[%s222 + $0x38] sm:$0xff]
        %v261 = vld [vmem:[%s222 + $0x48] sm:$0xff]
        %v262 = vld [vmem:[%s222 + $0x50] sm:$0xff]
        %v263 = vld [vmem:[%s222 + $0x60] sm:$0xff]
        %v264 = vld [vmem:[%s222 + $0x68] sm:$0xff]
        %v265 = vld [vmem:[%s222 + $0x78] sm:$0xff]
        %v266 = vld [vmem:[%s222 + $0x80] sm:$0xff]
        %v267 = vld [vmem:[%s222 + $0x90] sm:$0xff]
        %v268 = vld [vmem:[%s222 + $0x98] sm:$0xff]
        %v269 = vld [vmem:[%s222 + $0xa8] sm:$0xff]
        %v270 = vld [vmem:[%s222 + $0xb0] sm:$0xff]
        %v271 = vld [vmem:[%s222 + $0xc0] sm:$0xff]
        %v272 = vld [vmem:[%s222 + $0xc8] sm:$0xff]
        %v273 = vld [vmem:[%s222 + $0xd8] sm:$0xff]
        %v274 = vld [vmem:[%s222 + $0xe0] sm:$0xff]
        %v275 = vld [vmem:[%s222 + $0xf0] sm:$0xff]
        %v276 = vld [vmem:[%s222 + $0xf8] sm:$0xff]
        %v277 = vld [vmem:[%s222 + $0x108] sm:$0xff]
        %v278 = vld [vmem:[%s222 + $0x110] sm:$0xff]
        %v279 = vld [vmem:[%s222 + $0x120] sm:$0xff]
        %v280 = vld [vmem:[%s222 + $0x128] sm:$0xff]
        %v281 = vld [vmem:[%s222 + $0x138] sm:$0xff]
        %v282 = vld [vmem:[%s222 + $0x140] sm:$0xff]
        %v283 = vld [vmem:[%s222 + $0x150] sm:$0xff]
        %v284 = vld [vmem:[%s222 + $0x158] sm:$0xff]
        %v285 = vld [vmem:[%s222 + $0x168] sm:$0xff]
        %v286 = vld [vmem:[%s222 + $0x170] sm:$0xff]
        %v287 = vld [vmem:[#allocation2] sm:$0xff]
        %v288 = vld [vmem:[#allocation2 + $0x8] sm:$0xff]
        %v289 = vld [vmem:[#allocation2 + $0x10] sm:$0xff]
        %v290 = vld [vmem:[#allocation2 + $0x18] sm:$0xff]
        %v291 = vld [vmem:[#allocation2 + $0x20] sm:$0xff]
        %v292 = vld [vmem:[#allocation2 + $0x28] sm:$0xff]
        %v293 = vld [vmem:[#allocation2 + $0x30] sm:$0xff]
        %v294 = vld [vmem:[#allocation2 + $0x38] sm:$0xff]
        %v295 = vld [vmem:[#allocation2 + $0x40] sm:$0xff]
        %v296 = vld [vmem:[#allocation2 + $0x48] sm:$0xff]
        %v297 = vld [vmem:[#allocation2 + $0x50] sm:$0xff]
        %v298 = vld [vmem:[#allocation2 + $0x58] sm:$0xff]
        %v299 = vld [vmem:[#allocation2 + $0x60] sm:$0xff]
        %v300 = vld [vmem:[#allocation2 + $0x68] sm:$0xff]
        %v301 = vld [vmem:[#allocation2 + $0x70] sm:$0xff]
        %v302 = vld [vmem:[#allocation2 + $0x78] sm:$0xff]
        %v303 = vld [vmem:[#allocation2 + $0x80] sm:$0xff]
        %v304 = vld [vmem:[#allocation2 + $0x88] sm:$0xff]
        %v305 = vld [vmem:[#allocation2 + $0x90] sm:$0xff]
        %v306 = vld [vmem:[#allocation2 + $0x98] sm:$0xff]
        %v307 = vld [vmem:[#allocation2 + $0xa0] sm:$0xff]
        %v308 = vld [vmem:[#allocation2 + $0xa8] sm:$0xff]
        %v309 = vld [vmem:[#allocation2 + $0xb0] sm:$0xff]
        %v310 = vld [vmem:[#allocation2 + $0xb8] sm:$0xff]
        %v311 = vld [vmem:[#allocation2 + $0xc0] sm:$0xff]
        %v312 = vld [vmem:[#allocation2 + $0xc8] sm:$0xff]
        %v313 = vld [vmem:[#allocation2 + $0xd0] sm:$0xff]
        %v314 = vld [vmem:[#allocation2 + $0xd8] sm:$0xff]
        %v315 = vld [vmem:[#allocation2 + $0xe0] sm:$0xff]
        %v316 = vld [vmem:[#allocation2 + $0xe8] sm:$0xff]
        %v317 = vld [vmem:[#allocation2 + $0xf0] sm:$0xff]
        %v318 = vld [vmem:[#allocation2 + $0xf8] sm:$0xff]
        %v319 = vld [vmem:[%s1] sm:$0xf]
        %vm320 = vcmask 31744
        %v322 = vsel %vm320, %v255, 0
        %v325 = vsel %vm320, %v256, 0
        %v328 = vsel %vm320, %v257, 0
        %v331 = vsel %vm320, %v258, 0
        %v334 = vsel %vm320, %v259, 0
        %v337 = vsel %vm320, %v260, 0
        %v340 = vsel %vm320, %v261, 0
        %v343 = vsel %vm320, %v262, 0
        %v346 = vsel %vm320, %v263, 0
        %v349 = vsel %vm320, %v264, 0
        %v352 = vsel %vm320, %v265, 0
        %v355 = vsel %vm320, %v266, 0
        %v358 = vsel %vm320, %v267, 0
        %v361 = vsel %vm320, %v268, 0
        %v364 = vsel %vm320, %v269, 0
        %v367 = vsel %vm320, %v270, 0
        %v370 = vsel %vm320, %v271, 0
        %v373 = vsel %vm320, %v272, 0
        %v376 = vsel %vm320, %v273, 0
        %v379 = vsel %vm320, %v274, 0
        %v382 = vsel %vm320, %v275, 0
        %v385 = vsel %vm320, %v276, 0
        %v388 = vsel %vm320, %v277, 0
        %v391 = vsel %vm320, %v278, 0
        %v394 = vsel %vm320, %v279, 0
        %v397 = vsel %vm320, %v280, 0
        %v400 = vsel %vm320, %v281, 0
        %v403 = vsel %vm320, %v282, 0
        %v406 = vsel %vm320, %v283, 0
        %v409 = vsel %vm320, %v284, 0
        %v412 = vsel %vm320, %v285, 0
        %v415 = vsel %vm320, %v286, 0
        %vm417 = vcmask 1043456
        %v419 = vsel %vm417, %v319, 0
        %421 = vmatprep.subr.mxu0 0.0
        %422 = vmatpush1.msra.mxu0 %v419
        %423 = vmatprep.subr.mxu0 0.0
        %424 = vmatpush1.msra.mxu0 0.0
        %425 = vmatprep.subr.mxu0 0.0
        %426 = vmatpush1.msra.mxu0 0.0
        %427 = vmatprep.subr.mxu0 0.0
        %428 = vmatpush1.msra.mxu0 0.0
        %429 = vmatprep.subr.mxu0 0.0
        %430 = vmatpush1.msra.mxu0 0.0
        %431 = vmatprep.subr.mxu0 0.0
        %432 = vmatpush1.msra.mxu0 0.0
        %433 = vmatprep.subr.mxu0 0.0
        %434 = vmatpush1.msra.mxu0 0.0
        %435 = vmatprep.subr.mxu0 0.0
        %436 = vmatpush1.msra.mxu0 0.0
        %437 = vmatprep.subr.mxu0 0.0
        %438 = vmatpush1.msra.mxu0 0.0
        %439 = vmatprep.subr.mxu0 0.0
        %440 = vmatpush1.msra.mxu0 0.0
        %441 = vmatprep.subr.mxu0 0.0
        %442 = vmatpush1.msra.mxu0 0.0
        %443 = vmatprep.subr.mxu0 0.0
        %444 = vmatpush1.msra.mxu0 0.0
        %445 = vmatprep.subr.mxu0 0.0
        %446 = vmatpush1.msra.mxu0 0.0
        %447 = vmatprep.subr.mxu0 0.0
        %448 = vmatpush1.msra.mxu0 0.0
        %449 = vmatprep.subr.mxu0 0.0
        %450 = vmatpush1.msra.mxu0 0.0
        %451 = vmatprep.subr.mxu0 0.0
        %452 = vmatpush1.msra.mxu0 0.0
        %453 = vmatprep.subr.mxu0 0.0
        %454 = vmatpush1.msra.mxu0 0.0
        %455 = vmatprep.subr.mxu0 0.0
        %456 = vmatpush1.msra.mxu0 0.0
        %457 = vmatprep.subr.mxu0 0.0
        %458 = vmatpush1.msra.mxu0 0.0
        %459 = vmatprep.subr.mxu0 0.0
        %460 = vmatpush1.msra.mxu0 0.0
        %461 = vmatprep.subr.mxu0 0.0
        %462 = vmatpush1.msra.mxu0 0.0
        %463 = vmatprep.subr.mxu0 0.0
        %464 = vmatpush1.msra.mxu0 0.0
        %465 = vmatprep.subr.mxu0 0.0
        %466 = vmatpush1.msra.mxu0 0.0
        %467 = vmatprep.subr.mxu0 0.0
        %468 = vmatpush1.msra.mxu0 0.0
        %469 = vmatprep.subr.mxu0 0.0
        %470 = vmatpush1.msra.mxu0 0.0
        %471 = vmatprep.subr.mxu0 0.0
        %472 = vmatpush1.msra.mxu0 0.0
        %473 = vmatprep.subr.mxu0 0.0
        %474 = vmatpush1.msra.mxu0 0.0
        %475 = vmatprep.subr.mxu0 0.0
        %476 = vmatpush1.msra.mxu0 0.0
        %477 = vmatprep.subr.mxu0 0.0
        %478 = vmatpush1.msra.mxu0 0.0
        %479 = vmatprep.subr.mxu0 0.0
        %480 = vmatpush1.msra.mxu0 0.0
        %481 = vmatprep.subr.mxu0 0.0
        %482 = vmatpush1.msra.mxu0 0.0
        %483 = vmatprep.subr.mxu0 0.0
        %484 = vmatpush1.msra.mxu0 0.0
        %485 = vmatprep.mubr.f32.mxu0 0.0
        %486 = vmatmul.mubr.f32.gmra.mrb[0].mxu0 %v322
        %v487 = vpop.f32.mrb[0].mxu0
        %v488 = vadd.f32 0.0, %v487
        %v489 = vpop.f32.mrb[0].mxu0
        %490 = vmatprep.mubr.f32.mxu0 0.0
        %491 = vmatmul.mubr.f32.gmra.mrb[0].mxu0 %v325
        %v492 = vpop.f32.mrb[0].mxu0
        %v493 = vadd.f32 0.0, %v492
        %v494 = vpop.f32.mrb[0].mxu0
        %495 = vmatprep.mubr.f32.mxu0 0.0
        %496 = vmatmul.mubr.f32.gmra.mrb[0].mxu0 %v328
        %v497 = vpop.f32.mrb[0].mxu0
        %v498 = vadd.f32 0.0, %v497
        %v499 = vpop.f32.mrb[0].mxu0
        %500 = vmatprep.mubr.f32.mxu0 0.0
        %501 = vmatmul.mubr.f32.gmra.mrb[0].mxu0 %v331
        %v502 = vpop.f32.mrb[0].mxu0
        %v503 = vadd.f32 0.0, %v502
        %v504 = vpop.f32.mrb[0].mxu0
        %505 = vmatprep.mubr.f32.mxu0 0.0
        %506 = vmatmul.mubr.f32.gmra.mrb[0].mxu0 %v334
        %v507 = vpop.f32.mrb[0].mxu0
        %v508 = vadd.f32 0.0, %v507
        %v509 = vpop.f32.mrb[0].mxu0
        %510 = vmatprep.mubr.f32.mxu0 0.0
        %511 = vmatmul.mubr.f32.gmra.mrb[0].mxu0 %v337
        %v512 = vpop.f32.mrb[0].mxu0
        %v513 = vadd.f32 0.0, %v512
        %v514 = vpop.f32.mrb[0].mxu0
        %515 = vmatprep.mubr.f32.mxu0 0.0
        %516 = vmatmul.mubr.f32.gmra.mrb[0].mxu0 %v340
        %v517 = vpop.f32.mrb[0].mxu0
        %v518 = vadd.f32 0.0, %v517
        %v519 = vpop.f32.mrb[0].mxu0
        %520 = vmatprep.mubr.f32.mxu0 0.0
        %521 = vmatmul.mubr.f32.gmra.mrb[0].mxu0 %v343
        %v522 = vpop.f32.mrb[0].mxu0
        %v523 = vadd.f32 0.0, %v522
        %v524 = vpop.f32.mrb[0].mxu0
        %525 = vmatprep.mubr.f32.mxu0 0.0
        %526 = vmatmul.mubr.f32.gmra.mrb[0].mxu0 %v346
        %v527 = vpop.f32.mrb[0].mxu0
        %v528 = vadd.f32 0.0, %v527
        %v529 = vpop.f32.mrb[0].mxu0
        %530 = vmatprep.mubr.f32.mxu0 0.0
        %531 = vmatmul.mubr.f32.gmra.mrb[0].mxu0 %v349
        %v532 = vpop.f32.mrb[0].mxu0
        %v533 = vadd.f32 0.0, %v532
        %v534 = vpop.f32.mrb[0].mxu0
        %535 = vmatprep.mubr.f32.mxu0 0.0
        %536 = vmatmul.mubr.f32.gmra.mrb[0].mxu0 %v352
        %v537 = vpop.f32.mrb[0].mxu0
        %v538 = vadd.f32 0.0, %v537
        %v539 = vpop.f32.mrb[0].mxu0
        %540 = vmatprep.mubr.f32.mxu0 0.0
        %541 = vmatmul.mubr.f32.gmra.mrb[0].mxu0 %v355
        %v542 = vpop.f32.mrb[0].mxu0
        %v543 = vadd.f32 0.0, %v542
        %v544 = vpop.f32.mrb[0].mxu0
        %545 = vmatprep.mubr.f32.mxu0 0.0
        %546 = vmatmul.mubr.f32.gmra.mrb[0].mxu0 %v358
        %v547 = vpop.f32.mrb[0].mxu0
        %v548 = vadd.f32 0.0, %v547
        %v549 = vpop.f32.mrb[0].mxu0
        %550 = vmatprep.mubr.f32.mxu0 0.0
        %551 = vmatmul.mubr.f32.gmra.mrb[0].mxu0 %v361
        %v552 = vpop.f32.mrb[0].mxu0
        %v553 = vadd.f32 0.0, %v552
        %v554 = vpop.f32.mrb[0].mxu0
        %555 = vmatprep.mubr.f32.mxu0 0.0
        %556 = vmatmul.mubr.f32.gmra.mrb[0].mxu0 %v364
        %v557 = vpop.f32.mrb[0].mxu0
        %v558 = vadd.f32 0.0, %v557
        %v559 = vpop.f32.mrb[0].mxu0
        %560 = vmatprep.mubr.f32.mxu0 0.0
        %561 = vmatmul.mubr.f32.gmra.mrb[0].mxu0 %v367
        %v562 = vpop.f32.mrb[0].mxu0
        %v563 = vadd.f32 0.0, %v562
        %v564 = vpop.f32.mrb[0].mxu0
        %565 = vmatprep.mubr.f32.mxu0 0.0
        %566 = vmatmul.mubr.f32.gmra.mrb[0].mxu0 %v370
        %v567 = vpop.f32.mrb[0].mxu0
        %v568 = vadd.f32 0.0, %v567
        %v569 = vpop.f32.mrb[0].mxu0
        %570 = vmatprep.mubr.f32.mxu0 0.0
        %571 = vmatmul.mubr.f32.gmra.mrb[0].mxu0 %v373
        %v572 = vpop.f32.mrb[0].mxu0
        %v573 = vadd.f32 0.0, %v572
        %v574 = vpop.f32.mrb[0].mxu0
        %575 = vmatprep.mubr.f32.mxu0 0.0
        %576 = vmatmul.mubr.f32.gmra.mrb[0].mxu0 %v376
        %v577 = vpop.f32.mrb[0].mxu0
        %v578 = vadd.f32 0.0, %v577
        %v579 = vpop.f32.mrb[0].mxu0
        %580 = vmatprep.mubr.f32.mxu0 0.0
        %581 = vmatmul.mubr.f32.gmra.mrb[0].mxu0 %v379
        %v582 = vpop.f32.mrb[0].mxu0
        %v583 = vadd.f32 0.0, %v582
        %v584 = vpop.f32.mrb[0].mxu0
        %585 = vmatprep.mubr.f32.mxu0 0.0
        %586 = vmatmul.mubr.f32.gmra.mrb[0].mxu0 %v382
        %v587 = vpop.f32.mrb[0].mxu0
        %v588 = vadd.f32 0.0, %v587
        %v589 = vpop.f32.mrb[0].mxu0
        %590 = vmatprep.mubr.f32.mxu0 0.0
        %591 = vmatmul.mubr.f32.gmra.mrb[0].mxu0 %v385
        %v592 = vpop.f32.mrb[0].mxu0
        %v593 = vadd.f32 0.0, %v592
        %v594 = vpop.f32.mrb[0].mxu0
        %595 = vmatprep.mubr.f32.mxu0 0.0
        %596 = vmatmul.mubr.f32.gmra.mrb[0].mxu0 %v388
        %v597 = vpop.f32.mrb[0].mxu0
        %v598 = vadd.f32 0.0, %v597
        %v599 = vpop.f32.mrb[0].mxu0
        %600 = vmatprep.mubr.f32.mxu0 0.0
        %601 = vmatmul.mubr.f32.gmra.mrb[0].mxu0 %v391
        %v602 = vpop.f32.mrb[0].mxu0
        %v603 = vadd.f32 0.0, %v602
        %v604 = vpop.f32.mrb[0].mxu0
        %605 = vmatprep.mubr.f32.mxu0 0.0
        %606 = vmatmul.mubr.f32.gmra.mrb[0].mxu0 %v394
        %v607 = vpop.f32.mrb[0].mxu0
        %v608 = vadd.f32 0.0, %v607
        %v609 = vpop.f32.mrb[0].mxu0
        %610 = vmatprep.mubr.f32.mxu0 0.0
        %611 = vmatmul.mubr.f32.gmra.mrb[0].mxu0 %v397
        %v612 = vpop.f32.mrb[0].mxu0
        %v613 = vadd.f32 0.0, %v612
        %v614 = vpop.f32.mrb[0].mxu0
        %615 = vmatprep.mubr.f32.mxu0 0.0
        %616 = vmatmul.mubr.f32.gmra.mrb[0].mxu0 %v400
        %v617 = vpop.f32.mrb[0].mxu0
        %v618 = vadd.f32 0.0, %v617
        %v619 = vpop.f32.mrb[0].mxu0
        %620 = vmatprep.mubr.f32.mxu0 0.0
        %621 = vmatmul.mubr.f32.gmra.mrb[0].mxu0 %v403
        %v622 = vpop.f32.mrb[0].mxu0
        %v623 = vadd.f32 0.0, %v622
        %v624 = vpop.f32.mrb[0].mxu0
        %625 = vmatprep.mubr.f32.mxu0 0.0
        %626 = vmatmul.mubr.f32.gmra.mrb[0].mxu0 %v406
        %v627 = vpop.f32.mrb[0].mxu0
        %v628 = vadd.f32 0.0, %v627
        %v629 = vpop.f32.mrb[0].mxu0
        %630 = vmatprep.mubr.f32.mxu0 0.0
        %631 = vmatmul.mubr.f32.gmra.mrb[0].mxu0 %v409
        %v632 = vpop.f32.mrb[0].mxu0
        %v633 = vadd.f32 0.0, %v632
        %v634 = vpop.f32.mrb[0].mxu0
        %635 = vmatprep.mubr.f32.mxu0 0.0
        %636 = vmatmul.mubr.f32.gmra.mrb[0].mxu0 %v412
        %v637 = vpop.f32.mrb[0].mxu0
        %v638 = vadd.f32 0.0, %v637
        %v639 = vpop.f32.mrb[0].mxu0
        %640 = vmatprep.mubr.f32.mxu0 0.0
        %641 = vmatmul.mubr.f32.gmra.mrb[0].mxu0 %v415
        %v642 = vpop.f32.mrb[0].mxu0
        %v643 = vadd.f32 0.0, %v642
        %v644 = vpop.f32.mrb[0].mxu0
        %645 = vdwg.mxu0
        %v646 = vadd.f32 %v287, %v488
        %v647 = vadd.f32 %v288, %v493
        %v648 = vadd.f32 %v289, %v498
        %v649 = vadd.f32 %v290, %v503
        %v650 = vadd.f32 %v291, %v508
        %v651 = vadd.f32 %v292, %v513
        %v652 = vadd.f32 %v293, %v518
        %v653 = vadd.f32 %v294, %v523
        %v654 = vadd.f32 %v295, %v528
        %v655 = vadd.f32 %v296, %v533
        %v656 = vadd.f32 %v297, %v538
        %v657 = vadd.f32 %v298, %v543
        %v658 = vadd.f32 %v299, %v548
        %v659 = vadd.f32 %v300, %v553
        %v660 = vadd.f32 %v301, %v558
        %v661 = vadd.f32 %v302, %v563
        %v662 = vadd.f32 %v303, %v568
        %v663 = vadd.f32 %v304, %v573
        %v664 = vadd.f32 %v305, %v578
        %v665 = vadd.f32 %v306, %v583
        %v666 = vadd.f32 %v307, %v588
        %v667 = vadd.f32 %v308, %v593
        %v668 = vadd.f32 %v309, %v598
        %v669 = vadd.f32 %v310, %v603
        %v670 = vadd.f32 %v311, %v608
        %v671 = vadd.f32 %v312, %v613
        %v672 = vadd.f32 %v313, %v618
        %v673 = vadd.f32 %v314, %v623
        %v674 = vadd.f32 %v315, %v628
        %v675 = vadd.f32 %v316, %v633
        %v676 = vadd.f32 %v317, %v638
        %v677 = vadd.f32 %v318, %v643
        %678 = vst [vmem:[#allocation2] sm:$0xff] %v646
        %679 = vst [vmem:[#allocation2 + $0x8] sm:$0xff] %v647
        %680 = vst [vmem:[#allocation2 + $0x10] sm:$0xff] %v648
        %681 = vst [vmem:[#allocation2 + $0x18] sm:$0xff] %v649
        %682 = vst [vmem:[#allocation2 + $0x20] sm:$0xff] %v650
        %683 = vst [vmem:[#allocation2 + $0x28] sm:$0xff] %v651
        %684 = vst [vmem:[#allocation2 + $0x30] sm:$0xff] %v652
        %685 = vst [vmem:[#allocation2 + $0x38] sm:$0xff] %v653
        %686 = vst [vmem:[#allocation2 + $0x40] sm:$0xff] %v654
        %687 = vst [vmem:[#allocation2 + $0x48] sm:$0xff] %v655
        %688 = vst [vmem:[#allocation2 + $0x50] sm:$0xff] %v656
        %689 = vst [vmem:[#allocation2 + $0x58] sm:$0xff] %v657
        %690 = vst [vmem:[#allocation2 + $0x60] sm:$0xff] %v658
        %691 = vst [vmem:[#allocation2 + $0x68] sm:$0xff] %v659
        %692 = vst [vmem:[#allocation2 + $0x70] sm:$0xff] %v660
        %693 = vst [vmem:[#allocation2 + $0x78] sm:$0xff] %v661
        %694 = vst [vmem:[#allocation2 + $0x80] sm:$0xff] %v662
        %695 = vst [vmem:[#allocation2 + $0x88] sm:$0xff] %v663
        %696 = vst [vmem:[#allocation2 + $0x90] sm:$0xff] %v664
        %697 = vst [vmem:[#allocation2 + $0x98] sm:$0xff] %v665
        %698 = vst [vmem:[#allocation2 + $0xa0] sm:$0xff] %v666
        %699 = vst [vmem:[#allocation2 + $0xa8] sm:$0xff] %v667
        %700 = vst [vmem:[#allocation2 + $0xb0] sm:$0xff] %v668
        %701 = vst [vmem:[#allocation2 + $0xb8] sm:$0xff] %v669
        %702 = vst [vmem:[#allocation2 + $0xc0] sm:$0xff] %v670
        %703 = vst [vmem:[#allocation2 + $0xc8] sm:$0xff] %v671
        %704 = vst [vmem:[#allocation2 + $0xd0] sm:$0xff] %v672
        %705 = vst [vmem:[#allocation2 + $0xd8] sm:$0xff] %v673
        %706 = vst [vmem:[#allocation2 + $0xe0] sm:$0xff] %v674
        %707 = vst [vmem:[#allocation2 + $0xe8] sm:$0xff] %v675
        %708 = vst [vmem:[#allocation2 + $0xf0] sm:$0xff] %v676
        %709 = vst [vmem:[#allocation2 + $0xf8] sm:$0xff] %v677
        %v710 = vld [vmem:[%s222 + $0x1] sm:$0xff]
        %v711 = vld [vmem:[%s222 + $0x9] sm:$0xff]
        %v712 = vld [vmem:[%s222 + $0x19] sm:$0xff]
        %v713 = vld [vmem:[%s222 + $0x21] sm:$0xff]
        %v714 = vld [vmem:[%s222 + $0x31] sm:$0xff]
        %v715 = vld [vmem:[%s222 + $0x39] sm:$0xff]
        %v716 = vld [vmem:[%s222 + $0x49] sm:$0xff]
        %v717 = vld [vmem:[%s222 + $0x51] sm:$0xff]
        %v718 = vld [vmem:[%s222 + $0x61] sm:$0xff]
        %v719 = vld [vmem:[%s222 + $0x69] sm:$0xff]
        %v720 = vld [vmem:[%s222 + $0x79] sm:$0xff]
        %v721 = vld [vmem:[%s222 + $0x81] sm:$0xff]
        %v722 = vld [vmem:[%s222 + $0x91] sm:$0xff]
        %v723 = vld [vmem:[%s222 + $0x99] sm:$0xff]
        %v724 = vld [vmem:[%s222 + $0xa9] sm:$0xff]
        %v725 = vld [vmem:[%s222 + $0xb1] sm:$0xff]
        %v726 = vld [vmem:[%s222 + $0xc1] sm:$0xff]
        %v727 = vld [vmem:[%s222 + $0xc9] sm:$0xff]
        %v728 = vld [vmem:[%s222 + $0xd9] sm:$0xff]
        %v729 = vld [vmem:[%s222 + $0xe1] sm:$0xff]
        %v730 = vld [vmem:[%s222 + $0xf1] sm:$0xff]
        %v731 = vld [vmem:[%s222 + $0xf9] sm:$0xff]
        %v732 = vld [vmem:[%s222 + $0x109] sm:$0xff]
        %v733 = vld [vmem:[%s222 + $0x111] sm:$0xff]
        %v734 = vld [vmem:[%s222 + $0x121] sm:$0xff]
        %v735 = vld [vmem:[%s222 + $0x129] sm:$0xff]
        %v736 = vld [vmem:[%s222 + $0x139] sm:$0xff]
        %v737 = vld [vmem:[%s222 + $0x141] sm:$0xff]
        %v738 = vld [vmem:[%s222 + $0x151] sm:$0xff]
        %v739 = vld [vmem:[%s222 + $0x159] sm:$0xff]
        %v740 = vld [vmem:[%s222 + $0x169] sm:$0xff]
        %v741 = vld [vmem:[%s222 + $0x171] sm:$0xff]
        %v742 = vld [vmem:[#allocation2] sm:$0xff]
        %v743 = vld [vmem:[#allocation2 + $0x8] sm:$0xff]
        %v744 = vld [vmem:[#allocation2 + $0x10] sm:$0xff]
        %v745 = vld [vmem:[#allocation2 + $0x18] sm:$0xff]
        %v746 = vld [vmem:[#allocation2 + $0x20] sm:$0xff]
        %v747 = vld [vmem:[#allocation2 + $0x28] sm:$0xff]
        %v748 = vld [vmem:[#allocation2 + $0x30] sm:$0xff]
        %v749 = vld [vmem:[#allocation2 + $0x38] sm:$0xff]
        %v750 = vld [vmem:[#allocation2 + $0x40] sm:$0xff]
        %v751 = vld [vmem:[#allocation2 + $0x48] sm:$0xff]
        %v752 = vld [vmem:[#allocation2 + $0x50] sm:$0xff]
        %v753 = vld [vmem:[#allocation2 + $0x58] sm:$0xff]
        %v754 = vld [vmem:[#allocation2 + $0x60] sm:$0xff]
        %v755 = vld [vmem:[#allocation2 + $0x68] sm:$0xff]
        %v756 = vld [vmem:[#allocation2 + $0x70] sm:$0xff]
        %v757 = vld [vmem:[#allocation2 + $0x78] sm:$0xff]
        %v758 = vld [vmem:[#allocation2 + $0x80] sm:$0xff]
        %v759 = vld [vmem:[#allocation2 + $0x88] sm:$0xff]
        %v760 = vld [vmem:[#allocation2 + $0x90] sm:$0xff]
        %v761 = vld [vmem:[#allocation2 + $0x98] sm:$0xff]
        %v762 = vld [vmem:[#allocation2 + $0xa0] sm:$0xff]
        %v763 = vld [vmem:[#allocation2 + $0xa8] sm:$0xff]
        %v764 = vld [vmem:[#allocation2 + $0xb0] sm:$0xff]
        %v765 = vld [vmem:[#allocation2 + $0xb8] sm:$0xff]
        %v766 = vld [vmem:[#allocation2 + $0xc0] sm:$0xff]
        %v767 = vld [vmem:[#allocation2 + $0xc8] sm:$0xff]
        %v768 = vld [vmem:[#allocation2 + $0xd0] sm:$0xff]
        %v769 = vld [vmem:[#allocation2 + $0xd8] sm:$0xff]
        %v770 = vld [vmem:[#allocation2 + $0xe0] sm:$0xff]
        %v771 = vld [vmem:[#allocation2 + $0xe8] sm:$0xff]
        %v772 = vld [vmem:[#allocation2 + $0xf0] sm:$0xff]
        %v773 = vld [vmem:[#allocation2 + $0xf8] sm:$0xff]
        %s774 = scalar_lea.vmem %s1, 4
        %v775 = vld [vmem:[%s774] sm:$0xf]
        %v777 = vsel %vm320, %v710, 0
        %v780 = vsel %vm320, %v711, 0
        %v783 = vsel %vm320, %v712, 0
        %v786 = vsel %vm320, %v713, 0
        %v789 = vsel %vm320, %v714, 0
        %v792 = vsel %vm320, %v715, 0
        %v795 = vsel %vm320, %v716, 0
        %v798 = vsel %vm320, %v717, 0
        %v801 = vsel %vm320, %v718, 0
        %v804 = vsel %vm320, %v719, 0
        %v807 = vsel %vm320, %v720, 0
        %v810 = vsel %vm320, %v721, 0
        %v813 = vsel %vm320, %v722, 0
        %v816 = vsel %vm320, %v723, 0
        %v819 = vsel %vm320, %v724, 0
        %v822 = vsel %vm320, %v725, 0
        %v825 = vsel %vm320, %v726, 0
        %v828 = vsel %vm320, %v727, 0
        %v831 = vsel %vm320, %v728, 0
        %v834 = vsel %vm320, %v729, 0
        %v837 = vsel %vm320, %v730, 0
        %v840 = vsel %vm320, %v731, 0
        %v843 = vsel %vm320, %v732, 0
        %v846 = vsel %vm320, %v733, 0
        %v849 = vsel %vm320, %v734, 0
        %v852 = vsel %vm320, %v735, 0
        %v855 = vsel %vm320, %v736, 0
        %v858 = vsel %vm320, %v737, 0
        %v861 = vsel %vm320, %v738, 0
        %v864 = vsel %vm320, %v739, 0
        %v867 = vsel %vm320, %v740, 0
        %v870 = vsel %vm320, %v741, 0
        %v873 = vsel %vm417, %v775, 0
        %875 = vmatprep.subr.mxu0 0.0
        %876 = vmatpush1.msra.mxu0 %v873
        %877 = vmatprep.subr.mxu0 0.0
        %878 = vmatpush1.msra.mxu0 0.0
        %879 = vmatprep.subr.mxu0 0.0
        %880 = vmatpush1.msra.mxu0 0.0
        %881 = vmatprep.subr.mxu0 0.0
        %882 = vmatpush1.msra.mxu0 0.0
        %883 = vmatprep.subr.mxu0 0.0
        %884 = vmatpush1.msra.mxu0 0.0
        %885 = vmatprep.subr.mxu0 0.0
        %886 = vmatpush1.msra.mxu0 0.0
        %887 = vmatprep.subr.mxu0 0.0
        %888 = vmatpush1.msra.mxu0 0.0
        %889 = vmatprep.subr.mxu0 0.0
        %890 = vmatpush1.msra.mxu0 0.0
        %891 = vmatprep.subr.mxu0 0.0
        %892 = vmatpush1.msra.mxu0 0.0
        %893 = vmatprep.subr.mxu0 0.0
        %894 = vmatpush1.msra.mxu0 0.0
        %895 = vmatprep.subr.mxu0 0.0
        %896 = vmatpush1.msra.mxu0 0.0
        %897 = vmatprep.subr.mxu0 0.0
        %898 = vmatpush1.msra.mxu0 0.0
        %899 = vmatprep.subr.mxu0 0.0
        %900 = vmatpush1.msra.mxu0 0.0
        %901 = vmatprep.subr.mxu0 0.0
        %902 = vmatpush1.msra.mxu0 0.0
        %903 = vmatprep.subr.mxu0 0.0
        %904 = vmatpush1.msra.mxu0 0.0
        %905 = vmatprep.subr.mxu0 0.0
        %906 = vmatpush1.msra.mxu0 0.0
        %907 = vmatprep.subr.mxu0 0.0
        %908 = vmatpush1.msra.mxu0 0.0
        %909 = vmatprep.subr.mxu0 0.0
        %910 = vmatpush1.msra.mxu0 0.0
        %911 = vmatprep.subr.mxu0 0.0
        %912 = vmatpush1.msra.mxu0 0.0
        %913 = vmatprep.subr.mxu0 0.0
        %914 = vmatpush1.msra.mxu0 0.0
        %915 = vmatprep.subr.mxu0 0.0
        %916 = vmatpush1.msra.mxu0 0.0
        %917 = vmatprep.subr.mxu0 0.0
        %918 = vmatpush1.msra.mxu0 0.0
        %919 = vmatprep.subr.mxu0 0.0
        %920 = vmatpush1.msra.mxu0 0.0
        %921 = vmatprep.subr.mxu0 0.0
        %922 = vmatpush1.msra.mxu0 0.0
        %923 = vmatprep.subr.mxu0 0.0
        %924 = vmatpush1.msra.mxu0 0.0
        %925 = vmatprep.subr.mxu0 0.0
        %926 = vmatpush1.msra.mxu0 0.0
        %927 = vmatprep.subr.mxu0 0.0
        %928 = vmatpush1.msra.mxu0 0.0
        %929 = vmatprep.subr.mxu0 0.0
        %930 = vmatpush1.msra.mxu0 0.0
        %931 = vmatprep.subr.mxu0 0.0
        %932 = vmatpush1.msra.mxu0 0.0
        %933 = vmatprep.subr.mxu0 0.0
        %934 = vmatpush1.msra.mxu0 0.0
        %935 = vmatprep.subr.mxu0 0.0
        %936 = vmatpush1.msra.mxu0 0.0
        %937 = vmatprep.subr.mxu0 0.0
        %938 = vmatpush1.msra.mxu0 0.0
        %939 = vmatprep.mubr.f32.mxu0 0.0
        %940 = vmatmul.mubr.f32.gmra.mrb[0].mxu0 %v777
        %v941 = vpop.f32.mrb[0].mxu0
        %v942 = vadd.f32 0.0, %v941
        %v943 = vpop.f32.mrb[0].mxu0
        %944 = vmatprep.mubr.f32.mxu0 0.0
        %945 = vmatmul.mubr.f32.gmra.mrb[0].mxu0 %v780
        %v946 = vpop.f32.mrb[0].mxu0
        %v947 = vadd.f32 0.0, %v946
        %v948 = vpop.f32.mrb[0].mxu0
        %949 = vmatprep.mubr.f32.mxu0 0.0
        %950 = vmatmul.mubr.f32.gmra.mrb[0].mxu0 %v783
        %v951 = vpop.f32.mrb[0].mxu0
        %v952 = vadd.f32 0.0, %v951
        %v953 = vpop.f32.mrb[0].mxu0
        %954 = vmatprep.mubr.f32.mxu0 0.0
        %955 = vmatmul.mubr.f32.gmra.mrb[0].mxu0 %v786
        %v956 = vpop.f32.mrb[0].mxu0
        %v957 = vadd.f32 0.0, %v956
        %v958 = vpop.f32.mrb[0].mxu0
        %959 = vmatprep.mubr.f32.mxu0 0.0
        %960 = vmatmul.mubr.f32.gmra.mrb[0].mxu0 %v789
        %v961 = vpop.f32.mrb[0].mxu0
        %v962 = vadd.f32 0.0, %v961
        %v963 = vpop.f32.mrb[0].mxu0
        %964 = vmatprep.mubr.f32.mxu0 0.0
        %965 = vmatmul.mubr.f32.gmra.mrb[0].mxu0 %v792
        %v966 = vpop.f32.mrb[0].mxu0
        %v967 = vadd.f32 0.0, %v966
        %v968 = vpop.f32.mrb[0].mxu0
        %969 = vmatprep.mubr.f32.mxu0 0.0
        %970 = vmatmul.mubr.f32.gmra.mrb[0].mxu0 %v795
        %v971 = vpop.f32.mrb[0].mxu0
        %v972 = vadd.f32 0.0, %v971
        %v973 = vpop.f32.mrb[0].mxu0
        %974 = vmatprep.mubr.f32.mxu0 0.0
        %975 = vmatmul.mubr.f32.gmra.mrb[0].mxu0 %v798
        %v976 = vpop.f32.mrb[0].mxu0
        %v977 = vadd.f32 0.0, %v976
        %v978 = vpop.f32.mrb[0].mxu0
        %979 = vmatprep.mubr.f32.mxu0 0.0
        %980 = vmatmul.mubr.f32.gmra.mrb[0].mxu0 %v801
        %v981 = vpop.f32.mrb[0].mxu0
        %v982 = vadd.f32 0.0, %v981
        %v983 = vpop.f32.mrb[0].mxu0
        %984 = vmatprep.mubr.f32.mxu0 0.0
        %985 = vmatmul.mubr.f32.gmra.mrb[0].mxu0 %v804
        %v986 = vpop.f32.mrb[0].mxu0
        %v987 = vadd.f32 0.0, %v986
        %v988 = vpop.f32.mrb[0].mxu0
        %989 = vmatprep.mubr.f32.mxu0 0.0
        %990 = vmatmul.mubr.f32.gmra.mrb[0].mxu0 %v807
        %v991 = vpop.f32.mrb[0].mxu0
        %v992 = vadd.f32 0.0, %v991
        %v993 = vpop.f32.mrb[0].mxu0
        %994 = vmatprep.mubr.f32.mxu0 0.0
        %995 = vmatmul.mubr.f32.gmra.mrb[0].mxu0 %v810
        %v996 = vpop.f32.mrb[0].mxu0
        %v997 = vadd.f32 0.0, %v996
        %v998 = vpop.f32.mrb[0].mxu0
        %999 = vmatprep.mubr.f32.mxu0 0.0
        %1000 = vmatmul.mubr.f32.gmra.mrb[0].mxu0 %v813
        %v1001 = vpop.f32.mrb[0].mxu0
        %v1002 = vadd.f32 0.0, %v1001
        %v1003 = vpop.f32.mrb[0].mxu0
        %1004 = vmatprep.mubr.f32.mxu0 0.0
        %1005 = vmatmul.mubr.f32.gmra.mrb[0].mxu0 %v816
        %v1006 = vpop.f32.mrb[0].mxu0
        %v1007 = vadd.f32 0.0, %v1006
        %v1008 = vpop.f32.mrb[0].mxu0
        %1009 = vmatprep.mubr.f32.mxu0 0.0
        %1010 = vmatmul.mubr.f32.gmra.mrb[0].mxu0 %v819
        %v1011 = vpop.f32.mrb[0].mxu0
        %v1012 = vadd.f32 0.0, %v1011
        %v1013 = vpop.f32.mrb[0].mxu0
        %1014 = vmatprep.mubr.f32.mxu0 0.0
        %1015 = vmatmul.mubr.f32.gmra.mrb[0].mxu0 %v822
        %v1016 = vpop.f32.mrb[0].mxu0
        %v1017 = vadd.f32 0.0, %v1016
        %v1018 = vpop.f32.mrb[0].mxu0
        %1019 = vmatprep.mubr.f32.mxu0 0.0
        %1020 = vmatmul.mubr.f32.gmra.mrb[0].mxu0 %v825
        %v1021 = vpop.f32.mrb[0].mxu0
        %v1022 = vadd.f32 0.0, %v1021
        %v1023 = vpop.f32.mrb[0].mxu0
        %1024 = vmatprep.mubr.f32.mxu0 0.0
        %1025 = vmatmul.mubr.f32.gmra.mrb[0].mxu0 %v828
        %v1026 = vpop.f32.mrb[0].mxu0
        %v1027 = vadd.f32 0.0, %v1026
        %v1028 = vpop.f32.mrb[0].mxu0
        %1029 = vmatprep.mubr.f32.mxu0 0.0
        %1030 = vmatmul.mubr.f32.gmra.mrb[0].mxu0 %v831
        %v1031 = vpop.f32.mrb[0].mxu0
        %v1032 = vadd.f32 0.0, %v1031
        %v1033 = vpop.f32.mrb[0].mxu0
        %1034 = vmatprep.mubr.f32.mxu0 0.0
        %1035 = vmatmul.mubr.f32.gmra.mrb[0].mxu0 %v834
        %v1036 = vpop.f32.mrb[0].mxu0
        %v1037 = vadd.f32 0.0, %v1036
        %v1038 = vpop.f32.mrb[0].mxu0
        %1039 = vmatprep.mubr.f32.mxu0 0.0
        %1040 = vmatmul.mubr.f32.gmra.mrb[0].mxu0 %v837
        %v1041 = vpop.f32.mrb[0].mxu0
        %v1042 = vadd.f32 0.0, %v1041
        %v1043 = vpop.f32.mrb[0].mxu0
        %1044 = vmatprep.mubr.f32.mxu0 0.0
        %1045 = vmatmul.mubr.f32.gmra.mrb[0].mxu0 %v840
        %v1046 = vpop.f32.mrb[0].mxu0
        %v1047 = vadd.f32 0.0, %v1046
        %v1048 = vpop.f32.mrb[0].mxu0
        %1049 = vmatprep.mubr.f32.mxu0 0.0
        %1050 = vmatmul.mubr.f32.gmra.mrb[0].mxu0 %v843
        %v1051 = vpop.f32.mrb[0].mxu0
        %v1052 = vadd.f32 0.0, %v1051
        %v1053 = vpop.f32.mrb[0].mxu0
        %1054 = vmatprep.mubr.f32.mxu0 0.0
        %1055 = vmatmul.mubr.f32.gmra.mrb[0].mxu0 %v846
        %v1056 = vpop.f32.mrb[0].mxu0
        %v1057 = vadd.f32 0.0, %v1056
        %v1058 = vpop.f32.mrb[0].mxu0
        %1059 = vmatprep.mubr.f32.mxu0 0.0
        %1060 = vmatmul.mubr.f32.gmra.mrb[0].mxu0 %v849
        %v1061 = vpop.f32.mrb[0].mxu0
        %v1062 = vadd.f32 0.0, %v1061
        %v1063 = vpop.f32.mrb[0].mxu0
        %1064 = vmatprep.mubr.f32.mxu0 0.0
        %1065 = vmatmul.mubr.f32.gmra.mrb[0].mxu0 %v852
        %v1066 = vpop.f32.mrb[0].mxu0
        %v1067 = vadd.f32 0.0, %v1066
        %v1068 = vpop.f32.mrb[0].mxu0
        %1069 = vmatprep.mubr.f32.mxu0 0.0
        %1070 = vmatmul.mubr.f32.gmra.mrb[0].mxu0 %v855
        %v1071 = vpop.f32.mrb[0].mxu0
        %v1072 = vadd.f32 0.0, %v1071
        %v1073 = vpop.f32.mrb[0].mxu0
        %1074 = vmatprep.mubr.f32.mxu0 0.0
        %1075 = vmatmul.mubr.f32.gmra.mrb[0].mxu0 %v858
        %v1076 = vpop.f32.mrb[0].mxu0
        %v1077 = vadd.f32 0.0, %v1076
        %v1078 = vpop.f32.mrb[0].mxu0
        %1079 = vmatprep.mubr.f32.mxu0 0.0
        %1080 = vmatmul.mubr.f32.gmra.mrb[0].mxu0 %v861
        %v1081 = vpop.f32.mrb[0].mxu0
        %v1082 = vadd.f32 0.0, %v1081
        %v1083 = vpop.f32.mrb[0].mxu0
        %1084 = vmatprep.mubr.f32.mxu0 0.0
        %1085 = vmatmul.mubr.f32.gmra.mrb[0].mxu0 %v864
        %v1086 = vpop.f32.mrb[0].mxu0
        %v1087 = vadd.f32 0.0, %v1086
        %v1088 = vpop.f32.mrb[0].mxu0
        %1089 = vmatprep.mubr.f32.mxu0 0.0
        %1090 = vmatmul.mubr.f32.gmra.mrb[0].mxu0 %v867
        %v1091 = vpop.f32.mrb[0].mxu0
        %v1092 = vadd.f32 0.0, %v1091
        %v1093 = vpop.f32.mrb[0].mxu0
        %1094 = vmatprep.mubr.f32.mxu0 0.0
        %1095 = vmatmul.mubr.f32.gmra.mrb[0].mxu0 %v870
        %v1096 = vpop.f32.mrb[0].mxu0
        %v1097 = vadd.f32 0.0, %v1096
        %v1098 = vpop.f32.mrb[0].mxu0
        %1099 = vdwg.mxu0
        %v1100 = vadd.f32 %v742, %v942
        %v1101 = vadd.f32 %v743, %v947
        %v1102 = vadd.f32 %v744, %v952
        %v1103 = vadd.f32 %v745, %v957
        %v1104 = vadd.f32 %v746, %v962
        %v1105 = vadd.f32 %v747, %v967
        %v1106 = vadd.f32 %v748, %v972
        %v1107 = vadd.f32 %v749, %v977
        %v1108 = vadd.f32 %v750, %v982
        %v1109 = vadd.f32 %v751, %v987
        %v1110 = vadd.f32 %v752, %v992
        %v1111 = vadd.f32 %v753, %v997
        %v1112 = vadd.f32 %v754, %v1002
        %v1113 = vadd.f32 %v755, %v1007
        %v1114 = vadd.f32 %v756, %v1012
        %v1115 = vadd.f32 %v757, %v1017
        %v1116 = vadd.f32 %v758, %v1022
        %v1117 = vadd.f32 %v759, %v1027
        %v1118 = vadd.f32 %v760, %v1032
        %v1119 = vadd.f32 %v761, %v1037
        %v1120 = vadd.f32 %v762, %v1042
        %v1121 = vadd.f32 %v763, %v1047
        %v1122 = vadd.f32 %v764, %v1052
        %v1123 = vadd.f32 %v765, %v1057
        %v1124 = vadd.f32 %v766, %v1062
        %v1125 = vadd.f32 %v767, %v1067
        %v1126 = vadd.f32 %v768, %v1072
        %v1127 = vadd.f32 %v769, %v1077
        %v1128 = vadd.f32 %v770, %v1082
        %v1129 = vadd.f32 %v771, %v1087
        %v1130 = vadd.f32 %v772, %v1092
        %v1131 = vadd.f32 %v773, %v1097
        %1132 = vst [vmem:[#allocation2] sm:$0xff] %v1100
        %1133 = vst [vmem:[#allocation2 + $0x8] sm:$0xff] %v1101
        %1134 = vst [vmem:[#allocation2 + $0x10] sm:$0xff] %v1102
        %1135 = vst [vmem:[#allocation2 + $0x18] sm:$0xff] %v1103
        %1136 = vst [vmem:[#allocation2 + $0x20] sm:$0xff] %v1104
        %1137 = vst [vmem:[#allocation2 + $0x28] sm:$0xff] %v1105
        %1138 = vst [vmem:[#allocation2 + $0x30] sm:$0xff] %v1106
        %1139 = vst [vmem:[#allocation2 + $0x38] sm:$0xff] %v1107
        %1140 = vst [vmem:[#allocation2 + $0x40] sm:$0xff] %v1108
        %1141 = vst [vmem:[#allocation2 + $0x48] sm:$0xff] %v1109
        %1142 = vst [vmem:[#allocation2 + $0x50] sm:$0xff] %v1110
        %1143 = vst [vmem:[#allocation2 + $0x58] sm:$0xff] %v1111
        %1144 = vst [vmem:[#allocation2 + $0x60] sm:$0xff] %v1112
        %1145 = vst [vmem:[#allocation2 + $0x68] sm:$0xff] %v1113
        %1146 = vst [vmem:[#allocation2 + $0x70] sm:$0xff] %v1114
        %1147 = vst [vmem:[#allocation2 + $0x78] sm:$0xff] %v1115
        %1148 = vst [vmem:[#allocation2 + $0x80] sm:$0xff] %v1116
        %1149 = vst [vmem:[#allocation2 + $0x88] sm:$0xff] %v1117
        %1150 = vst [vmem:[#allocation2 + $0x90] sm:$0xff] %v1118
        %1151 = vst [vmem:[#allocation2 + $0x98] sm:$0xff] %v1119
        %1152 = vst [vmem:[#allocation2 + $0xa0] sm:$0xff] %v1120
        %1153 = vst [vmem:[#allocation2 + $0xa8] sm:$0xff] %v1121
        %1154 = vst [vmem:[#allocation2 + $0xb0] sm:$0xff] %v1122
        %1155 = vst [vmem:[#allocation2 + $0xb8] sm:$0xff] %v1123
        %1156 = vst [vmem:[#allocation2 + $0xc0] sm:$0xff] %v1124
        %1157 = vst [vmem:[#allocation2 + $0xc8] sm:$0xff] %v1125
        %1158 = vst [vmem:[#allocation2 + $0xd0] sm:$0xff] %v1126
        %1159 = vst [vmem:[#allocation2 + $0xd8] sm:$0xff] %v1127
        %1160 = vst [vmem:[#allocation2 + $0xe0] sm:$0xff] %v1128
        %1161 = vst [vmem:[#allocation2 + $0xe8] sm:$0xff] %v1129
        %1162 = vst [vmem:[#allocation2 + $0xf0] sm:$0xff] %v1130
        %1163 = vst [vmem:[#allocation2 + $0xf8] sm:$0xff] %v1131
        %v1164 = vld [vmem:[%s222 + $0x2] sm:$0xff]
        %v1165 = vld [vmem:[%s222 + $0xa] sm:$0xff]
        %v1166 = vld [vmem:[%s222 + $0x1a] sm:$0xff]
        %v1167 = vld [vmem:[%s222 + $0x22] sm:$0xff]
        %v1168 = vld [vmem:[%s222 + $0x32] sm:$0xff]
        %v1169 = vld [vmem:[%s222 + $0x3a] sm:$0xff]
        %v1170 = vld [vmem:[%s222 + $0x4a] sm:$0xff]
        %v1171 = vld [vmem:[%s222 + $0x52] sm:$0xff]
        %v1172 = vld [vmem:[%s222 + $0x62] sm:$0xff]
        %v1173 = vld [vmem:[%s222 + $0x6a] sm:$0xff]
        %v1174 = vld [vmem:[%s222 + $0x7a] sm:$0xff]
        %v1175 = vld [vmem:[%s222 + $0x82] sm:$0xff]
        %v1176 = vld [vmem:[%s222 + $0x92] sm:$0xff]
        %v1177 = vld [vmem:[%s222 + $0x9a] sm:$0xff]
        %v1178 = vld [vmem:[%s222 + $0xaa] sm:$0xff]
        %v1179 = vld [vmem:[%s222 + $0xb2] sm:$0xff]
        %v1180 = vld [vmem:[%s222 + $0xc2] sm:$0xff]
        %v1181 = vld [vmem:[%s222 + $0xca] sm:$0xff]
        %v1182 = vld [vmem:[%s222 + $0xda] sm:$0xff]
        %v1183 = vld [vmem:[%s222 + $0xe2] sm:$0xff]
        %v1184 = vld [vmem:[%s222 + $0xf2] sm:$0xff]
        %v1185 = vld [vmem:[%s222 + $0xfa] sm:$0xff]
        %v1186 = vld [vmem:[%s222 + $0x10a] sm:$0xff]
        %v1187 = vld [vmem:[%s222 + $0x112] sm:$0xff]
        %v1188 = vld [vmem:[%s222 + $0x122] sm:$0xff]
        %v1189 = vld [vmem:[%s222 + $0x12a] sm:$0xff]
        %v1190 = vld [vmem:[%s222 + $0x13a] sm:$0xff]
        %v1191 = vld [vmem:[%s222 + $0x142] sm:$0xff]
        %v1192 = vld [vmem:[%s222 + $0x152] sm:$0xff]
        %v1193 = vld [vmem:[%s222 + $0x15a] sm:$0xff]
        %v1194 = vld [vmem:[%s222 + $0x16a] sm:$0xff]
        %v1195 = vld [vmem:[%s222 + $0x172] sm:$0xff]
        %v1196 = vld [vmem:[#allocation2] sm:$0xff]
        %v1197 = vld [vmem:[#allocation2 + $0x8] sm:$0xff]
        %v1198 = vld [vmem:[#allocation2 + $0x10] sm:$0xff]
        %v1199 = vld [vmem:[#allocation2 + $0x18] sm:$0xff]
        %v1200 = vld [vmem:[#allocation2 + $0x20] sm:$0xff]
        %v1201 = vld [vmem:[#allocation2 + $0x28] sm:$0xff]
        %v1202 = vld [vmem:[#allocation2 + $0x30] sm:$0xff]
        %v1203 = vld [vmem:[#allocation2 + $0x38] sm:$0xff]
        %v1204 = vld [vmem:[#allocation2 + $0x40] sm:$0xff]
        %v1205 = vld [vmem:[#allocation2 + $0x48] sm:$0xff]
        %v1206 = vld [vmem:[#allocation2 + $0x50] sm:$0xff]
        %v1207 = vld [vmem:[#allocation2 + $0x58] sm:$0xff]
        %v1208 = vld [vmem:[#allocation2 + $0x60] sm:$0xff]
        %v1209 = vld [vmem:[#allocation2 + $0x68] sm:$0xff]
        %v1210 = vld [vmem:[#allocation2 + $0x70] sm:$0xff]
        %v1211 = vld [vmem:[#allocation2 + $0x78] sm:$0xff]
        %v1212 = vld [vmem:[#allocation2 + $0x80] sm:$0xff]
        %v1213 = vld [vmem:[#allocation2 + $0x88] sm:$0xff]
        %v1214 = vld [vmem:[#allocation2 + $0x90] sm:$0xff]
        %v1215 = vld [vmem:[#allocation2 + $0x98] sm:$0xff]
        %v1216 = vld [vmem:[#allocation2 + $0xa0] sm:$0xff]
        %v1217 = vld [vmem:[#allocation2 + $0xa8] sm:$0xff]
        %v1218 = vld [vmem:[#allocation2 + $0xb0] sm:$0xff]
        %v1219 = vld [vmem:[#allocation2 + $0xb8] sm:$0xff]
        %v1220 = vld [vmem:[#allocation2 + $0xc0] sm:$0xff]
        %v1221 = vld [vmem:[#allocation2 + $0xc8] sm:$0xff]
        %v1222 = vld [vmem:[#allocation2 + $0xd0] sm:$0xff]
        %v1223 = vld [vmem:[#allocation2 + $0xd8] sm:$0xff]
        %v1224 = vld [vmem:[#allocation2 + $0xe0] sm:$0xff]
        %v1225 = vld [vmem:[#allocation2 + $0xe8] sm:$0xff]
        %v1226 = vld [vmem:[#allocation2 + $0xf0] sm:$0xff]
        %v1227 = vld [vmem:[#allocation2 + $0xf8] sm:$0xff]
        %s1228 = scalar_lea.vmem %s1, 8
        %v1229 = vld [vmem:[%s1228] sm:$0xf]
        %v1231 = vsel %vm320, %v1164, 0
        %v1234 = vsel %vm320, %v1165, 0
        %v1237 = vsel %vm320, %v1166, 0
        %v1240 = vsel %vm320, %v1167, 0
        %v1243 = vsel %vm320, %v1168, 0
        %v1246 = vsel %vm320, %v1169, 0
        %v1249 = vsel %vm320, %v1170, 0
        %v1252 = vsel %vm320, %v1171, 0
        %v1255 = vsel %vm320, %v1172, 0
        %v1258 = vsel %vm320, %v1173, 0
        %v1261 = vsel %vm320, %v1174, 0
        %v1264 = vsel %vm320, %v1175, 0
        %v1267 = vsel %vm320, %v1176, 0
        %v1270 = vsel %vm320, %v1177, 0
        %v1273 = vsel %vm320, %v1178, 0
        %v1276 = vsel %vm320, %v1179, 0
        %v1279 = vsel %vm320, %v1180, 0
        %v1282 = vsel %vm320, %v1181, 0
        %v1285 = vsel %vm320, %v1182, 0
        %v1288 = vsel %vm320, %v1183, 0
        %v1291 = vsel %vm320, %v1184, 0
        %v1294 = vsel %vm320, %v1185, 0
        %v1297 = vsel %vm320, %v1186, 0
        %v1300 = vsel %vm320, %v1187, 0
        %v1303 = vsel %vm320, %v1188, 0
        %v1306 = vsel %vm320, %v1189, 0
        %v1309 = vsel %vm320, %v1190, 0
        %v1312 = vsel %vm320, %v1191, 0
        %v1315 = vsel %vm320, %v1192, 0
        %v1318 = vsel %vm320, %v1193, 0
        %v1321 = vsel %vm320, %v1194, 0
        %v1324 = vsel %vm320, %v1195, 0
        %v1327 = vsel %vm417, %v1229, 0
        %1329 = vmatprep.subr.mxu0 0.0
        %1330 = vmatpush1.msra.mxu0 %v1327
        %1331 = vmatprep.subr.mxu0 0.0
        %1332 = vmatpush1.msra.mxu0 0.0
        %1333 = vmatprep.subr.mxu0 0.0
        %1334 = vmatpush1.msra.mxu0 0.0
        %1335 = vmatprep.subr.mxu0 0.0
        %1336 = vmatpush1.msra.mxu0 0.0
        %1337 = vmatprep.subr.mxu0 0.0
        %1338 = vmatpush1.msra.mxu0 0.0
        %1339 = vmatprep.subr.mxu0 0.0
        %1340 = vmatpush1.msra.mxu0 0.0
        %1341 = vmatprep.subr.mxu0 0.0
        %1342 = vmatpush1.msra.mxu0 0.0
        %1343 = vmatprep.subr.mxu0 0.0
        %1344 = vmatpush1.msra.mxu0 0.0
        %1345 = vmatprep.subr.mxu0 0.0
        %1346 = vmatpush1.msra.mxu0 0.0
        %1347 = vmatprep.subr.mxu0 0.0
        %1348 = vmatpush1.msra.mxu0 0.0
        %1349 = vmatprep.subr.mxu0 0.0
        %1350 = vmatpush1.msra.mxu0 0.0
        %1351 = vmatprep.subr.mxu0 0.0
        %1352 = vmatpush1.msra.mxu0 0.0
        %1353 = vmatprep.subr.mxu0 0.0
        %1354 = vmatpush1.msra.mxu0 0.0
        %1355 = vmatprep.subr.mxu0 0.0
        %1356 = vmatpush1.msra.mxu0 0.0
        %1357 = vmatprep.subr.mxu0 0.0
        %1358 = vmatpush1.msra.mxu0 0.0
        %1359 = vmatprep.subr.mxu0 0.0
        %1360 = vmatpush1.msra.mxu0 0.0
        %1361 = vmatprep.subr.mxu0 0.0
        %1362 = vmatpush1.msra.mxu0 0.0
        %1363 = vmatprep.subr.mxu0 0.0
        %1364 = vmatpush1.msra.mxu0 0.0
        %1365 = vmatprep.subr.mxu0 0.0
        %1366 = vmatpush1.msra.mxu0 0.0
        %1367 = vmatprep.subr.mxu0 0.0
        %1368 = vmatpush1.msra.mxu0 0.0
        %1369 = vmatprep.subr.mxu0 0.0
        %1370 = vmatpush1.msra.mxu0 0.0
        %1371 = vmatprep.subr.mxu0 0.0
        %1372 = vmatpush1.msra.mxu0 0.0
        %1373 = vmatprep.subr.mxu0 0.0
        %1374 = vmatpush1.msra.mxu0 0.0
        %1375 = vmatprep.subr.mxu0 0.0
        %1376 = vmatpush1.msra.mxu0 0.0
        %1377 = vmatprep.subr.mxu0 0.0
        %1378 = vmatpush1.msra.mxu0 0.0
        %1379 = vmatprep.subr.mxu0 0.0
        %1380 = vmatpush1.msra.mxu0 0.0
        %1381 = vmatprep.subr.mxu0 0.0
        %1382 = vmatpush1.msra.mxu0 0.0
        %1383 = vmatprep.subr.mxu0 0.0
        %1384 = vmatpush1.msra.mxu0 0.0
        %1385 = vmatprep.subr.mxu0 0.0
        %1386 = vmatpush1.msra.mxu0 0.0
        %1387 = vmatprep.subr.mxu0 0.0
        %1388 = vmatpush1.msra.mxu0 0.0
        %1389 = vmatprep.subr.mxu0 0.0
        %1390 = vmatpush1.msra.mxu0 0.0
        %1391 = vmatprep.subr.mxu0 0.0
        %1392 = vmatpush1.msra.mxu0 0.0
        %1393 = vmatprep.mubr.f32.mxu0 0.0
        %1394 = vmatmul.mubr.f32.gmra.mrb[0].mxu0 %v1231
        %v1395 = vpop.f32.mrb[0].mxu0
        %v1396 = vadd.f32 0.0, %v1395
        %v1397 = vpop.f32.mrb[0].mxu0
        %1398 = vmatprep.mubr.f32.mxu0 0.0
        %1399 = vmatmul.mubr.f32.gmra.mrb[0].mxu0 %v1234
        %v1400 = vpop.f32.mrb[0].mxu0
        %v1401 = vadd.f32 0.0, %v1400
        %v1402 = vpop.f32.mrb[0].mxu0
        %1403 = vmatprep.mubr.f32.mxu0 0.0
        %1404 = vmatmul.mubr.f32.gmra.mrb[0].mxu0 %v1237
        %v1405 = vpop.f32.mrb[0].mxu0
        %v1406 = vadd.f32 0.0, %v1405
        %v1407 = vpop.f32.mrb[0].mxu0
        %1408 = vmatprep.mubr.f32.mxu0 0.0
        %1409 = vmatmul.mubr.f32.gmra.mrb[0].mxu0 %v1240
        %v1410 = vpop.f32.mrb[0].mxu0
        %v1411 = vadd.f32 0.0, %v1410
        %v1412 = vpop.f32.mrb[0].mxu0
        %1413 = vmatprep.mubr.f32.mxu0 0.0
        %1414 = vmatmul.mubr.f32.gmra.mrb[0].mxu0 %v1243
        %v1415 = vpop.f32.mrb[0].mxu0
        %v1416 = vadd.f32 0.0, %v1415
        %v1417 = vpop.f32.mrb[0].mxu0
        %1418 = vmatprep.mubr.f32.mxu0 0.0
        %1419 = vmatmul.mubr.f32.gmra.mrb[0].mxu0 %v1246
        %v1420 = vpop.f32.mrb[0].mxu0
        %v1421 = vadd.f32 0.0, %v1420
        %v1422 = vpop.f32.mrb[0].mxu0
        %1423 = vmatprep.mubr.f32.mxu0 0.0
        %1424 = vmatmul.mubr.f32.gmra.mrb[0].mxu0 %v1249
        %v1425 = vpop.f32.mrb[0].mxu0
        %v1426 = vadd.f32 0.0, %v1425
        %v1427 = vpop.f32.mrb[0].mxu0
        %1428 = vmatprep.mubr.f32.mxu0 0.0
        %1429 = vmatmul.mubr.f32.gmra.mrb[0].mxu0 %v1252
        %v1430 = vpop.f32.mrb[0].mxu0
        %v1431 = vadd.f32 0.0, %v1430
        %v1432 = vpop.f32.mrb[0].mxu0
        %1433 = vmatprep.mubr.f32.mxu0 0.0
        %1434 = vmatmul.mubr.f32.gmra.mrb[0].mxu0 %v1255
        %v1435 = vpop.f32.mrb[0].mxu0
        %v1436 = vadd.f32 0.0, %v1435
        %v1437 = vpop.f32.mrb[0].mxu0
        %1438 = vmatprep.mubr.f32.mxu0 0.0
        %1439 = vmatmul.mubr.f32.gmra.mrb[0].mxu0 %v1258
        %v1440 = vpop.f32.mrb[0].mxu0
        %v1441 = vadd.f32 0.0, %v1440
        %v1442 = vpop.f32.mrb[0].mxu0
        %1443 = vmatprep.mubr.f32.mxu0 0.0
        %1444 = vmatmul.mubr.f32.gmra.mrb[0].mxu0 %v1261
        %v1445 = vpop.f32.mrb[0].mxu0
        %v1446 = vadd.f32 0.0, %v1445
        %v1447 = vpop.f32.mrb[0].mxu0
        %1448 = vmatprep.mubr.f32.mxu0 0.0
        %1449 = vmatmul.mubr.f32.gmra.mrb[0].mxu0 %v1264
        %v1450 = vpop.f32.mrb[0].mxu0
        %v1451 = vadd.f32 0.0, %v1450
        %v1452 = vpop.f32.mrb[0].mxu0
        %1453 = vmatprep.mubr.f32.mxu0 0.0
        %1454 = vmatmul.mubr.f32.gmra.mrb[0].mxu0 %v1267
        %v1455 = vpop.f32.mrb[0].mxu0
        %v1456 = vadd.f32 0.0, %v1455
        %v1457 = vpop.f32.mrb[0].mxu0
        %1458 = vmatprep.mubr.f32.mxu0 0.0
        %1459 = vmatmul.mubr.f32.gmra.mrb[0].mxu0 %v1270
        %v1460 = vpop.f32.mrb[0].mxu0
        %v1461 = vadd.f32 0.0, %v1460
        %v1462 = vpop.f32.mrb[0].mxu0
        %1463 = vmatprep.mubr.f32.mxu0 0.0
        %1464 = vmatmul.mubr.f32.gmra.mrb[0].mxu0 %v1273
        %v1465 = vpop.f32.mrb[0].mxu0
        %v1466 = vadd.f32 0.0, %v1465
        %v1467 = vpop.f32.mrb[0].mxu0
        %1468 = vmatprep.mubr.f32.mxu0 0.0
        %1469 = vmatmul.mubr.f32.gmra.mrb[0].mxu0 %v1276
        %v1470 = vpop.f32.mrb[0].mxu0
        %v1471 = vadd.f32 0.0, %v1470
        %v1472 = vpop.f32.mrb[0].mxu0
        %1473 = vmatprep.mubr.f32.mxu0 0.0
        %1474 = vmatmul.mubr.f32.gmra.mrb[0].mxu0 %v1279
        %v1475 = vpop.f32.mrb[0].mxu0
        %v1476 = vadd.f32 0.0, %v1475
        %v1477 = vpop.f32.mrb[0].mxu0
        %1478 = vmatprep.mubr.f32.mxu0 0.0
        %1479 = vmatmul.mubr.f32.gmra.mrb[0].mxu0 %v1282
        %v1480 = vpop.f32.mrb[0].mxu0
        %v1481 = vadd.f32 0.0, %v1480
        %v1482 = vpop.f32.mrb[0].mxu0
        %1483 = vmatprep.mubr.f32.mxu0 0.0
        %1484 = vmatmul.mubr.f32.gmra.mrb[0].mxu0 %v1285
        %v1485 = vpop.f32.mrb[0].mxu0
        %v1486 = vadd.f32 0.0, %v1485
        %v1487 = vpop.f32.mrb[0].mxu0
        %1488 = vmatprep.mubr.f32.mxu0 0.0
        %1489 = vmatmul.mubr.f32.gmra.mrb[0].mxu0 %v1288
        %v1490 = vpop.f32.mrb[0].mxu0
        %v1491 = vadd.f32 0.0, %v1490
        %v1492 = vpop.f32.mrb[0].mxu0
        %1493 = vmatprep.mubr.f32.mxu0 0.0
        %1494 = vmatmul.mubr.f32.gmra.mrb[0].mxu0 %v1291
        %v1495 = vpop.f32.mrb[0].mxu0
        %v1496 = vadd.f32 0.0, %v1495
        %v1497 = vpop.f32.mrb[0].mxu0
        %1498 = vmatprep.mubr.f32.mxu0 0.0
        %1499 = vmatmul.mubr.f32.gmra.mrb[0].mxu0 %v1294
        %v1500 = vpop.f32.mrb[0].mxu0
        %v1501 = vadd.f32 0.0, %v1500
        %v1502 = vpop.f32.mrb[0].mxu0
        %1503 = vmatprep.mubr.f32.mxu0 0.0
        %1504 = vmatmul.mubr.f32.gmra.mrb[0].mxu0 %v1297
        %v1505 = vpop.f32.mrb[0].mxu0
        %v1506 = vadd.f32 0.0, %v1505
        %v1507 = vpop.f32.mrb[0].mxu0
        %1508 = vmatprep.mubr.f32.mxu0 0.0
        %1509 = vmatmul.mubr.f32.gmra.mrb[0].mxu0 %v1300
        %v1510 = vpop.f32.mrb[0].mxu0
        %v1511 = vadd.f32 0.0, %v1510
        %v1512 = vpop.f32.mrb[0].mxu0
        %1513 = vmatprep.mubr.f32.mxu0 0.0
        %1514 = vmatmul.mubr.f32.gmra.mrb[0].mxu0 %v1303
        %v1515 = vpop.f32.mrb[0].mxu0
        %v1516 = vadd.f32 0.0, %v1515
        %v1517 = vpop.f32.mrb[0].mxu0
        %1518 = vmatprep.mubr.f32.mxu0 0.0
        %1519 = vmatmul.mubr.f32.gmra.mrb[0].mxu0 %v1306
        %v1520 = vpop.f32.mrb[0].mxu0
        %v1521 = vadd.f32 0.0, %v1520
        %v1522 = vpop.f32.mrb[0].mxu0
        %1523 = vmatprep.mubr.f32.mxu0 0.0
        %1524 = vmatmul.mubr.f32.gmra.mrb[0].mxu0 %v1309
        %v1525 = vpop.f32.mrb[0].mxu0
        %v1526 = vadd.f32 0.0, %v1525
        %v1527 = vpop.f32.mrb[0].mxu0
        %1528 = vmatprep.mubr.f32.mxu0 0.0
        %1529 = vmatmul.mubr.f32.gmra.mrb[0].mxu0 %v1312
        %v1530 = vpop.f32.mrb[0].mxu0
        %v1531 = vadd.f32 0.0, %v1530
        %v1532 = vpop.f32.mrb[0].mxu0
        %1533 = vmatprep.mubr.f32.mxu0 0.0
        %1534 = vmatmul.mubr.f32.gmra.mrb[0].mxu0 %v1315
        %v1535 = vpop.f32.mrb[0].mxu0
        %v1536 = vadd.f32 0.0, %v1535
        %v1537 = vpop.f32.mrb[0].mxu0
        %1538 = vmatprep.mubr.f32.mxu0 0.0
        %1539 = vmatmul.mubr.f32.gmra.mrb[0].mxu0 %v1318
        %v1540 = vpop.f32.mrb[0].mxu0
        %v1541 = vadd.f32 0.0, %v1540
        %v1542 = vpop.f32.mrb[0].mxu0
        %1543 = vmatprep.mubr.f32.mxu0 0.0
        %1544 = vmatmul.mubr.f32.gmra.mrb[0].mxu0 %v1321
        %v1545 = vpop.f32.mrb[0].mxu0
        %v1546 = vadd.f32 0.0, %v1545
        %v1547 = vpop.f32.mrb[0].mxu0
        %1548 = vmatprep.mubr.f32.mxu0 0.0
        %1549 = vmatmul.mubr.f32.gmra.mrb[0].mxu0 %v1324
        %v1550 = vpop.f32.mrb[0].mxu0
        %v1551 = vadd.f32 0.0, %v1550
        %v1552 = vpop.f32.mrb[0].mxu0
        %1553 = vdwg.mxu0
        %v1554 = vadd.f32 %v1196, %v1396
        %v1555 = vadd.f32 %v1197, %v1401
        %v1556 = vadd.f32 %v1198, %v1406
        %v1557 = vadd.f32 %v1199, %v1411
        %v1558 = vadd.f32 %v1200, %v1416
        %v1559 = vadd.f32 %v1201, %v1421
        %v1560 = vadd.f32 %v1202, %v1426
        %v1561 = vadd.f32 %v1203, %v1431
        %v1562 = vadd.f32 %v1204, %v1436
        %v1563 = vadd.f32 %v1205, %v1441
        %v1564 = vadd.f32 %v1206, %v1446
        %v1565 = vadd.f32 %v1207, %v1451
        %v1566 = vadd.f32 %v1208, %v1456
        %v1567 = vadd.f32 %v1209, %v1461
        %v1568 = vadd.f32 %v1210, %v1466
        %v1569 = vadd.f32 %v1211, %v1471
        %v1570 = vadd.f32 %v1212, %v1476
        %v1571 = vadd.f32 %v1213, %v1481
        %v1572 = vadd.f32 %v1214, %v1486
        %v1573 = vadd.f32 %v1215, %v1491
        %v1574 = vadd.f32 %v1216, %v1496
        %v1575 = vadd.f32 %v1217, %v1501
        %v1576 = vadd.f32 %v1218, %v1506
        %v1577 = vadd.f32 %v1219, %v1511
        %v1578 = vadd.f32 %v1220, %v1516
        %v1579 = vadd.f32 %v1221, %v1521
        %v1580 = vadd.f32 %v1222, %v1526
        %v1581 = vadd.f32 %v1223, %v1531
        %v1582 = vadd.f32 %v1224, %v1536
        %v1583 = vadd.f32 %v1225, %v1541
        %v1584 = vadd.f32 %v1226, %v1546
        %v1585 = vadd.f32 %v1227, %v1551
        %1586 = vst [vmem:[#allocation2] sm:$0xff] %v1554
        %1587 = vst [vmem:[#allocation2 + $0x8] sm:$0xff] %v1555
        %1588 = vst [vmem:[#allocation2 + $0x10] sm:$0xff] %v1556
        %1589 = vst [vmem:[#allocation2 + $0x18] sm:$0xff] %v1557
        %1590 = vst [vmem:[#allocation2 + $0x20] sm:$0xff] %v1558
        %1591 = vst [vmem:[#allocation2 + $0x28] sm:$0xff] %v1559
        %1592 = vst [vmem:[#allocation2 + $0x30] sm:$0xff] %v1560
        %1593 = vst [vmem:[#allocation2 + $0x38] sm:$0xff] %v1561
        %1594 = vst [vmem:[#allocation2 + $0x40] sm:$0xff] %v1562
        %1595 = vst [vmem:[#allocation2 + $0x48] sm:$0xff] %v1563
        %1596 = vst [vmem:[#allocation2 + $0x50] sm:$0xff] %v1564
        %1597 = vst [vmem:[#allocation2 + $0x58] sm:$0xff] %v1565
        %1598 = vst [vmem:[#allocation2 + $0x60] sm:$0xff] %v1566
        %1599 = vst [vmem:[#allocation2 + $0x68] sm:$0xff] %v1567
        %1600 = vst [vmem:[#allocation2 + $0x70] sm:$0xff] %v1568
        %1601 = vst [vmem:[#allocation2 + $0x78] sm:$0xff] %v1569
        %1602 = vst [vmem:[#allocation2 + $0x80] sm:$0xff] %v1570
        %1603 = vst [vmem:[#allocation2 + $0x88] sm:$0xff] %v1571
        %1604 = vst [vmem:[#allocation2 + $0x90] sm:$0xff] %v1572
        %1605 = vst [vmem:[#allocation2 + $0x98] sm:$0xff] %v1573
        %1606 = vst [vmem:[#allocation2 + $0xa0] sm:$0xff] %v1574
        %1607 = vst [vmem:[#allocation2 + $0xa8] sm:$0xff] %v1575
        %1608 = vst [vmem:[#allocation2 + $0xb0] sm:$0xff] %v1576
        %1609 = vst [vmem:[#allocation2 + $0xb8] sm:$0xff] %v1577
        %1610 = vst [vmem:[#allocation2 + $0xc0] sm:$0xff] %v1578
        %1611 = vst [vmem:[#allocation2 + $0xc8] sm:$0xff] %v1579
        %1612 = vst [vmem:[#allocation2 + $0xd0] sm:$0xff] %v1580
        %1613 = vst [vmem:[#allocation2 + $0xd8] sm:$0xff] %v1581
        %1614 = vst [vmem:[#allocation2 + $0xe0] sm:$0xff] %v1582
        %1615 = vst [vmem:[#allocation2 + $0xe8] sm:$0xff] %v1583
        %1616 = vst [vmem:[#allocation2 + $0xf0] sm:$0xff] %v1584
        %1617 = vst [vmem:[#allocation2 + $0xf8] sm:$0xff] %v1585
        %s1618 = scalar_lea.vmem %s222, 24
        %v1619 = vld [vmem:[%s1618] sm:$0xff]
        %v1620 = vld [vmem:[%s1618 + $0x8] sm:$0xff]
        %v1621 = vld [vmem:[%s1618 + $0x18] sm:$0xff]
        %v1622 = vld [vmem:[%s1618 + $0x20] sm:$0xff]
        %v1623 = vld [vmem:[%s1618 + $0x30] sm:$0xff]
        %v1624 = vld [vmem:[%s1618 + $0x38] sm:$0xff]
        %v1625 = vld [vmem:[%s1618 + $0x48] sm:$0xff]
        %v1626 = vld [vmem:[%s1618 + $0x50] sm:$0xff]
        %v1627 = vld [vmem:[%s1618 + $0x60] sm:$0xff]
        %v1628 = vld [vmem:[%s1618 + $0x68] sm:$0xff]
        %v1629 = vld [vmem:[%s1618 + $0x78] sm:$0xff]
        %v1630 = vld [vmem:[%s1618 + $0x80] sm:$0xff]
        %v1631 = vld [vmem:[%s1618 + $0x90] sm:$0xff]
        %v1632 = vld [vmem:[%s1618 + $0x98] sm:$0xff]
        %v1633 = vld [vmem:[%s1618 + $0xa8] sm:$0xff]
        %v1634 = vld [vmem:[%s1618 + $0xb0] sm:$0xff]
        %v1635 = vld [vmem:[%s1618 + $0xc0] sm:$0xff]
        %v1636 = vld [vmem:[%s1618 + $0xc8] sm:$0xff]
        %v1637 = vld [vmem:[%s1618 + $0xd8] sm:$0xff]
        %v1638 = vld [vmem:[%s1618 + $0xe0] sm:$0xff]
        %v1639 = vld [vmem:[%s1618 + $0xf0] sm:$0xff]
        %v1640 = vld [vmem:[%s1618 + $0xf8] sm:$0xff]
        %v1641 = vld [vmem:[%s1618 + $0x108] sm:$0xff]
        %v1642 = vld [vmem:[%s1618 + $0x110] sm:$0xff]
        %v1643 = vld [vmem:[%s1618 + $0x120] sm:$0xff]
        %v1644 = vld [vmem:[%s1618 + $0x128] sm:$0xff]
        %v1645 = vld [vmem:[%s1618 + $0x138] sm:$0xff]
        %v1646 = vld [vmem:[%s1618 + $0x140] sm:$0xff]
        %v1647 = vld [vmem:[%s1618 + $0x150] sm:$0xff]
        %v1648 = vld [vmem:[%s1618 + $0x158] sm:$0xff]
        %v1649 = vld [vmem:[%s1618 + $0x168] sm:$0xff]
        %v1650 = vld [vmem:[%s1618 + $0x170] sm:$0xff]
        %v1651 = vld [vmem:[#allocation2] sm:$0xff]
        %v1652 = vld [vmem:[#allocation2 + $0x8] sm:$0xff]
        %v1653 = vld [vmem:[#allocation2 + $0x10] sm:$0xff]
        %v1654 = vld [vmem:[#allocation2 + $0x18] sm:$0xff]
        %v1655 = vld [vmem:[#allocation2 + $0x20] sm:$0xff]
        %v1656 = vld [vmem:[#allocation2 + $0x28] sm:$0xff]
        %v1657 = vld [vmem:[#allocation2 + $0x30] sm:$0xff]
        %v1658 = vld [vmem:[#allocation2 + $0x38] sm:$0xff]
        %v1659 = vld [vmem:[#allocation2 + $0x40] sm:$0xff]
        %v1660 = vld [vmem:[#allocation2 + $0x48] sm:$0xff]
        %v1661 = vld [vmem:[#allocation2 + $0x50] sm:$0xff]
        %v1662 = vld [vmem:[#allocation2 + $0x58] sm:$0xff]
        %v1663 = vld [vmem:[#allocation2 + $0x60] sm:$0xff]
        %v1664 = vld [vmem:[#allocation2 + $0x68] sm:$0xff]
        %v1665 = vld [vmem:[#allocation2 + $0x70] sm:$0xff]
        %v1666 = vld [vmem:[#allocation2 + $0x78] sm:$0xff]
        %v1667 = vld [vmem:[#allocation2 + $0x80] sm:$0xff]
        %v1668 = vld [vmem:[#allocation2 + $0x88] sm:$0xff]
        %v1669 = vld [vmem:[#allocation2 + $0x90] sm:$0xff]
        %v1670 = vld [vmem:[#allocation2 + $0x98] sm:$0xff]
        %v1671 = vld [vmem:[#allocation2 + $0xa0] sm:$0xff]
        %v1672 = vld [vmem:[#allocation2 + $0xa8] sm:$0xff]
        %v1673 = vld [vmem:[#allocation2 + $0xb0] sm:$0xff]
        %v1674 = vld [vmem:[#allocation2 + $0xb8] sm:$0xff]
        %v1675 = vld [vmem:[#allocation2 + $0xc0] sm:$0xff]
        %v1676 = vld [vmem:[#allocation2 + $0xc8] sm:$0xff]
        %v1677 = vld [vmem:[#allocation2 + $0xd0] sm:$0xff]
        %v1678 = vld [vmem:[#allocation2 + $0xd8] sm:$0xff]
        %v1679 = vld [vmem:[#allocation2 + $0xe0] sm:$0xff]
        %v1680 = vld [vmem:[#allocation2 + $0xe8] sm:$0xff]
        %v1681 = vld [vmem:[#allocation2 + $0xf0] sm:$0xff]
        %v1682 = vld [vmem:[#allocation2 + $0xf8] sm:$0xff]
        %s1683 = scalar_lea.vmem %s1, 12
        %v1684 = vld [vmem:[%s1683] sm:$0xf]
        %v1686 = vsel %vm320, %v1619, 0
        %v1689 = vsel %vm320, %v1620, 0
        %v1692 = vsel %vm320, %v1621, 0
        %v1695 = vsel %vm320, %v1622, 0
        %v1698 = vsel %vm320, %v1623, 0
        %v1701 = vsel %vm320, %v1624, 0
        %v1704 = vsel %vm320, %v1625, 0
        %v1707 = vsel %vm320, %v1626, 0
        %v1710 = vsel %vm320, %v1627, 0
        %v1713 = vsel %vm320, %v1628, 0
        %v1716 = vsel %vm320, %v1629, 0
        %v1719 = vsel %vm320, %v1630, 0
        %v1722 = vsel %vm320, %v1631, 0
        %v1725 = vsel %vm320, %v1632, 0
        %v1728 = vsel %vm320, %v1633, 0
        %v1731 = vsel %vm320, %v1634, 0
        %v1734 = vsel %vm320, %v1635, 0
        %v1737 = vsel %vm320, %v1636, 0
        %v1740 = vsel %vm320, %v1637, 0
        %v1743 = vsel %vm320, %v1638, 0
        %v1746 = vsel %vm320, %v1639, 0
        %v1749 = vsel %vm320, %v1640, 0
        %v1752 = vsel %vm320, %v1641, 0
        %v1755 = vsel %vm320, %v1642, 0
        %v1758 = vsel %vm320, %v1643, 0
        %v1761 = vsel %vm320, %v1644, 0
        %v1764 = vsel %vm320, %v1645, 0
        %v1767 = vsel %vm320, %v1646, 0
        %v1770 = vsel %vm320, %v1647, 0
        %v1773 = vsel %vm320, %v1648, 0
        %v1776 = vsel %vm320, %v1649, 0
        %v1779 = vsel %vm320, %v1650, 0
        %v1782 = vsel %vm417, %v1684, 0
        %1784 = vmatprep.subr.mxu0 0.0
        %1785 = vmatpush1.msra.mxu0 %v1782
        %1786 = vmatprep.subr.mxu0 0.0
        %1787 = vmatpush1.msra.mxu0 0.0
        %1788 = vmatprep.subr.mxu0 0.0
        %1789 = vmatpush1.msra.mxu0 0.0
        %1790 = vmatprep.subr.mxu0 0.0
        %1791 = vmatpush1.msra.mxu0 0.0
        %1792 = vmatprep.subr.mxu0 0.0
        %1793 = vmatpush1.msra.mxu0 0.0
        %1794 = vmatprep.subr.mxu0 0.0
        %1795 = vmatpush1.msra.mxu0 0.0
        %1796 = vmatprep.subr.mxu0 0.0
        %1797 = vmatpush1.msra.mxu0 0.0
        %1798 = vmatprep.subr.mxu0 0.0
        %1799 = vmatpush1.msra.mxu0 0.0
        %1800 = vmatprep.subr.mxu0 0.0
        %1801 = vmatpush1.msra.mxu0 0.0
        %1802 = vmatprep.subr.mxu0 0.0
        %1803 = vmatpush1.msra.mxu0 0.0
        %1804 = vmatprep.subr.mxu0 0.0
        %1805 = vmatpush1.msra.mxu0 0.0
        %1806 = vmatprep.subr.mxu0 0.0
        %1807 = vmatpush1.msra.mxu0 0.0
        %1808 = vmatprep.subr.mxu0 0.0
        %1809 = vmatpush1.msra.mxu0 0.0
        %1810 = vmatprep.subr.mxu0 0.0
        %1811 = vmatpush1.msra.mxu0 0.0
        %1812 = vmatprep.subr.mxu0 0.0
        %1813 = vmatpush1.msra.mxu0 0.0
        %1814 = vmatprep.subr.mxu0 0.0
        %1815 = vmatpush1.msra.mxu0 0.0
        %1816 = vmatprep.subr.mxu0 0.0
        %1817 = vmatpush1.msra.mxu0 0.0
        %1818 = vmatprep.subr.mxu0 0.0
        %1819 = vmatpush1.msra.mxu0 0.0
        %1820 = vmatprep.subr.mxu0 0.0
        %1821 = vmatpush1.msra.mxu0 0.0
        %1822 = vmatprep.subr.mxu0 0.0
        %1823 = vmatpush1.msra.mxu0 0.0
        %1824 = vmatprep.subr.mxu0 0.0
        %1825 = vmatpush1.msra.mxu0 0.0
        %1826 = vmatprep.subr.mxu0 0.0
        %1827 = vmatpush1.msra.mxu0 0.0
        %1828 = vmatprep.subr.mxu0 0.0
        %1829 = vmatpush1.msra.mxu0 0.0
        %1830 = vmatprep.subr.mxu0 0.0
        %1831 = vmatpush1.msra.mxu0 0.0
        %1832 = vmatprep.subr.mxu0 0.0
        %1833 = vmatpush1.msra.mxu0 0.0
        %1834 = vmatprep.subr.mxu0 0.0
        %1835 = vmatpush1.msra.mxu0 0.0
        %1836 = vmatprep.subr.mxu0 0.0
        %1837 = vmatpush1.msra.mxu0 0.0
        %1838 = vmatprep.subr.mxu0 0.0
        %1839 = vmatpush1.msra.mxu0 0.0
        %1840 = vmatprep.subr.mxu0 0.0
        %1841 = vmatpush1.msra.mxu0 0.0
        %1842 = vmatprep.subr.mxu0 0.0
        %1843 = vmatpush1.msra.mxu0 0.0
        %1844 = vmatprep.subr.mxu0 0.0
        %1845 = vmatpush1.msra.mxu0 0.0
        %1846 = vmatprep.subr.mxu0 0.0
        %1847 = vmatpush1.msra.mxu0 0.0
        %1848 = vmatprep.mubr.f32.mxu0 0.0
        %1849 = vmatmul.mubr.f32.gmra.mrb[0].mxu0 %v1686
        %v1850 = vpop.f32.mrb[0].mxu0
        %v1851 = vadd.f32 0.0, %v1850
        %v1852 = vpop.f32.mrb[0].mxu0
        %1853 = vmatprep.mubr.f32.mxu0 0.0
        %1854 = vmatmul.mubr.f32.gmra.mrb[0].mxu0 %v1689
        %v1855 = vpop.f32.mrb[0].mxu0
        %v1856 = vadd.f32 0.0, %v1855
        %v1857 = vpop.f32.mrb[0].mxu0
        %1858 = vmatprep.mubr.f32.mxu0 0.0
        %1859 = vmatmul.mubr.f32.gmra.mrb[0].mxu0 %v1692
        %v1860 = vpop.f32.mrb[0].mxu0
        %v1861 = vadd.f32 0.0, %v1860
        %v1862 = vpop.f32.mrb[0].mxu0
        %1863 = vmatprep.mubr.f32.mxu0 0.0
        %1864 = vmatmul.mubr.f32.gmra.mrb[0].mxu0 %v1695
        %v1865 = vpop.f32.mrb[0].mxu0
        %v1866 = vadd.f32 0.0, %v1865
        %v1867 = vpop.f32.mrb[0].mxu0
        %1868 = vmatprep.mubr.f32.mxu0 0.0
        %1869 = vmatmul.mubr.f32.gmra.mrb[0].mxu0 %v1698
        %v1870 = vpop.f32.mrb[0].mxu0
        %v1871 = vadd.f32 0.0, %v1870
        %v1872 = vpop.f32.mrb[0].mxu0
        %1873 = vmatprep.mubr.f32.mxu0 0.0
        %1874 = vmatmul.mubr.f32.gmra.mrb[0].mxu0 %v1701
        %v1875 = vpop.f32.mrb[0].mxu0
        %v1876 = vadd.f32 0.0, %v1875
        %v1877 = vpop.f32.mrb[0].mxu0
        %1878 = vmatprep.mubr.f32.mxu0 0.0
        %1879 = vmatmul.mubr.f32.gmra.mrb[0].mxu0 %v1704
        %v1880 = vpop.f32.mrb[0].mxu0
        %v1881 = vadd.f32 0.0, %v1880
        %v1882 = vpop.f32.mrb[0].mxu0
        %1883 = vmatprep.mubr.f32.mxu0 0.0
        %1884 = vmatmul.mubr.f32.gmra.mrb[0].mxu0 %v1707
        %v1885 = vpop.f32.mrb[0].mxu0
        %v1886 = vadd.f32 0.0, %v1885
        %v1887 = vpop.f32.mrb[0].mxu0
        %1888 = vmatprep.mubr.f32.mxu0 0.0
        %1889 = vmatmul.mubr.f32.gmra.mrb[0].mxu0 %v1710
        %v1890 = vpop.f32.mrb[0].mxu0
        %v1891 = vadd.f32 0.0, %v1890
        %v1892 = vpop.f32.mrb[0].mxu0
        %1893 = vmatprep.mubr.f32.mxu0 0.0
        %1894 = vmatmul.mubr.f32.gmra.mrb[0].mxu0 %v1713
        %v1895 = vpop.f32.mrb[0].mxu0
        %v1896 = vadd.f32 0.0, %v1895
        %v1897 = vpop.f32.mrb[0].mxu0
        %1898 = vmatprep.mubr.f32.mxu0 0.0
        %1899 = vmatmul.mubr.f32.gmra.mrb[0].mxu0 %v1716
        %v1900 = vpop.f32.mrb[0].mxu0
        %v1901 = vadd.f32 0.0, %v1900
        %v1902 = vpop.f32.mrb[0].mxu0
        %1903 = vmatprep.mubr.f32.mxu0 0.0
        %1904 = vmatmul.mubr.f32.gmra.mrb[0].mxu0 %v1719
        %v1905 = vpop.f32.mrb[0].mxu0
        %v1906 = vadd.f32 0.0, %v1905
        %v1907 = vpop.f32.mrb[0].mxu0
        %1908 = vmatprep.mubr.f32.mxu0 0.0
        %1909 = vmatmul.mubr.f32.gmra.mrb[0].mxu0 %v1722
        %v1910 = vpop.f32.mrb[0].mxu0
        %v1911 = vadd.f32 0.0, %v1910
        %v1912 = vpop.f32.mrb[0].mxu0
        %1913 = vmatprep.mubr.f32.mxu0 0.0
        %1914 = vmatmul.mubr.f32.gmra.mrb[0].mxu0 %v1725
        %v1915 = vpop.f32.mrb[0].mxu0
        %v1916 = vadd.f32 0.0, %v1915
        %v1917 = vpop.f32.mrb[0].mxu0
        %1918 = vmatprep.mubr.f32.mxu0 0.0
        %1919 = vmatmul.mubr.f32.gmra.mrb[0].mxu0 %v1728
        %v1920 = vpop.f32.mrb[0].mxu0
        %v1921 = vadd.f32 0.0, %v1920
        %v1922 = vpop.f32.mrb[0].mxu0
        %1923 = vmatprep.mubr.f32.mxu0 0.0
        %1924 = vmatmul.mubr.f32.gmra.mrb[0].mxu0 %v1731
        %v1925 = vpop.f32.mrb[0].mxu0
        %v1926 = vadd.f32 0.0, %v1925
        %v1927 = vpop.f32.mrb[0].mxu0
        %1928 = vmatprep.mubr.f32.mxu0 0.0
        %1929 = vmatmul.mubr.f32.gmra.mrb[0].mxu0 %v1734
        %v1930 = vpop.f32.mrb[0].mxu0
        %v1931 = vadd.f32 0.0, %v1930
        %v1932 = vpop.f32.mrb[0].mxu0
        %1933 = vmatprep.mubr.f32.mxu0 0.0
        %1934 = vmatmul.mubr.f32.gmra.mrb[0].mxu0 %v1737
        %v1935 = vpop.f32.mrb[0].mxu0
        %v1936 = vadd.f32 0.0, %v1935
        %v1937 = vpop.f32.mrb[0].mxu0
        %1938 = vmatprep.mubr.f32.mxu0 0.0
        %1939 = vmatmul.mubr.f32.gmra.mrb[0].mxu0 %v1740
        %v1940 = vpop.f32.mrb[0].mxu0
        %v1941 = vadd.f32 0.0, %v1940
        %v1942 = vpop.f32.mrb[0].mxu0
        %1943 = vmatprep.mubr.f32.mxu0 0.0
        %1944 = vmatmul.mubr.f32.gmra.mrb[0].mxu0 %v1743
        %v1945 = vpop.f32.mrb[0].mxu0
        %v1946 = vadd.f32 0.0, %v1945
        %v1947 = vpop.f32.mrb[0].mxu0
        %1948 = vmatprep.mubr.f32.mxu0 0.0
        %1949 = vmatmul.mubr.f32.gmra.mrb[0].mxu0 %v1746
        %v1950 = vpop.f32.mrb[0].mxu0
        %v1951 = vadd.f32 0.0, %v1950
        %v1952 = vpop.f32.mrb[0].mxu0
        %1953 = vmatprep.mubr.f32.mxu0 0.0
        %1954 = vmatmul.mubr.f32.gmra.mrb[0].mxu0 %v1749
        %v1955 = vpop.f32.mrb[0].mxu0
        %v1956 = vadd.f32 0.0, %v1955
        %v1957 = vpop.f32.mrb[0].mxu0
        %1958 = vmatprep.mubr.f32.mxu0 0.0
        %1959 = vmatmul.mubr.f32.gmra.mrb[0].mxu0 %v1752
        %v1960 = vpop.f32.mrb[0].mxu0
        %v1961 = vadd.f32 0.0, %v1960
        %v1962 = vpop.f32.mrb[0].mxu0
        %1963 = vmatprep.mubr.f32.mxu0 0.0
        %1964 = vmatmul.mubr.f32.gmra.mrb[0].mxu0 %v1755
        %v1965 = vpop.f32.mrb[0].mxu0
        %v1966 = vadd.f32 0.0, %v1965
        %v1967 = vpop.f32.mrb[0].mxu0
        %1968 = vmatprep.mubr.f32.mxu0 0.0
        %1969 = vmatmul.mubr.f32.gmra.mrb[0].mxu0 %v1758
        %v1970 = vpop.f32.mrb[0].mxu0
        %v1971 = vadd.f32 0.0, %v1970
        %v1972 = vpop.f32.mrb[0].mxu0
        %1973 = vmatprep.mubr.f32.mxu0 0.0
        %1974 = vmatmul.mubr.f32.gmra.mrb[0].mxu0 %v1761
        %v1975 = vpop.f32.mrb[0].mxu0
        %v1976 = vadd.f32 0.0, %v1975
        %v1977 = vpop.f32.mrb[0].mxu0
        %1978 = vmatprep.mubr.f32.mxu0 0.0
        %1979 = vmatmul.mubr.f32.gmra.mrb[0].mxu0 %v1764
        %v1980 = vpop.f32.mrb[0].mxu0
        %v1981 = vadd.f32 0.0, %v1980
        %v1982 = vpop.f32.mrb[0].mxu0
        %1983 = vmatprep.mubr.f32.mxu0 0.0
        %1984 = vmatmul.mubr.f32.gmra.mrb[0].mxu0 %v1767
        %v1985 = vpop.f32.mrb[0].mxu0
        %v1986 = vadd.f32 0.0, %v1985
        %v1987 = vpop.f32.mrb[0].mxu0
        %1988 = vmatprep.mubr.f32.mxu0 0.0
        %1989 = vmatmul.mubr.f32.gmra.mrb[0].mxu0 %v1770
        %v1990 = vpop.f32.mrb[0].mxu0
        %v1991 = vadd.f32 0.0, %v1990
        %v1992 = vpop.f32.mrb[0].mxu0
        %1993 = vmatprep.mubr.f32.mxu0 0.0
        %1994 = vmatmul.mubr.f32.gmra.mrb[0].mxu0 %v1773
        %v1995 = vpop.f32.mrb[0].mxu0
        %v1996 = vadd.f32 0.0, %v1995
        %v1997 = vpop.f32.mrb[0].mxu0
        %1998 = vmatprep.mubr.f32.mxu0 0.0
        %1999 = vmatmul.mubr.f32.gmra.mrb[0].mxu0 %v1776
        %v2000 = vpop.f32.mrb[0].mxu0
        %v2001 = vadd.f32 0.0, %v2000
        %v2002 = vpop.f32.mrb[0].mxu0
        %2003 = vmatprep.mubr.f32.mxu0 0.0
        %2004 = vmatmul.mubr.f32.gmra.mrb[0].mxu0 %v1779
        %v2005 = vpop.f32.mrb[0].mxu0
        %v2006 = vadd.f32 0.0, %v2005
        %v2007 = vpop.f32.mrb[0].mxu0
        %2008 = vdwg.mxu0
        %v2009 = vadd.f32 %v1651, %v1851
        %v2010 = vadd.f32 %v1652, %v1856
        %v2011 = vadd.f32 %v1653, %v1861
        %v2012 = vadd.f32 %v1654, %v1866
        %v2013 = vadd.f32 %v1655, %v1871
        %v2014 = vadd.f32 %v1656, %v1876
        %v2015 = vadd.f32 %v1657, %v1881
        %v2016 = vadd.f32 %v1658, %v1886
        %v2017 = vadd.f32 %v1659, %v1891
        %v2018 = vadd.f32 %v1660, %v1896
        %v2019 = vadd.f32 %v1661, %v1901
        %v2020 = vadd.f32 %v1662, %v1906
        %v2021 = vadd.f32 %v1663, %v1911
        %v2022 = vadd.f32 %v1664, %v1916
        %v2023 = vadd.f32 %v1665, %v1921
        %v2024 = vadd.f32 %v1666, %v1926
        %v2025 = vadd.f32 %v1667, %v1931
        %v2026 = vadd.f32 %v1668, %v1936
        %v2027 = vadd.f32 %v1669, %v1941
        %v2028 = vadd.f32 %v1670, %v1946
        %v2029 = vadd.f32 %v1671, %v1951
        %v2030 = vadd.f32 %v1672, %v1956
        %v2031 = vadd.f32 %v1673, %v1961
        %v2032 = vadd.f32 %v1674, %v1966
        %v2033 = vadd.f32 %v1675, %v1971
        %v2034 = vadd.f32 %v1676, %v1976
        %v2035 = vadd.f32 %v1677, %v1981
        %v2036 = vadd.f32 %v1678, %v1986
        %v2037 = vadd.f32 %v1679, %v1991
        %v2038 = vadd.f32 %v1680, %v1996
        %v2039 = vadd.f32 %v1681, %v2001
        %v2040 = vadd.f32 %v1682, %v2006
        %2041 = vst [vmem:[#allocation2] sm:$0xff] %v2009
        %2042 = vst [vmem:[#allocation2 + $0x8] sm:$0xff] %v2010
        %2043 = vst [vmem:[#allocation2 + $0x10] sm:$0xff] %v2011
        %2044 = vst [vmem:[#allocation2 + $0x18] sm:$0xff] %v2012
        %2045 = vst [vmem:[#allocation2 + $0x20] sm:$0xff] %v2013
        %2046 = vst [vmem:[#allocation2 + $0x28] sm:$0xff] %v2014
        %2047 = vst [vmem:[#allocation2 + $0x30] sm:$0xff] %v2015
        %2048 = vst [vmem:[#allocation2 + $0x38] sm:$0xff] %v2016
        %2049 = vst [vmem:[#allocation2 + $0x40] sm:$0xff] %v2017
        %2050 = vst [vmem:[#allocation2 + $0x48] sm:$0xff] %v2018
        %2051 = vst [vmem:[#allocation2 + $0x50] sm:$0xff] %v2019
        %2052 = vst [vmem:[#allocation2 + $0x58] sm:$0xff] %v2020
        %2053 = vst [vmem:[#allocation2 + $0x60] sm:$0xff] %v2021
        %2054 = vst [vmem:[#allocation2 + $0x68] sm:$0xff] %v2022
        %2055 = vst [vmem:[#allocation2 + $0x70] sm:$0xff] %v2023
        %2056 = vst [vmem:[#allocation2 + $0x78] sm:$0xff] %v2024
        %2057 = vst [vmem:[#allocation2 + $0x80] sm:$0xff] %v2025
        %2058 = vst [vmem:[#allocation2 + $0x88] sm:$0xff] %v2026
        %2059 = vst [vmem:[#allocation2 + $0x90] sm:$0xff] %v2027
        %2060 = vst [vmem:[#allocation2 + $0x98] sm:$0xff] %v2028
        %2061 = vst [vmem:[#allocation2 + $0xa0] sm:$0xff] %v2029
        %2062 = vst [vmem:[#allocation2 + $0xa8] sm:$0xff] %v2030
        %2063 = vst [vmem:[#allocation2 + $0xb0] sm:$0xff] %v2031
        %2064 = vst [vmem:[#allocation2 + $0xb8] sm:$0xff] %v2032
        %2065 = vst [vmem:[#allocation2 + $0xc0] sm:$0xff] %v2033
        %2066 = vst [vmem:[#allocation2 + $0xc8] sm:$0xff] %v2034
        %2067 = vst [vmem:[#allocation2 + $0xd0] sm:$0xff] %v2035
        %2068 = vst [vmem:[#allocation2 + $0xd8] sm:$0xff] %v2036
        %2069 = vst [vmem:[#allocation2 + $0xe0] sm:$0xff] %v2037
        %2070 = vst [vmem:[#allocation2 + $0xe8] sm:$0xff] %v2038
        %2071 = vst [vmem:[#allocation2 + $0xf0] sm:$0xff] %v2039
        %2072 = vst [vmem:[#allocation2 + $0xf8] sm:$0xff] %v2040
        %v2073 = vld [vmem:[%s1618 + $0x1] sm:$0xff]
        %v2074 = vld [vmem:[%s1618 + $0x9] sm:$0xff]
        %v2075 = vld [vmem:[%s1618 + $0x19] sm:$0xff]
        %v2076 = vld [vmem:[%s1618 + $0x21] sm:$0xff]
        %v2077 = vld [vmem:[%s1618 + $0x31] sm:$0xff]
        %v2078 = vld [vmem:[%s1618 + $0x39] sm:$0xff]
        %v2079 = vld [vmem:[%s1618 + $0x49] sm:$0xff]
        %v2080 = vld [vmem:[%s1618 + $0x51] sm:$0xff]
        %v2081 = vld [vmem:[%s1618 + $0x61] sm:$0xff]
        %v2082 = vld [vmem:[%s1618 + $0x69] sm:$0xff]
        %v2083 = vld [vmem:[%s1618 + $0x79] sm:$0xff]
        %v2084 = vld [vmem:[%s1618 + $0x81] sm:$0xff]
        %v2085 = vld [vmem:[%s1618 + $0x91] sm:$0xff]
        %v2086 = vld [vmem:[%s1618 + $0x99] sm:$0xff]
        %v2087 = vld [vmem:[%s1618 + $0xa9] sm:$0xff]
        %v2088 = vld [vmem:[%s1618 + $0xb1] sm:$0xff]
        %v2089 = vld [vmem:[%s1618 + $0xc1] sm:$0xff]
        %v2090 = vld [vmem:[%s1618 + $0xc9] sm:$0xff]
        %v2091 = vld [vmem:[%s1618 + $0xd9] sm:$0xff]
        %v2092 = vld [vmem:[%s1618 + $0xe1] sm:$0xff]
        %v2093 = vld [vmem:[%s1618 + $0xf1] sm:$0xff]
        %v2094 = vld [vmem:[%s1618 + $0xf9] sm:$0xff]
        %v2095 = vld [vmem:[%s1618 + $0x109] sm:$0xff]
        %v2096 = vld [vmem:[%s1618 + $0x111] sm:$0xff]
        %v2097 = vld [vmem:[%s1618 + $0x121] sm:$0xff]
        %v2098 = vld [vmem:[%s1618 + $0x129] sm:$0xff]
        %v2099 = vld [vmem:[%s1618 + $0x139] sm:$0xff]
        %v2100 = vld [vmem:[%s1618 + $0x141] sm:$0xff]
        %v2101 = vld [vmem:[%s1618 + $0x151] sm:$0xff]
        %v2102 = vld [vmem:[%s1618 + $0x159] sm:$0xff]
        %v2103 = vld [vmem:[%s1618 + $0x169] sm:$0xff]
        %v2104 = vld [vmem:[%s1618 + $0x171] sm:$0xff]
        %v2105 = vld [vmem:[#allocation2] sm:$0xff]
        %v2106 = vld [vmem:[#allocation2 + $0x8] sm:$0xff]
        %v2107 = vld [vmem:[#allocation2 + $0x10] sm:$0xff]
        %v2108 = vld [vmem:[#allocation2 + $0x18] sm:$0xff]
        %v2109 = vld [vmem:[#allocation2 + $0x20] sm:$0xff]
        %v2110 = vld [vmem:[#allocation2 + $0x28] sm:$0xff]
        %v2111 = vld [vmem:[#allocation2 + $0x30] sm:$0xff]
        %v2112 = vld [vmem:[#allocation2 + $0x38] sm:$0xff]
        %v2113 = vld [vmem:[#allocation2 + $0x40] sm:$0xff]
        %v2114 = vld [vmem:[#allocation2 + $0x48] sm:$0xff]
        %v2115 = vld [vmem:[#allocation2 + $0x50] sm:$0xff]
        %v2116 = vld [vmem:[#allocation2 + $0x58] sm:$0xff]
        %v2117 = vld [vmem:[#allocation2 + $0x60] sm:$0xff]
        %v2118 = vld [vmem:[#allocation2 + $0x68] sm:$0xff]
        %v2119 = vld [vmem:[#allocation2 + $0x70] sm:$0xff]
        %v2120 = vld [vmem:[#allocation2 + $0x78] sm:$0xff]
        %v2121 = vld [vmem:[#allocation2 + $0x80] sm:$0xff]
        %v2122 = vld [vmem:[#allocation2 + $0x88] sm:$0xff]
        %v2123 = vld [vmem:[#allocation2 + $0x90] sm:$0xff]
        %v2124 = vld [vmem:[#allocation2 + $0x98] sm:$0xff]
        %v2125 = vld [vmem:[#allocation2 + $0xa0] sm:$0xff]
        %v2126 = vld [vmem:[#allocation2 + $0xa8] sm:$0xff]
        %v2127 = vld [vmem:[#allocation2 + $0xb0] sm:$0xff]
        %v2128 = vld [vmem:[#allocation2 + $0xb8] sm:$0xff]
        %v2129 = vld [vmem:[#allocation2 + $0xc0] sm:$0xff]
        %v2130 = vld [vmem:[#allocation2 + $0xc8] sm:$0xff]
        %v2131 = vld [vmem:[#allocation2 + $0xd0] sm:$0xff]
        %v2132 = vld [vmem:[#allocation2 + $0xd8] sm:$0xff]
        %v2133 = vld [vmem:[#allocation2 + $0xe0] sm:$0xff]
        %v2134 = vld [vmem:[#allocation2 + $0xe8] sm:$0xff]
        %v2135 = vld [vmem:[#allocation2 + $0xf0] sm:$0xff]
        %v2136 = vld [vmem:[#allocation2 + $0xf8] sm:$0xff]
        %s2137 = scalar_lea.vmem %s1, 16
        %v2138 = vld [vmem:[%s2137] sm:$0xf]
        %v2140 = vsel %vm320, %v2073, 0
        %v2143 = vsel %vm320, %v2074, 0
        %v2146 = vsel %vm320, %v2075, 0
        %v2149 = vsel %vm320, %v2076, 0
        %v2152 = vsel %vm320, %v2077, 0
        %v2155 = vsel %vm320, %v2078, 0
        %v2158 = vsel %vm320, %v2079, 0
        %v2161 = vsel %vm320, %v2080, 0
        %v2164 = vsel %vm320, %v2081, 0
        %v2167 = vsel %vm320, %v2082, 0
        %v2170 = vsel %vm320, %v2083, 0
        %v2173 = vsel %vm320, %v2084, 0
        %v2176 = vsel %vm320, %v2085, 0
        %v2179 = vsel %vm320, %v2086, 0
        %v2182 = vsel %vm320, %v2087, 0
        %v2185 = vsel %vm320, %v2088, 0
        %v2188 = vsel %vm320, %v2089, 0
        %v2191 = vsel %vm320, %v2090, 0
        %v2194 = vsel %vm320, %v2091, 0
        %v2197 = vsel %vm320, %v2092, 0
        %v2200 = vsel %vm320, %v2093, 0
        %v2203 = vsel %vm320, %v2094, 0
        %v2206 = vsel %vm320, %v2095, 0
        %v2209 = vsel %vm320, %v2096, 0
        %v2212 = vsel %vm320, %v2097, 0
        %v2215 = vsel %vm320, %v2098, 0
        %v2218 = vsel %vm320, %v2099, 0
        %v2221 = vsel %vm320, %v2100, 0
        %v2224 = vsel %vm320, %v2101, 0
        %v2227 = vsel %vm320, %v2102, 0
        %v2230 = vsel %vm320, %v2103, 0
        %v2233 = vsel %vm320, %v2104, 0
        %v2236 = vsel %vm417, %v2138, 0
        %2238 = vmatprep.subr.mxu0 0.0
        %2239 = vmatpush1.msra.mxu0 %v2236
        %2240 = vmatprep.subr.mxu0 0.0
        %2241 = vmatpush1.msra.mxu0 0.0
        %2242 = vmatprep.subr.mxu0 0.0
        %2243 = vmatpush1.msra.mxu0 0.0
        %2244 = vmatprep.subr.mxu0 0.0
        %2245 = vmatpush1.msra.mxu0 0.0
        %2246 = vmatprep.subr.mxu0 0.0
        %2247 = vmatpush1.msra.mxu0 0.0
        %2248 = vmatprep.subr.mxu0 0.0
        %2249 = vmatpush1.msra.mxu0 0.0
        %2250 = vmatprep.subr.mxu0 0.0
        %2251 = vmatpush1.msra.mxu0 0.0
        %2252 = vmatprep.subr.mxu0 0.0
        %2253 = vmatpush1.msra.mxu0 0.0
        %2254 = vmatprep.subr.mxu0 0.0
        %2255 = vmatpush1.msra.mxu0 0.0
        %2256 = vmatprep.subr.mxu0 0.0
        %2257 = vmatpush1.msra.mxu0 0.0
        %2258 = vmatprep.subr.mxu0 0.0
        %2259 = vmatpush1.msra.mxu0 0.0
        %2260 = vmatprep.subr.mxu0 0.0
        %2261 = vmatpush1.msra.mxu0 0.0
        %2262 = vmatprep.subr.mxu0 0.0
        %2263 = vmatpush1.msra.mxu0 0.0
        %2264 = vmatprep.subr.mxu0 0.0
        %2265 = vmatpush1.msra.mxu0 0.0
        %2266 = vmatprep.subr.mxu0 0.0
        %2267 = vmatpush1.msra.mxu0 0.0
        %2268 = vmatprep.subr.mxu0 0.0
        %2269 = vmatpush1.msra.mxu0 0.0
        %2270 = vmatprep.subr.mxu0 0.0
        %2271 = vmatpush1.msra.mxu0 0.0
        %2272 = vmatprep.subr.mxu0 0.0
        %2273 = vmatpush1.msra.mxu0 0.0
        %2274 = vmatprep.subr.mxu0 0.0
        %2275 = vmatpush1.msra.mxu0 0.0
        %2276 = vmatprep.subr.mxu0 0.0
        %2277 = vmatpush1.msra.mxu0 0.0
        %2278 = vmatprep.subr.mxu0 0.0
        %2279 = vmatpush1.msra.mxu0 0.0
        %2280 = vmatprep.subr.mxu0 0.0
        %2281 = vmatpush1.msra.mxu0 0.0
        %2282 = vmatprep.subr.mxu0 0.0
        %2283 = vmatpush1.msra.mxu0 0.0
        %2284 = vmatprep.subr.mxu0 0.0
        %2285 = vmatpush1.msra.mxu0 0.0
        %2286 = vmatprep.subr.mxu0 0.0
        %2287 = vmatpush1.msra.mxu0 0.0
        %2288 = vmatprep.subr.mxu0 0.0
        %2289 = vmatpush1.msra.mxu0 0.0
        %2290 = vmatprep.subr.mxu0 0.0
        %2291 = vmatpush1.msra.mxu0 0.0
        %2292 = vmatprep.subr.mxu0 0.0
        %2293 = vmatpush1.msra.mxu0 0.0
        %2294 = vmatprep.subr.mxu0 0.0
        %2295 = vmatpush1.msra.mxu0 0.0
        %2296 = vmatprep.subr.mxu0 0.0
        %2297 = vmatpush1.msra.mxu0 0.0
        %2298 = vmatprep.subr.mxu0 0.0
        %2299 = vmatpush1.msra.mxu0 0.0
        %2300 = vmatprep.subr.mxu0 0.0
        %2301 = vmatpush1.msra.mxu0 0.0
        %2302 = vmatprep.mubr.f32.mxu0 0.0
        %2303 = vmatmul.mubr.f32.gmra.mrb[0].mxu0 %v2140
        %v2304 = vpop.f32.mrb[0].mxu0
        %v2305 = vadd.f32 0.0, %v2304
        %v2306 = vpop.f32.mrb[0].mxu0
        %2307 = vmatprep.mubr.f32.mxu0 0.0
        %2308 = vmatmul.mubr.f32.gmra.mrb[0].mxu0 %v2143
        %v2309 = vpop.f32.mrb[0].mxu0
        %v2310 = vadd.f32 0.0, %v2309
        %v2311 = vpop.f32.mrb[0].mxu0
        %2312 = vmatprep.mubr.f32.mxu0 0.0
        %2313 = vmatmul.mubr.f32.gmra.mrb[0].mxu0 %v2146
        %v2314 = vpop.f32.mrb[0].mxu0
        %v2315 = vadd.f32 0.0, %v2314
        %v2316 = vpop.f32.mrb[0].mxu0
        %2317 = vmatprep.mubr.f32.mxu0 0.0
        %2318 = vmatmul.mubr.f32.gmra.mrb[0].mxu0 %v2149
        %v2319 = vpop.f32.mrb[0].mxu0
        %v2320 = vadd.f32 0.0, %v2319
        %v2321 = vpop.f32.mrb[0].mxu0
        %2322 = vmatprep.mubr.f32.mxu0 0.0
        %2323 = vmatmul.mubr.f32.gmra.mrb[0].mxu0 %v2152
        %v2324 = vpop.f32.mrb[0].mxu0
        %v2325 = vadd.f32 0.0, %v2324
        %v2326 = vpop.f32.mrb[0].mxu0
        %2327 = vmatprep.mubr.f32.mxu0 0.0
        %2328 = vmatmul.mubr.f32.gmra.mrb[0].mxu0 %v2155
        %v2329 = vpop.f32.mrb[0].mxu0
        %v2330 = vadd.f32 0.0, %v2329
        %v2331 = vpop.f32.mrb[0].mxu0
        %2332 = vmatprep.mubr.f32.mxu0 0.0
        %2333 = vmatmul.mubr.f32.gmra.mrb[0].mxu0 %v2158
        %v2334 = vpop.f32.mrb[0].mxu0
        %v2335 = vadd.f32 0.0, %v2334
        %v2336 = vpop.f32.mrb[0].mxu0
        %2337 = vmatprep.mubr.f32.mxu0 0.0
        %2338 = vmatmul.mubr.f32.gmra.mrb[0].mxu0 %v2161
        %v2339 = vpop.f32.mrb[0].mxu0
        %v2340 = vadd.f32 0.0, %v2339
        %v2341 = vpop.f32.mrb[0].mxu0
        %2342 = vmatprep.mubr.f32.mxu0 0.0
        %2343 = vmatmul.mubr.f32.gmra.mrb[0].mxu0 %v2164
        %v2344 = vpop.f32.mrb[0].mxu0
        %v2345 = vadd.f32 0.0, %v2344
        %v2346 = vpop.f32.mrb[0].mxu0
        %2347 = vmatprep.mubr.f32.mxu0 0.0
        %2348 = vmatmul.mubr.f32.gmra.mrb[0].mxu0 %v2167
        %v2349 = vpop.f32.mrb[0].mxu0
        %v2350 = vadd.f32 0.0, %v2349
        %v2351 = vpop.f32.mrb[0].mxu0
        %2352 = vmatprep.mubr.f32.mxu0 0.0
        %2353 = vmatmul.mubr.f32.gmra.mrb[0].mxu0 %v2170
        %v2354 = vpop.f32.mrb[0].mxu0
        %v2355 = vadd.f32 0.0, %v2354
        %v2356 = vpop.f32.mrb[0].mxu0
        %2357 = vmatprep.mubr.f32.mxu0 0.0
        %2358 = vmatmul.mubr.f32.gmra.mrb[0].mxu0 %v2173
        %v2359 = vpop.f32.mrb[0].mxu0
        %v2360 = vadd.f32 0.0, %v2359
        %v2361 = vpop.f32.mrb[0].mxu0
        %2362 = vmatprep.mubr.f32.mxu0 0.0
        %2363 = vmatmul.mubr.f32.gmra.mrb[0].mxu0 %v2176
        %v2364 = vpop.f32.mrb[0].mxu0
        %v2365 = vadd.f32 0.0, %v2364
        %v2366 = vpop.f32.mrb[0].mxu0
        %2367 = vmatprep.mubr.f32.mxu0 0.0
        %2368 = vmatmul.mubr.f32.gmra.mrb[0].mxu0 %v2179
        %v2369 = vpop.f32.mrb[0].mxu0
        %v2370 = vadd.f32 0.0, %v2369
        %v2371 = vpop.f32.mrb[0].mxu0
        %2372 = vmatprep.mubr.f32.mxu0 0.0
        %2373 = vmatmul.mubr.f32.gmra.mrb[0].mxu0 %v2182
        %v2374 = vpop.f32.mrb[0].mxu0
        %v2375 = vadd.f32 0.0, %v2374
        %v2376 = vpop.f32.mrb[0].mxu0
        %2377 = vmatprep.mubr.f32.mxu0 0.0
        %2378 = vmatmul.mubr.f32.gmra.mrb[0].mxu0 %v2185
        %v2379 = vpop.f32.mrb[0].mxu0
        %v2380 = vadd.f32 0.0, %v2379
        %v2381 = vpop.f32.mrb[0].mxu0
        %2382 = vmatprep.mubr.f32.mxu0 0.0
        %2383 = vmatmul.mubr.f32.gmra.mrb[0].mxu0 %v2188
        %v2384 = vpop.f32.mrb[0].mxu0
        %v2385 = vadd.f32 0.0, %v2384
        %v2386 = vpop.f32.mrb[0].mxu0
        %2387 = vmatprep.mubr.f32.mxu0 0.0
        %2388 = vmatmul.mubr.f32.gmra.mrb[0].mxu0 %v2191
        %v2389 = vpop.f32.mrb[0].mxu0
        %v2390 = vadd.f32 0.0, %v2389
        %v2391 = vpop.f32.mrb[0].mxu0
        %2392 = vmatprep.mubr.f32.mxu0 0.0
        %2393 = vmatmul.mubr.f32.gmra.mrb[0].mxu0 %v2194
        %v2394 = vpop.f32.mrb[0].mxu0
        %v2395 = vadd.f32 0.0, %v2394
        %v2396 = vpop.f32.mrb[0].mxu0
        %2397 = vmatprep.mubr.f32.mxu0 0.0
        %2398 = vmatmul.mubr.f32.gmra.mrb[0].mxu0 %v2197
        %v2399 = vpop.f32.mrb[0].mxu0
        %v2400 = vadd.f32 0.0, %v2399
        %v2401 = vpop.f32.mrb[0].mxu0
        %2402 = vmatprep.mubr.f32.mxu0 0.0
        %2403 = vmatmul.mubr.f32.gmra.mrb[0].mxu0 %v2200
        %v2404 = vpop.f32.mrb[0].mxu0
        %v2405 = vadd.f32 0.0, %v2404
        %v2406 = vpop.f32.mrb[0].mxu0
        %2407 = vmatprep.mubr.f32.mxu0 0.0
        %2408 = vmatmul.mubr.f32.gmra.mrb[0].mxu0 %v2203
        %v2409 = vpop.f32.mrb[0].mxu0
        %v2410 = vadd.f32 0.0, %v2409
        %v2411 = vpop.f32.mrb[0].mxu0
        %2412 = vmatprep.mubr.f32.mxu0 0.0
        %2413 = vmatmul.mubr.f32.gmra.mrb[0].mxu0 %v2206
        %v2414 = vpop.f32.mrb[0].mxu0
        %v2415 = vadd.f32 0.0, %v2414
        %v2416 = vpop.f32.mrb[0].mxu0
        %2417 = vmatprep.mubr.f32.mxu0 0.0
        %2418 = vmatmul.mubr.f32.gmra.mrb[0].mxu0 %v2209
        %v2419 = vpop.f32.mrb[0].mxu0
        %v2420 = vadd.f32 0.0, %v2419
        %v2421 = vpop.f32.mrb[0].mxu0
        %2422 = vmatprep.mubr.f32.mxu0 0.0
        %2423 = vmatmul.mubr.f32.gmra.mrb[0].mxu0 %v2212
        %v2424 = vpop.f32.mrb[0].mxu0
        %v2425 = vadd.f32 0.0, %v2424
        %v2426 = vpop.f32.mrb[0].mxu0
        %2427 = vmatprep.mubr.f32.mxu0 0.0
        %2428 = vmatmul.mubr.f32.gmra.mrb[0].mxu0 %v2215
        %v2429 = vpop.f32.mrb[0].mxu0
        %v2430 = vadd.f32 0.0, %v2429
        %v2431 = vpop.f32.mrb[0].mxu0
        %2432 = vmatprep.mubr.f32.mxu0 0.0
        %2433 = vmatmul.mubr.f32.gmra.mrb[0].mxu0 %v2218
        %v2434 = vpop.f32.mrb[0].mxu0
        %v2435 = vadd.f32 0.0, %v2434
        %v2436 = vpop.f32.mrb[0].mxu0
        %2437 = vmatprep.mubr.f32.mxu0 0.0
        %2438 = vmatmul.mubr.f32.gmra.mrb[0].mxu0 %v2221
        %v2439 = vpop.f32.mrb[0].mxu0
        %v2440 = vadd.f32 0.0, %v2439
        %v2441 = vpop.f32.mrb[0].mxu0
        %2442 = vmatprep.mubr.f32.mxu0 0.0
        %2443 = vmatmul.mubr.f32.gmra.mrb[0].mxu0 %v2224
        %v2444 = vpop.f32.mrb[0].mxu0
        %v2445 = vadd.f32 0.0, %v2444
        %v2446 = vpop.f32.mrb[0].mxu0
        %2447 = vmatprep.mubr.f32.mxu0 0.0
        %2448 = vmatmul.mubr.f32.gmra.mrb[0].mxu0 %v2227
        %v2449 = vpop.f32.mrb[0].mxu0
        %v2450 = vadd.f32 0.0, %v2449
        %v2451 = vpop.f32.mrb[0].mxu0
        %2452 = vmatprep.mubr.f32.mxu0 0.0
        %2453 = vmatmul.mubr.f32.gmra.mrb[0].mxu0 %v2230
        %v2454 = vpop.f32.mrb[0].mxu0
        %v2455 = vadd.f32 0.0, %v2454
        %v2456 = vpop.f32.mrb[0].mxu0
        %2457 = vmatprep.mubr.f32.mxu0 0.0
        %2458 = vmatmul.mubr.f32.gmra.mrb[0].mxu0 %v2233
        %v2459 = vpop.f32.mrb[0].mxu0
        %v2460 = vadd.f32 0.0, %v2459
        %v2461 = vpop.f32.mrb[0].mxu0
        %2462 = vdwg.mxu0
        %v2463 = vadd.f32 %v2105, %v2305
        %v2464 = vadd.f32 %v2106, %v2310
        %v2465 = vadd.f32 %v2107, %v2315
        %v2466 = vadd.f32 %v2108, %v2320
        %v2467 = vadd.f32 %v2109, %v2325
        %v2468 = vadd.f32 %v2110, %v2330
        %v2469 = vadd.f32 %v2111, %v2335
        %v2470 = vadd.f32 %v2112, %v2340
        %v2471 = vadd.f32 %v2113, %v2345
        %v2472 = vadd.f32 %v2114, %v2350
        %v2473 = vadd.f32 %v2115, %v2355
        %v2474 = vadd.f32 %v2116, %v2360
        %v2475 = vadd.f32 %v2117, %v2365
        %v2476 = vadd.f32 %v2118, %v2370
        %v2477 = vadd.f32 %v2119, %v2375
        %v2478 = vadd.f32 %v2120, %v2380
        %v2479 = vadd.f32 %v2121, %v2385
        %v2480 = vadd.f32 %v2122, %v2390
        %v2481 = vadd.f32 %v2123, %v2395
        %v2482 = vadd.f32 %v2124, %v2400
        %v2483 = vadd.f32 %v2125, %v2405
        %v2484 = vadd.f32 %v2126, %v2410
        %v2485 = vadd.f32 %v2127, %v2415
        %v2486 = vadd.f32 %v2128, %v2420
        %v2487 = vadd.f32 %v2129, %v2425
        %v2488 = vadd.f32 %v2130, %v2430
        %v2489 = vadd.f32 %v2131, %v2435
        %v2490 = vadd.f32 %v2132, %v2440
        %v2491 = vadd.f32 %v2133, %v2445
        %v2492 = vadd.f32 %v2134, %v2450
        %v2493 = vadd.f32 %v2135, %v2455
        %v2494 = vadd.f32 %v2136, %v2460
        %2495 = vst [vmem:[#allocation2] sm:$0xff] %v2463
        %2496 = vst [vmem:[#allocation2 + $0x8] sm:$0xff] %v2464
        %2497 = vst [vmem:[#allocation2 + $0x10] sm:$0xff] %v2465
        %2498 = vst [vmem:[#allocation2 + $0x18] sm:$0xff] %v2466
        %2499 = vst [vmem:[#allocation2 + $0x20] sm:$0xff] %v2467
        %2500 = vst [vmem:[#allocation2 + $0x28] sm:$0xff] %v2468
        %2501 = vst [vmem:[#allocation2 + $0x30] sm:$0xff] %v2469
        %2502 = vst [vmem:[#allocation2 + $0x38] sm:$0xff] %v2470
        %2503 = vst [vmem:[#allocation2 + $0x40] sm:$0xff] %v2471
        %2504 = vst [vmem:[#allocation2 + $0x48] sm:$0xff] %v2472
        %2505 = vst [vmem:[#allocation2 + $0x50] sm:$0xff] %v2473
        %2506 = vst [vmem:[#allocation2 + $0x58] sm:$0xff] %v2474
        %2507 = vst [vmem:[#allocation2 + $0x60] sm:$0xff] %v2475
        %2508 = vst [vmem:[#allocation2 + $0x68] sm:$0xff] %v2476
        %2509 = vst [vmem:[#allocation2 + $0x70] sm:$0xff] %v2477
        %2510 = vst [vmem:[#allocation2 + $0x78] sm:$0xff] %v2478
        %2511 = vst [vmem:[#allocation2 + $0x80] sm:$0xff] %v2479
        %2512 = vst [vmem:[#allocation2 + $0x88] sm:$0xff] %v2480
        %2513 = vst [vmem:[#allocation2 + $0x90] sm:$0xff] %v2481
        %2514 = vst [vmem:[#allocation2 + $0x98] sm:$0xff] %v2482
        %2515 = vst [vmem:[#allocation2 + $0xa0] sm:$0xff] %v2483
        %2516 = vst [vmem:[#allocation2 + $0xa8] sm:$0xff] %v2484
        %2517 = vst [vmem:[#allocation2 + $0xb0] sm:$0xff] %v2485
        %2518 = vst [vmem:[#allocation2 + $0xb8] sm:$0xff] %v2486
        %2519 = vst [vmem:[#allocation2 + $0xc0] sm:$0xff] %v2487
        %2520 = vst [vmem:[#allocation2 + $0xc8] sm:$0xff] %v2488
        %2521 = vst [vmem:[#allocation2 + $0xd0] sm:$0xff] %v2489
        %2522 = vst [vmem:[#allocation2 + $0xd8] sm:$0xff] %v2490
        %2523 = vst [vmem:[#allocation2 + $0xe0] sm:$0xff] %v2491
        %2524 = vst [vmem:[#allocation2 + $0xe8] sm:$0xff] %v2492
        %2525 = vst [vmem:[#allocation2 + $0xf0] sm:$0xff] %v2493
        %2526 = vst [vmem:[#allocation2 + $0xf8] sm:$0xff] %v2494
        %v2527 = vld [vmem:[%s1618 + $0x2] sm:$0xff]
        %v2528 = vld [vmem:[%s1618 + $0xa] sm:$0xff]
        %v2529 = vld [vmem:[%s1618 + $0x1a] sm:$0xff]
        %v2530 = vld [vmem:[%s1618 + $0x22] sm:$0xff]
        %v2531 = vld [vmem:[%s1618 + $0x32] sm:$0xff]
        %v2532 = vld [vmem:[%s1618 + $0x3a] sm:$0xff]
        %v2533 = vld [vmem:[%s1618 + $0x4a] sm:$0xff]
        %v2534 = vld [vmem:[%s1618 + $0x52] sm:$0xff]
        %v2535 = vld [vmem:[%s1618 + $0x62] sm:$0xff]
        %v2536 = vld [vmem:[%s1618 + $0x6a] sm:$0xff]
        %v2537 = vld [vmem:[%s1618 + $0x7a] sm:$0xff]
        %v2538 = vld [vmem:[%s1618 + $0x82] sm:$0xff]
        %v2539 = vld [vmem:[%s1618 + $0x92] sm:$0xff]
        %v2540 = vld [vmem:[%s1618 + $0x9a] sm:$0xff]
        %v2541 = vld [vmem:[%s1618 + $0xaa] sm:$0xff]
        %v2542 = vld [vmem:[%s1618 + $0xb2] sm:$0xff]
        %v2543 = vld [vmem:[%s1618 + $0xc2] sm:$0xff]
        %v2544 = vld [vmem:[%s1618 + $0xca] sm:$0xff]
        %v2545 = vld [vmem:[%s1618 + $0xda] sm:$0xff]
        %v2546 = vld [vmem:[%s1618 + $0xe2] sm:$0xff]
        %v2547 = vld [vmem:[%s1618 + $0xf2] sm:$0xff]
        %v2548 = vld [vmem:[%s1618 + $0xfa] sm:$0xff]
        %v2549 = vld [vmem:[%s1618 + $0x10a] sm:$0xff]
        %v2550 = vld [vmem:[%s1618 + $0x112] sm:$0xff]
        %v2551 = vld [vmem:[%s1618 + $0x122] sm:$0xff]
        %v2552 = vld [vmem:[%s1618 + $0x12a] sm:$0xff]
        %v2553 = vld [vmem:[%s1618 + $0x13a] sm:$0xff]
        %v2554 = vld [vmem:[%s1618 + $0x142] sm:$0xff]
        %v2555 = vld [vmem:[%s1618 + $0x152] sm:$0xff]
        %v2556 = vld [vmem:[%s1618 + $0x15a] sm:$0xff]
        %v2557 = vld [vmem:[%s1618 + $0x16a] sm:$0xff]
        %v2558 = vld [vmem:[%s1618 + $0x172] sm:$0xff]
        %v2559 = vld [vmem:[#allocation2] sm:$0xff]
        %v2560 = vld [vmem:[#allocation2 + $0x8] sm:$0xff]
        %v2561 = vld [vmem:[#allocation2 + $0x10] sm:$0xff]
        %v2562 = vld [vmem:[#allocation2 + $0x18] sm:$0xff]
        %v2563 = vld [vmem:[#allocation2 + $0x20] sm:$0xff]
        %v2564 = vld [vmem:[#allocation2 + $0x28] sm:$0xff]
        %v2565 = vld [vmem:[#allocation2 + $0x30] sm:$0xff]
        %v2566 = vld [vmem:[#allocation2 + $0x38] sm:$0xff]
        %v2567 = vld [vmem:[#allocation2 + $0x40] sm:$0xff]
        %v2568 = vld [vmem:[#allocation2 + $0x48] sm:$0xff]
        %v2569 = vld [vmem:[#allocation2 + $0x50] sm:$0xff]
        %v2570 = vld [vmem:[#allocation2 + $0x58] sm:$0xff]
        %v2571 = vld [vmem:[#allocation2 + $0x60] sm:$0xff]
        %v2572 = vld [vmem:[#allocation2 + $0x68] sm:$0xff]
        %v2573 = vld [vmem:[#allocation2 + $0x70] sm:$0xff]
        %v2574 = vld [vmem:[#allocation2 + $0x78] sm:$0xff]
        %v2575 = vld [vmem:[#allocation2 + $0x80] sm:$0xff]
        %v2576 = vld [vmem:[#allocation2 + $0x88] sm:$0xff]
        %v2577 = vld [vmem:[#allocation2 + $0x90] sm:$0xff]
        %v2578 = vld [vmem:[#allocation2 + $0x98] sm:$0xff]
        %v2579 = vld [vmem:[#allocation2 + $0xa0] sm:$0xff]
        %v2580 = vld [vmem:[#allocation2 + $0xa8] sm:$0xff]
        %v2581 = vld [vmem:[#allocation2 + $0xb0] sm:$0xff]
        %v2582 = vld [vmem:[#allocation2 + $0xb8] sm:$0xff]
        %v2583 = vld [vmem:[#allocation2 + $0xc0] sm:$0xff]
        %v2584 = vld [vmem:[#allocation2 + $0xc8] sm:$0xff]
        %v2585 = vld [vmem:[#allocation2 + $0xd0] sm:$0xff]
        %v2586 = vld [vmem:[#allocation2 + $0xd8] sm:$0xff]
        %v2587 = vld [vmem:[#allocation2 + $0xe0] sm:$0xff]
        %v2588 = vld [vmem:[#allocation2 + $0xe8] sm:$0xff]
        %v2589 = vld [vmem:[#allocation2 + $0xf0] sm:$0xff]
        %v2590 = vld [vmem:[#allocation2 + $0xf8] sm:$0xff]
        %s2591 = scalar_lea.vmem %s1, 20
        %v2592 = vld [vmem:[%s2591] sm:$0xf]
        %v2594 = vsel %vm320, %v2527, 0
        %v2597 = vsel %vm320, %v2528, 0
        %v2600 = vsel %vm320, %v2529, 0
        %v2603 = vsel %vm320, %v2530, 0
        %v2606 = vsel %vm320, %v2531, 0
        %v2609 = vsel %vm320, %v2532, 0
        %v2612 = vsel %vm320, %v2533, 0
        %v2615 = vsel %vm320, %v2534, 0
        %v2618 = vsel %vm320, %v2535, 0
        %v2621 = vsel %vm320, %v2536, 0
        %v2624 = vsel %vm320, %v2537, 0
        %v2627 = vsel %vm320, %v2538, 0
        %v2630 = vsel %vm320, %v2539, 0
        %v2633 = vsel %vm320, %v2540, 0
        %v2636 = vsel %vm320, %v2541, 0
        %v2639 = vsel %vm320, %v2542, 0
        %v2642 = vsel %vm320, %v2543, 0
        %v2645 = vsel %vm320, %v2544, 0
        %v2648 = vsel %vm320, %v2545, 0
        %v2651 = vsel %vm320, %v2546, 0
        %v2654 = vsel %vm320, %v2547, 0
        %v2657 = vsel %vm320, %v2548, 0
        %v2660 = vsel %vm320, %v2549, 0
        %v2663 = vsel %vm320, %v2550, 0
        %v2666 = vsel %vm320, %v2551, 0
        %v2669 = vsel %vm320, %v2552, 0
        %v2672 = vsel %vm320, %v2553, 0
        %v2675 = vsel %vm320, %v2554, 0
        %v2678 = vsel %vm320, %v2555, 0
        %v2681 = vsel %vm320, %v2556, 0
        %v2684 = vsel %vm320, %v2557, 0
        %v2687 = vsel %vm320, %v2558, 0
        %v2690 = vsel %vm417, %v2592, 0
        %2692 = vmatprep.subr.mxu0 0.0
        %2693 = vmatpush1.msra.mxu0 %v2690
        %2694 = vmatprep.subr.mxu0 0.0
        %2695 = vmatpush1.msra.mxu0 0.0
        %2696 = vmatprep.subr.mxu0 0.0
        %2697 = vmatpush1.msra.mxu0 0.0
        %2698 = vmatprep.subr.mxu0 0.0
        %2699 = vmatpush1.msra.mxu0 0.0
        %2700 = vmatprep.subr.mxu0 0.0
        %2701 = vmatpush1.msra.mxu0 0.0
        %2702 = vmatprep.subr.mxu0 0.0
        %2703 = vmatpush1.msra.mxu0 0.0
        %2704 = vmatprep.subr.mxu0 0.0
        %2705 = vmatpush1.msra.mxu0 0.0
        %2706 = vmatprep.subr.mxu0 0.0
        %2707 = vmatpush1.msra.mxu0 0.0
        %2708 = vmatprep.subr.mxu0 0.0
        %2709 = vmatpush1.msra.mxu0 0.0
        %2710 = vmatprep.subr.mxu0 0.0
        %2711 = vmatpush1.msra.mxu0 0.0
        %2712 = vmatprep.subr.mxu0 0.0
        %2713 = vmatpush1.msra.mxu0 0.0
        %2714 = vmatprep.subr.mxu0 0.0
        %2715 = vmatpush1.msra.mxu0 0.0
        %2716 = vmatprep.subr.mxu0 0.0
        %2717 = vmatpush1.msra.mxu0 0.0
        %2718 = vmatprep.subr.mxu0 0.0
        %2719 = vmatpush1.msra.mxu0 0.0
        %2720 = vmatprep.subr.mxu0 0.0
        %2721 = vmatpush1.msra.mxu0 0.0
        %2722 = vmatprep.subr.mxu0 0.0
        %2723 = vmatpush1.msra.mxu0 0.0
        %2724 = vmatprep.subr.mxu0 0.0
        %2725 = vmatpush1.msra.mxu0 0.0
        %2726 = vmatprep.subr.mxu0 0.0
        %2727 = vmatpush1.msra.mxu0 0.0
        %2728 = vmatprep.subr.mxu0 0.0
        %2729 = vmatpush1.msra.mxu0 0.0
        %2730 = vmatprep.subr.mxu0 0.0
        %2731 = vmatpush1.msra.mxu0 0.0
        %2732 = vmatprep.subr.mxu0 0.0
        %2733 = vmatpush1.msra.mxu0 0.0
        %2734 = vmatprep.subr.mxu0 0.0
        %2735 = vmatpush1.msra.mxu0 0.0
        %2736 = vmatprep.subr.mxu0 0.0
        %2737 = vmatpush1.msra.mxu0 0.0
        %2738 = vmatprep.subr.mxu0 0.0
        %2739 = vmatpush1.msra.mxu0 0.0
        %2740 = vmatprep.subr.mxu0 0.0
        %2741 = vmatpush1.msra.mxu0 0.0
        %2742 = vmatprep.subr.mxu0 0.0
        %2743 = vmatpush1.msra.mxu0 0.0
        %2744 = vmatprep.subr.mxu0 0.0
        %2745 = vmatpush1.msra.mxu0 0.0
        %2746 = vmatprep.subr.mxu0 0.0
        %2747 = vmatpush1.msra.mxu0 0.0
        %2748 = vmatprep.subr.mxu0 0.0
        %2749 = vmatpush1.msra.mxu0 0.0
        %2750 = vmatprep.subr.mxu0 0.0
        %2751 = vmatpush1.msra.mxu0 0.0
        %2752 = vmatprep.subr.mxu0 0.0
        %2753 = vmatpush1.msra.mxu0 0.0
        %2754 = vmatprep.subr.mxu0 0.0
        %2755 = vmatpush1.msra.mxu0 0.0
        %2756 = vmatprep.mubr.f32.mxu0 0.0
        %2757 = vmatmul.mubr.f32.gmra.mrb[0].mxu0 %v2594
        %v2758 = vpop.f32.mrb[0].mxu0
        %v2759 = vadd.f32 0.0, %v2758
        %v2760 = vpop.f32.mrb[0].mxu0
        %2761 = vmatprep.mubr.f32.mxu0 0.0
        %2762 = vmatmul.mubr.f32.gmra.mrb[0].mxu0 %v2597
        %v2763 = vpop.f32.mrb[0].mxu0
        %v2764 = vadd.f32 0.0, %v2763
        %v2765 = vpop.f32.mrb[0].mxu0
        %2766 = vmatprep.mubr.f32.mxu0 0.0
        %2767 = vmatmul.mubr.f32.gmra.mrb[0].mxu0 %v2600
        %v2768 = vpop.f32.mrb[0].mxu0
        %v2769 = vadd.f32 0.0, %v2768
        %v2770 = vpop.f32.mrb[0].mxu0
        %2771 = vmatprep.mubr.f32.mxu0 0.0
        %2772 = vmatmul.mubr.f32.gmra.mrb[0].mxu0 %v2603
        %v2773 = vpop.f32.mrb[0].mxu0
        %v2774 = vadd.f32 0.0, %v2773
        %v2775 = vpop.f32.mrb[0].mxu0
        %2776 = vmatprep.mubr.f32.mxu0 0.0
        %2777 = vmatmul.mubr.f32.gmra.mrb[0].mxu0 %v2606
        %v2778 = vpop.f32.mrb[0].mxu0
        %v2779 = vadd.f32 0.0, %v2778
        %v2780 = vpop.f32.mrb[0].mxu0
        %2781 = vmatprep.mubr.f32.mxu0 0.0
        %2782 = vmatmul.mubr.f32.gmra.mrb[0].mxu0 %v2609
        %v2783 = vpop.f32.mrb[0].mxu0
        %v2784 = vadd.f32 0.0, %v2783
        %v2785 = vpop.f32.mrb[0].mxu0
        %2786 = vmatprep.mubr.f32.mxu0 0.0
        %2787 = vmatmul.mubr.f32.gmra.mrb[0].mxu0 %v2612
        %v2788 = vpop.f32.mrb[0].mxu0
        %v2789 = vadd.f32 0.0, %v2788
        %v2790 = vpop.f32.mrb[0].mxu0
        %2791 = vmatprep.mubr.f32.mxu0 0.0
        %2792 = vmatmul.mubr.f32.gmra.mrb[0].mxu0 %v2615
        %v2793 = vpop.f32.mrb[0].mxu0
        %v2794 = vadd.f32 0.0, %v2793
        %v2795 = vpop.f32.mrb[0].mxu0
        %2796 = vmatprep.mubr.f32.mxu0 0.0
        %2797 = vmatmul.mubr.f32.gmra.mrb[0].mxu0 %v2618
        %v2798 = vpop.f32.mrb[0].mxu0
        %v2799 = vadd.f32 0.0, %v2798
        %v2800 = vpop.f32.mrb[0].mxu0
        %2801 = vmatprep.mubr.f32.mxu0 0.0
        %2802 = vmatmul.mubr.f32.gmra.mrb[0].mxu0 %v2621
        %v2803 = vpop.f32.mrb[0].mxu0
        %v2804 = vadd.f32 0.0, %v2803
        %v2805 = vpop.f32.mrb[0].mxu0
        %2806 = vmatprep.mubr.f32.mxu0 0.0
        %2807 = vmatmul.mubr.f32.gmra.mrb[0].mxu0 %v2624
        %v2808 = vpop.f32.mrb[0].mxu0
        %v2809 = vadd.f32 0.0, %v2808
        %v2810 = vpop.f32.mrb[0].mxu0
        %2811 = vmatprep.mubr.f32.mxu0 0.0
        %2812 = vmatmul.mubr.f32.gmra.mrb[0].mxu0 %v2627
        %v2813 = vpop.f32.mrb[0].mxu0
        %v2814 = vadd.f32 0.0, %v2813
        %v2815 = vpop.f32.mrb[0].mxu0
        %2816 = vmatprep.mubr.f32.mxu0 0.0
        %2817 = vmatmul.mubr.f32.gmra.mrb[0].mxu0 %v2630
        %v2818 = vpop.f32.mrb[0].mxu0
        %v2819 = vadd.f32 0.0, %v2818
        %v2820 = vpop.f32.mrb[0].mxu0
        %2821 = vmatprep.mubr.f32.mxu0 0.0
        %2822 = vmatmul.mubr.f32.gmra.mrb[0].mxu0 %v2633
        %v2823 = vpop.f32.mrb[0].mxu0
        %v2824 = vadd.f32 0.0, %v2823
        %v2825 = vpop.f32.mrb[0].mxu0
        %2826 = vmatprep.mubr.f32.mxu0 0.0
        %2827 = vmatmul.mubr.f32.gmra.mrb[0].mxu0 %v2636
        %v2828 = vpop.f32.mrb[0].mxu0
        %v2829 = vadd.f32 0.0, %v2828
        %v2830 = vpop.f32.mrb[0].mxu0
        %2831 = vmatprep.mubr.f32.mxu0 0.0
        %2832 = vmatmul.mubr.f32.gmra.mrb[0].mxu0 %v2639
        %v2833 = vpop.f32.mrb[0].mxu0
        %v2834 = vadd.f32 0.0, %v2833
        %v2835 = vpop.f32.mrb[0].mxu0
        %2836 = vmatprep.mubr.f32.mxu0 0.0
        %2837 = vmatmul.mubr.f32.gmra.mrb[0].mxu0 %v2642
        %v2838 = vpop.f32.mrb[0].mxu0
        %v2839 = vadd.f32 0.0, %v2838
        %v2840 = vpop.f32.mrb[0].mxu0
        %2841 = vmatprep.mubr.f32.mxu0 0.0
        %2842 = vmatmul.mubr.f32.gmra.mrb[0].mxu0 %v2645
        %v2843 = vpop.f32.mrb[0].mxu0
        %v2844 = vadd.f32 0.0, %v2843
        %v2845 = vpop.f32.mrb[0].mxu0
        %2846 = vmatprep.mubr.f32.mxu0 0.0
        %2847 = vmatmul.mubr.f32.gmra.mrb[0].mxu0 %v2648
        %v2848 = vpop.f32.mrb[0].mxu0
        %v2849 = vadd.f32 0.0, %v2848
        %v2850 = vpop.f32.mrb[0].mxu0
        %2851 = vmatprep.mubr.f32.mxu0 0.0
        %2852 = vmatmul.mubr.f32.gmra.mrb[0].mxu0 %v2651
        %v2853 = vpop.f32.mrb[0].mxu0
        %v2854 = vadd.f32 0.0, %v2853
        %v2855 = vpop.f32.mrb[0].mxu0
        %2856 = vmatprep.mubr.f32.mxu0 0.0
        %2857 = vmatmul.mubr.f32.gmra.mrb[0].mxu0 %v2654
        %v2858 = vpop.f32.mrb[0].mxu0
        %v2859 = vadd.f32 0.0, %v2858
        %v2860 = vpop.f32.mrb[0].mxu0
        %2861 = vmatprep.mubr.f32.mxu0 0.0
        %2862 = vmatmul.mubr.f32.gmra.mrb[0].mxu0 %v2657
        %v2863 = vpop.f32.mrb[0].mxu0
        %v2864 = vadd.f32 0.0, %v2863
        %v2865 = vpop.f32.mrb[0].mxu0
        %2866 = vmatprep.mubr.f32.mxu0 0.0
        %2867 = vmatmul.mubr.f32.gmra.mrb[0].mxu0 %v2660
        %v2868 = vpop.f32.mrb[0].mxu0
        %v2869 = vadd.f32 0.0, %v2868
        %v2870 = vpop.f32.mrb[0].mxu0
        %2871 = vmatprep.mubr.f32.mxu0 0.0
        %2872 = vmatmul.mubr.f32.gmra.mrb[0].mxu0 %v2663
        %v2873 = vpop.f32.mrb[0].mxu0
        %v2874 = vadd.f32 0.0, %v2873
        %v2875 = vpop.f32.mrb[0].mxu0
        %2876 = vmatprep.mubr.f32.mxu0 0.0
        %2877 = vmatmul.mubr.f32.gmra.mrb[0].mxu0 %v2666
        %v2878 = vpop.f32.mrb[0].mxu0
        %v2879 = vadd.f32 0.0, %v2878
        %v2880 = vpop.f32.mrb[0].mxu0
        %2881 = vmatprep.mubr.f32.mxu0 0.0
        %2882 = vmatmul.mubr.f32.gmra.mrb[0].mxu0 %v2669
        %v2883 = vpop.f32.mrb[0].mxu0
        %v2884 = vadd.f32 0.0, %v2883
        %v2885 = vpop.f32.mrb[0].mxu0
        %2886 = vmatprep.mubr.f32.mxu0 0.0
        %2887 = vmatmul.mubr.f32.gmra.mrb[0].mxu0 %v2672
        %v2888 = vpop.f32.mrb[0].mxu0
        %v2889 = vadd.f32 0.0, %v2888
        %v2890 = vpop.f32.mrb[0].mxu0
        %2891 = vmatprep.mubr.f32.mxu0 0.0
        %2892 = vmatmul.mubr.f32.gmra.mrb[0].mxu0 %v2675
        %v2893 = vpop.f32.mrb[0].mxu0
        %v2894 = vadd.f32 0.0, %v2893
        %v2895 = vpop.f32.mrb[0].mxu0
        %2896 = vmatprep.mubr.f32.mxu0 0.0
        %2897 = vmatmul.mubr.f32.gmra.mrb[0].mxu0 %v2678
        %v2898 = vpop.f32.mrb[0].mxu0
        %v2899 = vadd.f32 0.0, %v2898
        %v2900 = vpop.f32.mrb[0].mxu0
        %2901 = vmatprep.mubr.f32.mxu0 0.0
        %2902 = vmatmul.mubr.f32.gmra.mrb[0].mxu0 %v2681
        %v2903 = vpop.f32.mrb[0].mxu0
        %v2904 = vadd.f32 0.0, %v2903
        %v2905 = vpop.f32.mrb[0].mxu0
        %2906 = vmatprep.mubr.f32.mxu0 0.0
        %2907 = vmatmul.mubr.f32.gmra.mrb[0].mxu0 %v2684
        %v2908 = vpop.f32.mrb[0].mxu0
        %v2909 = vadd.f32 0.0, %v2908
        %v2910 = vpop.f32.mrb[0].mxu0
        %2911 = vmatprep.mubr.f32.mxu0 0.0
        %2912 = vmatmul.mubr.f32.gmra.mrb[0].mxu0 %v2687
        %v2913 = vpop.f32.mrb[0].mxu0
        %v2914 = vadd.f32 0.0, %v2913
        %v2915 = vpop.f32.mrb[0].mxu0
        %2916 = vdwg.mxu0
        %v2917 = vadd.f32 %v2559, %v2759
        %v2918 = vadd.f32 %v2560, %v2764
        %v2919 = vadd.f32 %v2561, %v2769
        %v2920 = vadd.f32 %v2562, %v2774
        %v2921 = vadd.f32 %v2563, %v2779
        %v2922 = vadd.f32 %v2564, %v2784
        %v2923 = vadd.f32 %v2565, %v2789
        %v2924 = vadd.f32 %v2566, %v2794
        %v2925 = vadd.f32 %v2567, %v2799
        %v2926 = vadd.f32 %v2568, %v2804
        %v2927 = vadd.f32 %v2569, %v2809
        %v2928 = vadd.f32 %v2570, %v2814
        %v2929 = vadd.f32 %v2571, %v2819
        %v2930 = vadd.f32 %v2572, %v2824
        %v2931 = vadd.f32 %v2573, %v2829
        %v2932 = vadd.f32 %v2574, %v2834
        %v2933 = vadd.f32 %v2575, %v2839
        %v2934 = vadd.f32 %v2576, %v2844
        %v2935 = vadd.f32 %v2577, %v2849
        %v2936 = vadd.f32 %v2578, %v2854
        %v2937 = vadd.f32 %v2579, %v2859
        %v2938 = vadd.f32 %v2580, %v2864
        %v2939 = vadd.f32 %v2581, %v2869
        %v2940 = vadd.f32 %v2582, %v2874
        %v2941 = vadd.f32 %v2583, %v2879
        %v2942 = vadd.f32 %v2584, %v2884
        %v2943 = vadd.f32 %v2585, %v2889
        %v2944 = vadd.f32 %v2586, %v2894
        %v2945 = vadd.f32 %v2587, %v2899
        %v2946 = vadd.f32 %v2588, %v2904
        %v2947 = vadd.f32 %v2589, %v2909
        %v2948 = vadd.f32 %v2590, %v2914
        %2949 = vst [vmem:[#allocation2] sm:$0xff] %v2917
        %2950 = vst [vmem:[#allocation2 + $0x8] sm:$0xff] %v2918
        %2951 = vst [vmem:[#allocation2 + $0x10] sm:$0xff] %v2919
        %2952 = vst [vmem:[#allocation2 + $0x18] sm:$0xff] %v2920
        %2953 = vst [vmem:[#allocation2 + $0x20] sm:$0xff] %v2921
        %2954 = vst [vmem:[#allocation2 + $0x28] sm:$0xff] %v2922
        %2955 = vst [vmem:[#allocation2 + $0x30] sm:$0xff] %v2923
        %2956 = vst [vmem:[#allocation2 + $0x38] sm:$0xff] %v2924
        %2957 = vst [vmem:[#allocation2 + $0x40] sm:$0xff] %v2925
        %2958 = vst [vmem:[#allocation2 + $0x48] sm:$0xff] %v2926
        %2959 = vst [vmem:[#allocation2 + $0x50] sm:$0xff] %v2927
        %2960 = vst [vmem:[#allocation2 + $0x58] sm:$0xff] %v2928
        %2961 = vst [vmem:[#allocation2 + $0x60] sm:$0xff] %v2929
        %2962 = vst [vmem:[#allocation2 + $0x68] sm:$0xff] %v2930
        %2963 = vst [vmem:[#allocation2 + $0x70] sm:$0xff] %v2931
        %2964 = vst [vmem:[#allocation2 + $0x78] sm:$0xff] %v2932
        %2965 = vst [vmem:[#allocation2 + $0x80] sm:$0xff] %v2933
        %2966 = vst [vmem:[#allocation2 + $0x88] sm:$0xff] %v2934
        %2967 = vst [vmem:[#allocation2 + $0x90] sm:$0xff] %v2935
        %2968 = vst [vmem:[#allocation2 + $0x98] sm:$0xff] %v2936
        %2969 = vst [vmem:[#allocation2 + $0xa0] sm:$0xff] %v2937
        %2970 = vst [vmem:[#allocation2 + $0xa8] sm:$0xff] %v2938
        %2971 = vst [vmem:[#allocation2 + $0xb0] sm:$0xff] %v2939
        %2972 = vst [vmem:[#allocation2 + $0xb8] sm:$0xff] %v2940
        %2973 = vst [vmem:[#allocation2 + $0xc0] sm:$0xff] %v2941
        %2974 = vst [vmem:[#allocation2 + $0xc8] sm:$0xff] %v2942
        %2975 = vst [vmem:[#allocation2 + $0xd0] sm:$0xff] %v2943
        %2976 = vst [vmem:[#allocation2 + $0xd8] sm:$0xff] %v2944
        %2977 = vst [vmem:[#allocation2 + $0xe0] sm:$0xff] %v2945
        %2978 = vst [vmem:[#allocation2 + $0xe8] sm:$0xff] %v2946
        %2979 = vst [vmem:[#allocation2 + $0xf0] sm:$0xff] %v2947
        %2980 = vst [vmem:[#allocation2 + $0xf8] sm:$0xff] %v2948
        %s2981 = scalar_lea.vmem %s222, 48
        %v2982 = vld [vmem:[%s2981] sm:$0xff]
        %v2983 = vld [vmem:[%s2981 + $0x8] sm:$0xff]
        %v2984 = vld [vmem:[%s2981 + $0x18] sm:$0xff]
        %v2985 = vld [vmem:[%s2981 + $0x20] sm:$0xff]
        %v2986 = vld [vmem:[%s2981 + $0x30] sm:$0xff]
        %v2987 = vld [vmem:[%s2981 + $0x38] sm:$0xff]
        %v2988 = vld [vmem:[%s2981 + $0x48] sm:$0xff]
        %v2989 = vld [vmem:[%s2981 + $0x50] sm:$0xff]
        %v2990 = vld [vmem:[%s2981 + $0x60] sm:$0xff]
        %v2991 = vld [vmem:[%s2981 + $0x68] sm:$0xff]
        %v2992 = vld [vmem:[%s2981 + $0x78] sm:$0xff]
        %v2993 = vld [vmem:[%s2981 + $0x80] sm:$0xff]
        %v2994 = vld [vmem:[%s2981 + $0x90] sm:$0xff]
        %v2995 = vld [vmem:[%s2981 + $0x98] sm:$0xff]
        %v2996 = vld [vmem:[%s2981 + $0xa8] sm:$0xff]
        %v2997 = vld [vmem:[%s2981 + $0xb0] sm:$0xff]
        %v2998 = vld [vmem:[%s2981 + $0xc0] sm:$0xff]
        %v2999 = vld [vmem:[%s2981 + $0xc8] sm:$0xff]
        %v3000 = vld [vmem:[%s2981 + $0xd8] sm:$0xff]
        %v3001 = vld [vmem:[%s2981 + $0xe0] sm:$0xff]
        %v3002 = vld [vmem:[%s2981 + $0xf0] sm:$0xff]
        %v3003 = vld [vmem:[%s2981 + $0xf8] sm:$0xff]
        %v3004 = vld [vmem:[%s2981 + $0x108] sm:$0xff]
        %v3005 = vld [vmem:[%s2981 + $0x110] sm:$0xff]
        %v3006 = vld [vmem:[%s2981 + $0x120] sm:$0xff]
        %v3007 = vld [vmem:[%s2981 + $0x128] sm:$0xff]
        %v3008 = vld [vmem:[%s2981 + $0x138] sm:$0xff]
        %v3009 = vld [vmem:[%s2981 + $0x140] sm:$0xff]
        %v3010 = vld [vmem:[%s2981 + $0x150] sm:$0xff]
        %v3011 = vld [vmem:[%s2981 + $0x158] sm:$0xff]
        %v3012 = vld [vmem:[%s2981 + $0x168] sm:$0xff]
        %v3013 = vld [vmem:[%s2981 + $0x170] sm:$0xff]
        %v3014 = vld [vmem:[#allocation2] sm:$0xff]
        %v3015 = vld [vmem:[#allocation2 + $0x8] sm:$0xff]
        %v3016 = vld [vmem:[#allocation2 + $0x10] sm:$0xff]
        %v3017 = vld [vmem:[#allocation2 + $0x18] sm:$0xff]
        %v3018 = vld [vmem:[#allocation2 + $0x20] sm:$0xff]
        %v3019 = vld [vmem:[#allocation2 + $0x28] sm:$0xff]
        %v3020 = vld [vmem:[#allocation2 + $0x30] sm:$0xff]
        %v3021 = vld [vmem:[#allocation2 + $0x38] sm:$0xff]
        %v3022 = vld [vmem:[#allocation2 + $0x40] sm:$0xff]
        %v3023 = vld [vmem:[#allocation2 + $0x48] sm:$0xff]
        %v3024 = vld [vmem:[#allocation2 + $0x50] sm:$0xff]
        %v3025 = vld [vmem:[#allocation2 + $0x58] sm:$0xff]
        %v3026 = vld [vmem:[#allocation2 + $0x60] sm:$0xff]
        %v3027 = vld [vmem:[#allocation2 + $0x68] sm:$0xff]
        %v3028 = vld [vmem:[#allocation2 + $0x70] sm:$0xff]
        %v3029 = vld [vmem:[#allocation2 + $0x78] sm:$0xff]
        %v3030 = vld [vmem:[#allocation2 + $0x80] sm:$0xff]
        %v3031 = vld [vmem:[#allocation2 + $0x88] sm:$0xff]
        %v3032 = vld [vmem:[#allocation2 + $0x90] sm:$0xff]
        %v3033 = vld [vmem:[#allocation2 + $0x98] sm:$0xff]
        %v3034 = vld [vmem:[#allocation2 + $0xa0] sm:$0xff]
        %v3035 = vld [vmem:[#allocation2 + $0xa8] sm:$0xff]
        %v3036 = vld [vmem:[#allocation2 + $0xb0] sm:$0xff]
        %v3037 = vld [vmem:[#allocation2 + $0xb8] sm:$0xff]
        %v3038 = vld [vmem:[#allocation2 + $0xc0] sm:$0xff]
        %v3039 = vld [vmem:[#allocation2 + $0xc8] sm:$0xff]
        %v3040 = vld [vmem:[#allocation2 + $0xd0] sm:$0xff]
        %v3041 = vld [vmem:[#allocation2 + $0xd8] sm:$0xff]
        %v3042 = vld [vmem:[#allocation2 + $0xe0] sm:$0xff]
        %v3043 = vld [vmem:[#allocation2 + $0xe8] sm:$0xff]
        %v3044 = vld [vmem:[#allocation2 + $0xf0] sm:$0xff]
        %v3045 = vld [vmem:[#allocation2 + $0xf8] sm:$0xff]
        %s3046 = scalar_lea.vmem %s1, 24
        %v3047 = vld [vmem:[%s3046] sm:$0xf]
        %v3049 = vsel %vm320, %v2982, 0
        %v3052 = vsel %vm320, %v2983, 0
        %v3055 = vsel %vm320, %v2984, 0
        %v3058 = vsel %vm320, %v2985, 0
        %v3061 = vsel %vm320, %v2986, 0
        %v3064 = vsel %vm320, %v2987, 0
        %v3067 = vsel %vm320, %v2988, 0
        %v3070 = vsel %vm320, %v2989, 0
        %v3073 = vsel %vm320, %v2990, 0
        %v3076 = vsel %vm320, %v2991, 0
        %v3079 = vsel %vm320, %v2992, 0
        %v3082 = vsel %vm320, %v2993, 0
        %v3085 = vsel %vm320, %v2994, 0
        %v3088 = vsel %vm320, %v2995, 0
        %v3091 = vsel %vm320, %v2996, 0
        %v3094 = vsel %vm320, %v2997, 0
        %v3097 = vsel %vm320, %v2998, 0
        %v3100 = vsel %vm320, %v2999, 0
        %v3103 = vsel %vm320, %v3000, 0
        %v3106 = vsel %vm320, %v3001, 0
        %v3109 = vsel %vm320, %v3002, 0
        %v3112 = vsel %vm320, %v3003, 0
        %v3115 = vsel %vm320, %v3004, 0
        %v3118 = vsel %vm320, %v3005, 0
        %v3121 = vsel %vm320, %v3006, 0
        %v3124 = vsel %vm320, %v3007, 0
        %v3127 = vsel %vm320, %v3008, 0
        %v3130 = vsel %vm320, %v3009, 0
        %v3133 = vsel %vm320, %v3010, 0
        %v3136 = vsel %vm320, %v3011, 0
        %v3139 = vsel %vm320, %v3012, 0
        %v3142 = vsel %vm320, %v3013, 0
        %v3145 = vsel %vm417, %v3047, 0
        %3147 = vmatprep.subr.mxu0 0.0
        %3148 = vmatpush1.msra.mxu0 %v3145
        %3149 = vmatprep.subr.mxu0 0.0
        %3150 = vmatpush1.msra.mxu0 0.0
        %3151 = vmatprep.subr.mxu0 0.0
        %3152 = vmatpush1.msra.mxu0 0.0
        %3153 = vmatprep.subr.mxu0 0.0
        %3154 = vmatpush1.msra.mxu0 0.0
        %3155 = vmatprep.subr.mxu0 0.0
        %3156 = vmatpush1.msra.mxu0 0.0
        %3157 = vmatprep.subr.mxu0 0.0
        %3158 = vmatpush1.msra.mxu0 0.0
        %3159 = vmatprep.subr.mxu0 0.0
        %3160 = vmatpush1.msra.mxu0 0.0
        %3161 = vmatprep.subr.mxu0 0.0
        %3162 = vmatpush1.msra.mxu0 0.0
        %3163 = vmatprep.subr.mxu0 0.0
        %3164 = vmatpush1.msra.mxu0 0.0
        %3165 = vmatprep.subr.mxu0 0.0
        %3166 = vmatpush1.msra.mxu0 0.0
        %3167 = vmatprep.subr.mxu0 0.0
        %3168 = vmatpush1.msra.mxu0 0.0
        %3169 = vmatprep.subr.mxu0 0.0
        %3170 = vmatpush1.msra.mxu0 0.0
        %3171 = vmatprep.subr.mxu0 0.0
        %3172 = vmatpush1.msra.mxu0 0.0
        %3173 = vmatprep.subr.mxu0 0.0
        %3174 = vmatpush1.msra.mxu0 0.0
        %3175 = vmatprep.subr.mxu0 0.0
        %3176 = vmatpush1.msra.mxu0 0.0
        %3177 = vmatprep.subr.mxu0 0.0
        %3178 = vmatpush1.msra.mxu0 0.0
        %3179 = vmatprep.subr.mxu0 0.0
        %3180 = vmatpush1.msra.mxu0 0.0
        %3181 = vmatprep.subr.mxu0 0.0
        %3182 = vmatpush1.msra.mxu0 0.0
        %3183 = vmatprep.subr.mxu0 0.0
        %3184 = vmatpush1.msra.mxu0 0.0
        %3185 = vmatprep.subr.mxu0 0.0
        %3186 = vmatpush1.msra.mxu0 0.0
        %3187 = vmatprep.subr.mxu0 0.0
        %3188 = vmatpush1.msra.mxu0 0.0
        %3189 = vmatprep.subr.mxu0 0.0
        %3190 = vmatpush1.msra.mxu0 0.0
        %3191 = vmatprep.subr.mxu0 0.0
        %3192 = vmatpush1.msra.mxu0 0.0
        %3193 = vmatprep.subr.mxu0 0.0
        %3194 = vmatpush1.msra.mxu0 0.0
        %3195 = vmatprep.subr.mxu0 0.0
        %3196 = vmatpush1.msra.mxu0 0.0
        %3197 = vmatprep.subr.mxu0 0.0
        %3198 = vmatpush1.msra.mxu0 0.0
        %3199 = vmatprep.subr.mxu0 0.0
        %3200 = vmatpush1.msra.mxu0 0.0
        %3201 = vmatprep.subr.mxu0 0.0
        %3202 = vmatpush1.msra.mxu0 0.0
        %3203 = vmatprep.subr.mxu0 0.0
        %3204 = vmatpush1.msra.mxu0 0.0
        %3205 = vmatprep.subr.mxu0 0.0
        %3206 = vmatpush1.msra.mxu0 0.0
        %3207 = vmatprep.subr.mxu0 0.0
        %3208 = vmatpush1.msra.mxu0 0.0
        %3209 = vmatprep.subr.mxu0 0.0
        %3210 = vmatpush1.msra.mxu0 0.0
        %3211 = vmatprep.mubr.f32.mxu0 0.0
        %3212 = vmatmul.mubr.f32.gmra.mrb[0].mxu0 %v3049
        %v3213 = vpop.f32.mrb[0].mxu0
        %v3214 = vadd.f32 0.0, %v3213
        %v3215 = vpop.f32.mrb[0].mxu0
        %3216 = vmatprep.mubr.f32.mxu0 0.0
        %3217 = vmatmul.mubr.f32.gmra.mrb[0].mxu0 %v3052
        %v3218 = vpop.f32.mrb[0].mxu0
        %v3219 = vadd.f32 0.0, %v3218
        %v3220 = vpop.f32.mrb[0].mxu0
        %3221 = vmatprep.mubr.f32.mxu0 0.0
        %3222 = vmatmul.mubr.f32.gmra.mrb[0].mxu0 %v3055
        %v3223 = vpop.f32.mrb[0].mxu0
        %v3224 = vadd.f32 0.0, %v3223
        %v3225 = vpop.f32.mrb[0].mxu0
        %3226 = vmatprep.mubr.f32.mxu0 0.0
        %3227 = vmatmul.mubr.f32.gmra.mrb[0].mxu0 %v3058
        %v3228 = vpop.f32.mrb[0].mxu0
        %v3229 = vadd.f32 0.0, %v3228
        %v3230 = vpop.f32.mrb[0].mxu0
        %3231 = vmatprep.mubr.f32.mxu0 0.0
        %3232 = vmatmul.mubr.f32.gmra.mrb[0].mxu0 %v3061
        %v3233 = vpop.f32.mrb[0].mxu0
        %v3234 = vadd.f32 0.0, %v3233
        %v3235 = vpop.f32.mrb[0].mxu0
        %3236 = vmatprep.mubr.f32.mxu0 0.0
        %3237 = vmatmul.mubr.f32.gmra.mrb[0].mxu0 %v3064
        %v3238 = vpop.f32.mrb[0].mxu0
        %v3239 = vadd.f32 0.0, %v3238
        %v3240 = vpop.f32.mrb[0].mxu0
        %3241 = vmatprep.mubr.f32.mxu0 0.0
        %3242 = vmatmul.mubr.f32.gmra.mrb[0].mxu0 %v3067
        %v3243 = vpop.f32.mrb[0].mxu0
        %v3244 = vadd.f32 0.0, %v3243
        %v3245 = vpop.f32.mrb[0].mxu0
        %3246 = vmatprep.mubr.f32.mxu0 0.0
        %3247 = vmatmul.mubr.f32.gmra.mrb[0].mxu0 %v3070
        %v3248 = vpop.f32.mrb[0].mxu0
        %v3249 = vadd.f32 0.0, %v3248
        %v3250 = vpop.f32.mrb[0].mxu0
        %3251 = vmatprep.mubr.f32.mxu0 0.0
        %3252 = vmatmul.mubr.f32.gmra.mrb[0].mxu0 %v3073
        %v3253 = vpop.f32.mrb[0].mxu0
        %v3254 = vadd.f32 0.0, %v3253
        %v3255 = vpop.f32.mrb[0].mxu0
        %3256 = vmatprep.mubr.f32.mxu0 0.0
        %3257 = vmatmul.mubr.f32.gmra.mrb[0].mxu0 %v3076
        %v3258 = vpop.f32.mrb[0].mxu0
        %v3259 = vadd.f32 0.0, %v3258
        %v3260 = vpop.f32.mrb[0].mxu0
        %3261 = vmatprep.mubr.f32.mxu0 0.0
        %3262 = vmatmul.mubr.f32.gmra.mrb[0].mxu0 %v3079
        %v3263 = vpop.f32.mrb[0].mxu0
        %v3264 = vadd.f32 0.0, %v3263
        %v3265 = vpop.f32.mrb[0].mxu0
        %3266 = vmatprep.mubr.f32.mxu0 0.0
        %3267 = vmatmul.mubr.f32.gmra.mrb[0].mxu0 %v3082
        %v3268 = vpop.f32.mrb[0].mxu0
        %v3269 = vadd.f32 0.0, %v3268
        %v3270 = vpop.f32.mrb[0].mxu0
        %3271 = vmatprep.mubr.f32.mxu0 0.0
        %3272 = vmatmul.mubr.f32.gmra.mrb[0].mxu0 %v3085
        %v3273 = vpop.f32.mrb[0].mxu0
        %v3274 = vadd.f32 0.0, %v3273
        %v3275 = vpop.f32.mrb[0].mxu0
        %3276 = vmatprep.mubr.f32.mxu0 0.0
        %3277 = vmatmul.mubr.f32.gmra.mrb[0].mxu0 %v3088
        %v3278 = vpop.f32.mrb[0].mxu0
        %v3279 = vadd.f32 0.0, %v3278
        %v3280 = vpop.f32.mrb[0].mxu0
        %3281 = vmatprep.mubr.f32.mxu0 0.0
        %3282 = vmatmul.mubr.f32.gmra.mrb[0].mxu0 %v3091
        %v3283 = vpop.f32.mrb[0].mxu0
        %v3284 = vadd.f32 0.0, %v3283
        %v3285 = vpop.f32.mrb[0].mxu0
        %3286 = vmatprep.mubr.f32.mxu0 0.0
        %3287 = vmatmul.mubr.f32.gmra.mrb[0].mxu0 %v3094
        %v3288 = vpop.f32.mrb[0].mxu0
        %v3289 = vadd.f32 0.0, %v3288
        %v3290 = vpop.f32.mrb[0].mxu0
        %3291 = vmatprep.mubr.f32.mxu0 0.0
        %3292 = vmatmul.mubr.f32.gmra.mrb[0].mxu0 %v3097
        %v3293 = vpop.f32.mrb[0].mxu0
        %v3294 = vadd.f32 0.0, %v3293
        %v3295 = vpop.f32.mrb[0].mxu0
        %3296 = vmatprep.mubr.f32.mxu0 0.0
        %3297 = vmatmul.mubr.f32.gmra.mrb[0].mxu0 %v3100
        %v3298 = vpop.f32.mrb[0].mxu0
        %v3299 = vadd.f32 0.0, %v3298
        %v3300 = vpop.f32.mrb[0].mxu0
        %3301 = vmatprep.mubr.f32.mxu0 0.0
        %3302 = vmatmul.mubr.f32.gmra.mrb[0].mxu0 %v3103
        %v3303 = vpop.f32.mrb[0].mxu0
        %v3304 = vadd.f32 0.0, %v3303
        %v3305 = vpop.f32.mrb[0].mxu0
        %3306 = vmatprep.mubr.f32.mxu0 0.0
        %3307 = vmatmul.mubr.f32.gmra.mrb[0].mxu0 %v3106
        %v3308 = vpop.f32.mrb[0].mxu0
        %v3309 = vadd.f32 0.0, %v3308
        %v3310 = vpop.f32.mrb[0].mxu0
        %3311 = vmatprep.mubr.f32.mxu0 0.0
        %3312 = vmatmul.mubr.f32.gmra.mrb[0].mxu0 %v3109
        %v3313 = vpop.f32.mrb[0].mxu0
        %v3314 = vadd.f32 0.0, %v3313
        %v3315 = vpop.f32.mrb[0].mxu0
        %3316 = vmatprep.mubr.f32.mxu0 0.0
        %3317 = vmatmul.mubr.f32.gmra.mrb[0].mxu0 %v3112
        %v3318 = vpop.f32.mrb[0].mxu0
        %v3319 = vadd.f32 0.0, %v3318
        %v3320 = vpop.f32.mrb[0].mxu0
        %3321 = vmatprep.mubr.f32.mxu0 0.0
        %3322 = vmatmul.mubr.f32.gmra.mrb[0].mxu0 %v3115
        %v3323 = vpop.f32.mrb[0].mxu0
        %v3324 = vadd.f32 0.0, %v3323
        %v3325 = vpop.f32.mrb[0].mxu0
        %3326 = vmatprep.mubr.f32.mxu0 0.0
        %3327 = vmatmul.mubr.f32.gmra.mrb[0].mxu0 %v3118
        %v3328 = vpop.f32.mrb[0].mxu0
        %v3329 = vadd.f32 0.0, %v3328
        %v3330 = vpop.f32.mrb[0].mxu0
        %3331 = vmatprep.mubr.f32.mxu0 0.0
        %3332 = vmatmul.mubr.f32.gmra.mrb[0].mxu0 %v3121
        %v3333 = vpop.f32.mrb[0].mxu0
        %v3334 = vadd.f32 0.0, %v3333
        %v3335 = vpop.f32.mrb[0].mxu0
        %3336 = vmatprep.mubr.f32.mxu0 0.0
        %3337 = vmatmul.mubr.f32.gmra.mrb[0].mxu0 %v3124
        %v3338 = vpop.f32.mrb[0].mxu0
        %v3339 = vadd.f32 0.0, %v3338
        %v3340 = vpop.f32.mrb[0].mxu0
        %3341 = vmatprep.mubr.f32.mxu0 0.0
        %3342 = vmatmul.mubr.f32.gmra.mrb[0].mxu0 %v3127
        %v3343 = vpop.f32.mrb[0].mxu0
        %v3344 = vadd.f32 0.0, %v3343
        %v3345 = vpop.f32.mrb[0].mxu0
        %3346 = vmatprep.mubr.f32.mxu0 0.0
        %3347 = vmatmul.mubr.f32.gmra.mrb[0].mxu0 %v3130
        %v3348 = vpop.f32.mrb[0].mxu0
        %v3349 = vadd.f32 0.0, %v3348
        %v3350 = vpop.f32.mrb[0].mxu0
        %3351 = vmatprep.mubr.f32.mxu0 0.0
        %3352 = vmatmul.mubr.f32.gmra.mrb[0].mxu0 %v3133
        %v3353 = vpop.f32.mrb[0].mxu0
        %v3354 = vadd.f32 0.0, %v3353
        %v3355 = vpop.f32.mrb[0].mxu0
        %3356 = vmatprep.mubr.f32.mxu0 0.0
        %3357 = vmatmul.mubr.f32.gmra.mrb[0].mxu0 %v3136
        %v3358 = vpop.f32.mrb[0].mxu0
        %v3359 = vadd.f32 0.0, %v3358
        %v3360 = vpop.f32.mrb[0].mxu0
        %3361 = vmatprep.mubr.f32.mxu0 0.0
        %3362 = vmatmul.mubr.f32.gmra.mrb[0].mxu0 %v3139
        %v3363 = vpop.f32.mrb[0].mxu0
        %v3364 = vadd.f32 0.0, %v3363
        %v3365 = vpop.f32.mrb[0].mxu0
        %3366 = vmatprep.mubr.f32.mxu0 0.0
        %3367 = vmatmul.mubr.f32.gmra.mrb[0].mxu0 %v3142
        %v3368 = vpop.f32.mrb[0].mxu0
        %v3369 = vadd.f32 0.0, %v3368
        %v3370 = vpop.f32.mrb[0].mxu0
        %3371 = vdwg.mxu0
        %v3372 = vadd.f32 %v3014, %v3214
        %v3373 = vadd.f32 %v3015, %v3219
        %v3374 = vadd.f32 %v3016, %v3224
        %v3375 = vadd.f32 %v3017, %v3229
        %v3376 = vadd.f32 %v3018, %v3234
        %v3377 = vadd.f32 %v3019, %v3239
        %v3378 = vadd.f32 %v3020, %v3244
        %v3379 = vadd.f32 %v3021, %v3249
        %v3380 = vadd.f32 %v3022, %v3254
        %v3381 = vadd.f32 %v3023, %v3259
        %v3382 = vadd.f32 %v3024, %v3264
        %v3383 = vadd.f32 %v3025, %v3269
        %v3384 = vadd.f32 %v3026, %v3274
        %v3385 = vadd.f32 %v3027, %v3279
        %v3386 = vadd.f32 %v3028, %v3284
        %v3387 = vadd.f32 %v3029, %v3289
        %v3388 = vadd.f32 %v3030, %v3294
        %v3389 = vadd.f32 %v3031, %v3299
        %v3390 = vadd.f32 %v3032, %v3304
        %v3391 = vadd.f32 %v3033, %v3309
        %v3392 = vadd.f32 %v3034, %v3314
        %v3393 = vadd.f32 %v3035, %v3319
        %v3394 = vadd.f32 %v3036, %v3324
        %v3395 = vadd.f32 %v3037, %v3329
        %v3396 = vadd.f32 %v3038, %v3334
        %v3397 = vadd.f32 %v3039, %v3339
        %v3398 = vadd.f32 %v3040, %v3344
        %v3399 = vadd.f32 %v3041, %v3349
        %v3400 = vadd.f32 %v3042, %v3354
        %v3401 = vadd.f32 %v3043, %v3359
        %v3402 = vadd.f32 %v3044, %v3364
        %v3403 = vadd.f32 %v3045, %v3369
        %3404 = vst [vmem:[#allocation2] sm:$0xff] %v3372
        %3405 = vst [vmem:[#allocation2 + $0x8] sm:$0xff] %v3373
        %3406 = vst [vmem:[#allocation2 + $0x10] sm:$0xff] %v3374
        %3407 = vst [vmem:[#allocation2 + $0x18] sm:$0xff] %v3375
        %3408 = vst [vmem:[#allocation2 + $0x20] sm:$0xff] %v3376
        %3409 = vst [vmem:[#allocation2 + $0x28] sm:$0xff] %v3377
        %3410 = vst [vmem:[#allocation2 + $0x30] sm:$0xff] %v3378
        %3411 = vst [vmem:[#allocation2 + $0x38] sm:$0xff] %v3379
        %3412 = vst [vmem:[#allocation2 + $0x40] sm:$0xff] %v3380
        %3413 = vst [vmem:[#allocation2 + $0x48] sm:$0xff] %v3381
        %3414 = vst [vmem:[#allocation2 + $0x50] sm:$0xff] %v3382
        %3415 = vst [vmem:[#allocation2 + $0x58] sm:$0xff] %v3383
        %3416 = vst [vmem:[#allocation2 + $0x60] sm:$0xff] %v3384
        %3417 = vst [vmem:[#allocation2 + $0x68] sm:$0xff] %v3385
        %3418 = vst [vmem:[#allocation2 + $0x70] sm:$0xff] %v3386
        %3419 = vst [vmem:[#allocation2 + $0x78] sm:$0xff] %v3387
        %3420 = vst [vmem:[#allocation2 + $0x80] sm:$0xff] %v3388
        %3421 = vst [vmem:[#allocation2 + $0x88] sm:$0xff] %v3389
        %3422 = vst [vmem:[#allocation2 + $0x90] sm:$0xff] %v3390
        %3423 = vst [vmem:[#allocation2 + $0x98] sm:$0xff] %v3391
        %3424 = vst [vmem:[#allocation2 + $0xa0] sm:$0xff] %v3392
        %3425 = vst [vmem:[#allocation2 + $0xa8] sm:$0xff] %v3393
        %3426 = vst [vmem:[#allocation2 + $0xb0] sm:$0xff] %v3394
        %3427 = vst [vmem:[#allocation2 + $0xb8] sm:$0xff] %v3395
        %3428 = vst [vmem:[#allocation2 + $0xc0] sm:$0xff] %v3396
        %3429 = vst [vmem:[#allocation2 + $0xc8] sm:$0xff] %v3397
        %3430 = vst [vmem:[#allocation2 + $0xd0] sm:$0xff] %v3398
        %3431 = vst [vmem:[#allocation2 + $0xd8] sm:$0xff] %v3399
        %3432 = vst [vmem:[#allocation2 + $0xe0] sm:$0xff] %v3400
        %3433 = vst [vmem:[#allocation2 + $0xe8] sm:$0xff] %v3401
        %3434 = vst [vmem:[#allocation2 + $0xf0] sm:$0xff] %v3402
        %3435 = vst [vmem:[#allocation2 + $0xf8] sm:$0xff] %v3403
        %v3436 = vld [vmem:[%s2981 + $0x1] sm:$0xff]
        %v3437 = vld [vmem:[%s2981 + $0x9] sm:$0xff]
        %v3438 = vld [vmem:[%s2981 + $0x19] sm:$0xff]
        %v3439 = vld [vmem:[%s2981 + $0x21] sm:$0xff]
        %v3440 = vld [vmem:[%s2981 + $0x31] sm:$0xff]
        %v3441 = vld [vmem:[%s2981 + $0x39] sm:$0xff]
        %v3442 = vld [vmem:[%s2981 + $0x49] sm:$0xff]
        %v3443 = vld [vmem:[%s2981 + $0x51] sm:$0xff]
        %v3444 = vld [vmem:[%s2981 + $0x61] sm:$0xff]
        %v3445 = vld [vmem:[%s2981 + $0x69] sm:$0xff]
        %v3446 = vld [vmem:[%s2981 + $0x79] sm:$0xff]
        %v3447 = vld [vmem:[%s2981 + $0x81] sm:$0xff]
        %v3448 = vld [vmem:[%s2981 + $0x91] sm:$0xff]
        %v3449 = vld [vmem:[%s2981 + $0x99] sm:$0xff]
        %v3450 = vld [vmem:[%s2981 + $0xa9] sm:$0xff]
        %v3451 = vld [vmem:[%s2981 + $0xb1] sm:$0xff]
        %v3452 = vld [vmem:[%s2981 + $0xc1] sm:$0xff]
        %v3453 = vld [vmem:[%s2981 + $0xc9] sm:$0xff]
        %v3454 = vld [vmem:[%s2981 + $0xd9] sm:$0xff]
        %v3455 = vld [vmem:[%s2981 + $0xe1] sm:$0xff]
        %v3456 = vld [vmem:[%s2981 + $0xf1] sm:$0xff]
        %v3457 = vld [vmem:[%s2981 + $0xf9] sm:$0xff]
        %v3458 = vld [vmem:[%s2981 + $0x109] sm:$0xff]
        %v3459 = vld [vmem:[%s2981 + $0x111] sm:$0xff]
        %v3460 = vld [vmem:[%s2981 + $0x121] sm:$0xff]
        %v3461 = vld [vmem:[%s2981 + $0x129] sm:$0xff]
        %v3462 = vld [vmem:[%s2981 + $0x139] sm:$0xff]
        %v3463 = vld [vmem:[%s2981 + $0x141] sm:$0xff]
        %v3464 = vld [vmem:[%s2981 + $0x151] sm:$0xff]
        %v3465 = vld [vmem:[%s2981 + $0x159] sm:$0xff]
        %v3466 = vld [vmem:[%s2981 + $0x169] sm:$0xff]
        %v3467 = vld [vmem:[%s2981 + $0x171] sm:$0xff]
        %v3468 = vld [vmem:[#allocation2] sm:$0xff]
        %v3469 = vld [vmem:[#allocation2 + $0x8] sm:$0xff]
        %v3470 = vld [vmem:[#allocation2 + $0x10] sm:$0xff]
        %v3471 = vld [vmem:[#allocation2 + $0x18] sm:$0xff]
        %v3472 = vld [vmem:[#allocation2 + $0x20] sm:$0xff]
        %v3473 = vld [vmem:[#allocation2 + $0x28] sm:$0xff]
        %v3474 = vld [vmem:[#allocation2 + $0x30] sm:$0xff]
        %v3475 = vld [vmem:[#allocation2 + $0x38] sm:$0xff]
        %v3476 = vld [vmem:[#allocation2 + $0x40] sm:$0xff]
        %v3477 = vld [vmem:[#allocation2 + $0x48] sm:$0xff]
        %v3478 = vld [vmem:[#allocation2 + $0x50] sm:$0xff]
        %v3479 = vld [vmem:[#allocation2 + $0x58] sm:$0xff]
        %v3480 = vld [vmem:[#allocation2 + $0x60] sm:$0xff]
        %v3481 = vld [vmem:[#allocation2 + $0x68] sm:$0xff]
        %v3482 = vld [vmem:[#allocation2 + $0x70] sm:$0xff]
        %v3483 = vld [vmem:[#allocation2 + $0x78] sm:$0xff]
        %v3484 = vld [vmem:[#allocation2 + $0x80] sm:$0xff]
        %v3485 = vld [vmem:[#allocation2 + $0x88] sm:$0xff]
        %v3486 = vld [vmem:[#allocation2 + $0x90] sm:$0xff]
        %v3487 = vld [vmem:[#allocation2 + $0x98] sm:$0xff]
        %v3488 = vld [vmem:[#allocation2 + $0xa0] sm:$0xff]
        %v3489 = vld [vmem:[#allocation2 + $0xa8] sm:$0xff]
        %v3490 = vld [vmem:[#allocation2 + $0xb0] sm:$0xff]
        %v3491 = vld [vmem:[#allocation2 + $0xb8] sm:$0xff]
        %v3492 = vld [vmem:[#allocation2 + $0xc0] sm:$0xff]
        %v3493 = vld [vmem:[#allocation2 + $0xc8] sm:$0xff]
        %v3494 = vld [vmem:[#allocation2 + $0xd0] sm:$0xff]
        %v3495 = vld [vmem:[#allocation2 + $0xd8] sm:$0xff]
        %v3496 = vld [vmem:[#allocation2 + $0xe0] sm:$0xff]
        %v3497 = vld [vmem:[#allocation2 + $0xe8] sm:$0xff]
        %v3498 = vld [vmem:[#allocation2 + $0xf0] sm:$0xff]
        %v3499 = vld [vmem:[#allocation2 + $0xf8] sm:$0xff]
        %s3500 = scalar_lea.vmem %s1, 28
        %v3501 = vld [vmem:[%s3500] sm:$0xf]
        %v3503 = vsel %vm320, %v3436, 0
        %v3506 = vsel %vm320, %v3437, 0
        %v3509 = vsel %vm320, %v3438, 0
        %v3512 = vsel %vm320, %v3439, 0
        %v3515 = vsel %vm320, %v3440, 0
        %v3518 = vsel %vm320, %v3441, 0
        %v3521 = vsel %vm320, %v3442, 0
        %v3524 = vsel %vm320, %v3443, 0
        %v3527 = vsel %vm320, %v3444, 0
        %v3530 = vsel %vm320, %v3445, 0
        %v3533 = vsel %vm320, %v3446, 0
        %v3536 = vsel %vm320, %v3447, 0
        %v3539 = vsel %vm320, %v3448, 0
        %v3542 = vsel %vm320, %v3449, 0
        %v3545 = vsel %vm320, %v3450, 0
        %v3548 = vsel %vm320, %v3451, 0
        %v3551 = vsel %vm320, %v3452, 0
        %v3554 = vsel %vm320, %v3453, 0
        %v3557 = vsel %vm320, %v3454, 0
        %v3560 = vsel %vm320, %v3455, 0
        %v3563 = vsel %vm320, %v3456, 0
        %v3566 = vsel %vm320, %v3457, 0
        %v3569 = vsel %vm320, %v3458, 0
        %v3572 = vsel %vm320, %v3459, 0
        %v3575 = vsel %vm320, %v3460, 0
        %v3578 = vsel %vm320, %v3461, 0
        %v3581 = vsel %vm320, %v3462, 0
        %v3584 = vsel %vm320, %v3463, 0
        %v3587 = vsel %vm320, %v3464, 0
        %v3590 = vsel %vm320, %v3465, 0
        %v3593 = vsel %vm320, %v3466, 0
        %v3596 = vsel %vm320, %v3467, 0
        %v3599 = vsel %vm417, %v3501, 0
        %3601 = vmatprep.subr.mxu0 0.0
        %3602 = vmatpush1.msra.mxu0 %v3599
        %3603 = vmatprep.subr.mxu0 0.0
        %3604 = vmatpush1.msra.mxu0 0.0
        %3605 = vmatprep.subr.mxu0 0.0
        %3606 = vmatpush1.msra.mxu0 0.0
        %3607 = vmatprep.subr.mxu0 0.0
        %3608 = vmatpush1.msra.mxu0 0.0
        %3609 = vmatprep.subr.mxu0 0.0
        %3610 = vmatpush1.msra.mxu0 0.0
        %3611 = vmatprep.subr.mxu0 0.0
        %3612 = vmatpush1.msra.mxu0 0.0
        %3613 = vmatprep.subr.mxu0 0.0
        %3614 = vmatpush1.msra.mxu0 0.0
        %3615 = vmatprep.subr.mxu0 0.0
        %3616 = vmatpush1.msra.mxu0 0.0
        %3617 = vmatprep.subr.mxu0 0.0
        %3618 = vmatpush1.msra.mxu0 0.0
        %3619 = vmatprep.subr.mxu0 0.0
        %3620 = vmatpush1.msra.mxu0 0.0
        %3621 = vmatprep.subr.mxu0 0.0
        %3622 = vmatpush1.msra.mxu0 0.0
        %3623 = vmatprep.subr.mxu0 0.0
        %3624 = vmatpush1.msra.mxu0 0.0
        %3625 = vmatprep.subr.mxu0 0.0
        %3626 = vmatpush1.msra.mxu0 0.0
        %3627 = vmatprep.subr.mxu0 0.0
        %3628 = vmatpush1.msra.mxu0 0.0
        %3629 = vmatprep.subr.mxu0 0.0
        %3630 = vmatpush1.msra.mxu0 0.0
        %3631 = vmatprep.subr.mxu0 0.0
        %3632 = vmatpush1.msra.mxu0 0.0
        %3633 = vmatprep.subr.mxu0 0.0
        %3634 = vmatpush1.msra.mxu0 0.0
        %3635 = vmatprep.subr.mxu0 0.0
        %3636 = vmatpush1.msra.mxu0 0.0
        %3637 = vmatprep.subr.mxu0 0.0
        %3638 = vmatpush1.msra.mxu0 0.0
        %3639 = vmatprep.subr.mxu0 0.0
        %3640 = vmatpush1.msra.mxu0 0.0
        %3641 = vmatprep.subr.mxu0 0.0
        %3642 = vmatpush1.msra.mxu0 0.0
        %3643 = vmatprep.subr.mxu0 0.0
        %3644 = vmatpush1.msra.mxu0 0.0
        %3645 = vmatprep.subr.mxu0 0.0
        %3646 = vmatpush1.msra.mxu0 0.0
        %3647 = vmatprep.subr.mxu0 0.0
        %3648 = vmatpush1.msra.mxu0 0.0
        %3649 = vmatprep.subr.mxu0 0.0
        %3650 = vmatpush1.msra.mxu0 0.0
        %3651 = vmatprep.subr.mxu0 0.0
        %3652 = vmatpush1.msra.mxu0 0.0
        %3653 = vmatprep.subr.mxu0 0.0
        %3654 = vmatpush1.msra.mxu0 0.0
        %3655 = vmatprep.subr.mxu0 0.0
        %3656 = vmatpush1.msra.mxu0 0.0
        %3657 = vmatprep.subr.mxu0 0.0
        %3658 = vmatpush1.msra.mxu0 0.0
        %3659 = vmatprep.subr.mxu0 0.0
        %3660 = vmatpush1.msra.mxu0 0.0
        %3661 = vmatprep.subr.mxu0 0.0
        %3662 = vmatpush1.msra.mxu0 0.0
        %3663 = vmatprep.subr.mxu0 0.0
        %3664 = vmatpush1.msra.mxu0 0.0
        %3665 = vmatprep.mubr.f32.mxu0 0.0
        %3666 = vmatmul.mubr.f32.gmra.mrb[0].mxu0 %v3503
        %v3667 = vpop.f32.mrb[0].mxu0
        %v3668 = vadd.f32 0.0, %v3667
        %v3669 = vpop.f32.mrb[0].mxu0
        %3670 = vmatprep.mubr.f32.mxu0 0.0
        %3671 = vmatmul.mubr.f32.gmra.mrb[0].mxu0 %v3506
        %v3672 = vpop.f32.mrb[0].mxu0
        %v3673 = vadd.f32 0.0, %v3672
        %v3674 = vpop.f32.mrb[0].mxu0
        %3675 = vmatprep.mubr.f32.mxu0 0.0
        %3676 = vmatmul.mubr.f32.gmra.mrb[0].mxu0 %v3509
        %v3677 = vpop.f32.mrb[0].mxu0
        %v3678 = vadd.f32 0.0, %v3677
        %v3679 = vpop.f32.mrb[0].mxu0
        %3680 = vmatprep.mubr.f32.mxu0 0.0
        %3681 = vmatmul.mubr.f32.gmra.mrb[0].mxu0 %v3512
        %v3682 = vpop.f32.mrb[0].mxu0
        %v3683 = vadd.f32 0.0, %v3682
        %v3684 = vpop.f32.mrb[0].mxu0
        %3685 = vmatprep.mubr.f32.mxu0 0.0
        %3686 = vmatmul.mubr.f32.gmra.mrb[0].mxu0 %v3515
        %v3687 = vpop.f32.mrb[0].mxu0
        %v3688 = vadd.f32 0.0, %v3687
        %v3689 = vpop.f32.mrb[0].mxu0
        %3690 = vmatprep.mubr.f32.mxu0 0.0
        %3691 = vmatmul.mubr.f32.gmra.mrb[0].mxu0 %v3518
        %v3692 = vpop.f32.mrb[0].mxu0
        %v3693 = vadd.f32 0.0, %v3692
        %v3694 = vpop.f32.mrb[0].mxu0
        %3695 = vmatprep.mubr.f32.mxu0 0.0
        %3696 = vmatmul.mubr.f32.gmra.mrb[0].mxu0 %v3521
        %v3697 = vpop.f32.mrb[0].mxu0
        %v3698 = vadd.f32 0.0, %v3697
        %v3699 = vpop.f32.mrb[0].mxu0
        %3700 = vmatprep.mubr.f32.mxu0 0.0
        %3701 = vmatmul.mubr.f32.gmra.mrb[0].mxu0 %v3524
        %v3702 = vpop.f32.mrb[0].mxu0
        %v3703 = vadd.f32 0.0, %v3702
        %v3704 = vpop.f32.mrb[0].mxu0
        %3705 = vmatprep.mubr.f32.mxu0 0.0
        %3706 = vmatmul.mubr.f32.gmra.mrb[0].mxu0 %v3527
        %v3707 = vpop.f32.mrb[0].mxu0
        %v3708 = vadd.f32 0.0, %v3707
        %v3709 = vpop.f32.mrb[0].mxu0
        %3710 = vmatprep.mubr.f32.mxu0 0.0
        %3711 = vmatmul.mubr.f32.gmra.mrb[0].mxu0 %v3530
        %v3712 = vpop.f32.mrb[0].mxu0
        %v3713 = vadd.f32 0.0, %v3712
        %v3714 = vpop.f32.mrb[0].mxu0
        %3715 = vmatprep.mubr.f32.mxu0 0.0
        %3716 = vmatmul.mubr.f32.gmra.mrb[0].mxu0 %v3533
        %v3717 = vpop.f32.mrb[0].mxu0
        %v3718 = vadd.f32 0.0, %v3717
        %v3719 = vpop.f32.mrb[0].mxu0
        %3720 = vmatprep.mubr.f32.mxu0 0.0
        %3721 = vmatmul.mubr.f32.gmra.mrb[0].mxu0 %v3536
        %v3722 = vpop.f32.mrb[0].mxu0
        %v3723 = vadd.f32 0.0, %v3722
        %v3724 = vpop.f32.mrb[0].mxu0
        %3725 = vmatprep.mubr.f32.mxu0 0.0
        %3726 = vmatmul.mubr.f32.gmra.mrb[0].mxu0 %v3539
        %v3727 = vpop.f32.mrb[0].mxu0
        %v3728 = vadd.f32 0.0, %v3727
        %v3729 = vpop.f32.mrb[0].mxu0
        %3730 = vmatprep.mubr.f32.mxu0 0.0
        %3731 = vmatmul.mubr.f32.gmra.mrb[0].mxu0 %v3542
        %v3732 = vpop.f32.mrb[0].mxu0
        %v3733 = vadd.f32 0.0, %v3732
        %v3734 = vpop.f32.mrb[0].mxu0
        %3735 = vmatprep.mubr.f32.mxu0 0.0
        %3736 = vmatmul.mubr.f32.gmra.mrb[0].mxu0 %v3545
        %v3737 = vpop.f32.mrb[0].mxu0
        %v3738 = vadd.f32 0.0, %v3737
        %v3739 = vpop.f32.mrb[0].mxu0
        %3740 = vmatprep.mubr.f32.mxu0 0.0
        %3741 = vmatmul.mubr.f32.gmra.mrb[0].mxu0 %v3548
        %v3742 = vpop.f32.mrb[0].mxu0
        %v3743 = vadd.f32 0.0, %v3742
        %v3744 = vpop.f32.mrb[0].mxu0
        %3745 = vmatprep.mubr.f32.mxu0 0.0
        %3746 = vmatmul.mubr.f32.gmra.mrb[0].mxu0 %v3551
        %v3747 = vpop.f32.mrb[0].mxu0
        %v3748 = vadd.f32 0.0, %v3747
        %v3749 = vpop.f32.mrb[0].mxu0
        %3750 = vmatprep.mubr.f32.mxu0 0.0
        %3751 = vmatmul.mubr.f32.gmra.mrb[0].mxu0 %v3554
        %v3752 = vpop.f32.mrb[0].mxu0
        %v3753 = vadd.f32 0.0, %v3752
        %v3754 = vpop.f32.mrb[0].mxu0
        %3755 = vmatprep.mubr.f32.mxu0 0.0
        %3756 = vmatmul.mubr.f32.gmra.mrb[0].mxu0 %v3557
        %v3757 = vpop.f32.mrb[0].mxu0
        %v3758 = vadd.f32 0.0, %v3757
        %v3759 = vpop.f32.mrb[0].mxu0
        %3760 = vmatprep.mubr.f32.mxu0 0.0
        %3761 = vmatmul.mubr.f32.gmra.mrb[0].mxu0 %v3560
        %v3762 = vpop.f32.mrb[0].mxu0
        %v3763 = vadd.f32 0.0, %v3762
        %v3764 = vpop.f32.mrb[0].mxu0
        %3765 = vmatprep.mubr.f32.mxu0 0.0
        %3766 = vmatmul.mubr.f32.gmra.mrb[0].mxu0 %v3563
        %v3767 = vpop.f32.mrb[0].mxu0
        %v3768 = vadd.f32 0.0, %v3767
        %v3769 = vpop.f32.mrb[0].mxu0
        %3770 = vmatprep.mubr.f32.mxu0 0.0
        %3771 = vmatmul.mubr.f32.gmra.mrb[0].mxu0 %v3566
        %v3772 = vpop.f32.mrb[0].mxu0
        %v3773 = vadd.f32 0.0, %v3772
        %v3774 = vpop.f32.mrb[0].mxu0
        %3775 = vmatprep.mubr.f32.mxu0 0.0
        %3776 = vmatmul.mubr.f32.gmra.mrb[0].mxu0 %v3569
        %v3777 = vpop.f32.mrb[0].mxu0
        %v3778 = vadd.f32 0.0, %v3777
        %v3779 = vpop.f32.mrb[0].mxu0
        %3780 = vmatprep.mubr.f32.mxu0 0.0
        %3781 = vmatmul.mubr.f32.gmra.mrb[0].mxu0 %v3572
        %v3782 = vpop.f32.mrb[0].mxu0
        %v3783 = vadd.f32 0.0, %v3782
        %v3784 = vpop.f32.mrb[0].mxu0
        %3785 = vmatprep.mubr.f32.mxu0 0.0
        %3786 = vmatmul.mubr.f32.gmra.mrb[0].mxu0 %v3575
        %v3787 = vpop.f32.mrb[0].mxu0
        %v3788 = vadd.f32 0.0, %v3787
        %v3789 = vpop.f32.mrb[0].mxu0
        %3790 = vmatprep.mubr.f32.mxu0 0.0
        %3791 = vmatmul.mubr.f32.gmra.mrb[0].mxu0 %v3578
        %v3792 = vpop.f32.mrb[0].mxu0
        %v3793 = vadd.f32 0.0, %v3792
        %v3794 = vpop.f32.mrb[0].mxu0
        %3795 = vmatprep.mubr.f32.mxu0 0.0
        %3796 = vmatmul.mubr.f32.gmra.mrb[0].mxu0 %v3581
        %v3797 = vpop.f32.mrb[0].mxu0
        %v3798 = vadd.f32 0.0, %v3797
        %v3799 = vpop.f32.mrb[0].mxu0
        %3800 = vmatprep.mubr.f32.mxu0 0.0
        %3801 = vmatmul.mubr.f32.gmra.mrb[0].mxu0 %v3584
        %v3802 = vpop.f32.mrb[0].mxu0
        %v3803 = vadd.f32 0.0, %v3802
        %v3804 = vpop.f32.mrb[0].mxu0
        %3805 = vmatprep.mubr.f32.mxu0 0.0
        %3806 = vmatmul.mubr.f32.gmra.mrb[0].mxu0 %v3587
        %v3807 = vpop.f32.mrb[0].mxu0
        %v3808 = vadd.f32 0.0, %v3807
        %v3809 = vpop.f32.mrb[0].mxu0
        %3810 = vmatprep.mubr.f32.mxu0 0.0
        %3811 = vmatmul.mubr.f32.gmra.mrb[0].mxu0 %v3590
        %v3812 = vpop.f32.mrb[0].mxu0
        %v3813 = vadd.f32 0.0, %v3812
        %v3814 = vpop.f32.mrb[0].mxu0
        %3815 = vmatprep.mubr.f32.mxu0 0.0
        %3816 = vmatmul.mubr.f32.gmra.mrb[0].mxu0 %v3593
        %v3817 = vpop.f32.mrb[0].mxu0
        %v3818 = vadd.f32 0.0, %v3817
        %v3819 = vpop.f32.mrb[0].mxu0
        %3820 = vmatprep.mubr.f32.mxu0 0.0
        %3821 = vmatmul.mubr.f32.gmra.mrb[0].mxu0 %v3596
        %v3822 = vpop.f32.mrb[0].mxu0
        %v3823 = vadd.f32 0.0, %v3822
        %v3824 = vpop.f32.mrb[0].mxu0
        %3825 = vdwg.mxu0
        %v3826 = vadd.f32 %v3468, %v3668
        %v3827 = vadd.f32 %v3469, %v3673
        %v3828 = vadd.f32 %v3470, %v3678
        %v3829 = vadd.f32 %v3471, %v3683
        %v3830 = vadd.f32 %v3472, %v3688
        %v3831 = vadd.f32 %v3473, %v3693
        %v3832 = vadd.f32 %v3474, %v3698
        %v3833 = vadd.f32 %v3475, %v3703
        %v3834 = vadd.f32 %v3476, %v3708
        %v3835 = vadd.f32 %v3477, %v3713
        %v3836 = vadd.f32 %v3478, %v3718
        %v3837 = vadd.f32 %v3479, %v3723
        %v3838 = vadd.f32 %v3480, %v3728
        %v3839 = vadd.f32 %v3481, %v3733
        %v3840 = vadd.f32 %v3482, %v3738
        %v3841 = vadd.f32 %v3483, %v3743
        %v3842 = vadd.f32 %v3484, %v3748
        %v3843 = vadd.f32 %v3485, %v3753
        %v3844 = vadd.f32 %v3486, %v3758
        %v3845 = vadd.f32 %v3487, %v3763
        %v3846 = vadd.f32 %v3488, %v3768
        %v3847 = vadd.f32 %v3489, %v3773
        %v3848 = vadd.f32 %v3490, %v3778
        %v3849 = vadd.f32 %v3491, %v3783
        %v3850 = vadd.f32 %v3492, %v3788
        %v3851 = vadd.f32 %v3493, %v3793
        %v3852 = vadd.f32 %v3494, %v3798
        %v3853 = vadd.f32 %v3495, %v3803
        %v3854 = vadd.f32 %v3496, %v3808
        %v3855 = vadd.f32 %v3497, %v3813
        %v3856 = vadd.f32 %v3498, %v3818
        %v3857 = vadd.f32 %v3499, %v3823
        %3858 = vst [vmem:[#allocation2] sm:$0xff] %v3826
        %3859 = vst [vmem:[#allocation2 + $0x8] sm:$0xff] %v3827
        %3860 = vst [vmem:[#allocation2 + $0x10] sm:$0xff] %v3828
        %3861 = vst [vmem:[#allocation2 + $0x18] sm:$0xff] %v3829
        %3862 = vst [vmem:[#allocation2 + $0x20] sm:$0xff] %v3830
        %3863 = vst [vmem:[#allocation2 + $0x28] sm:$0xff] %v3831
        %3864 = vst [vmem:[#allocation2 + $0x30] sm:$0xff] %v3832
        %3865 = vst [vmem:[#allocation2 + $0x38] sm:$0xff] %v3833
        %3866 = vst [vmem:[#allocation2 + $0x40] sm:$0xff] %v3834
        %3867 = vst [vmem:[#allocation2 + $0x48] sm:$0xff] %v3835
        %3868 = vst [vmem:[#allocation2 + $0x50] sm:$0xff] %v3836
        %3869 = vst [vmem:[#allocation2 + $0x58] sm:$0xff] %v3837
        %3870 = vst [vmem:[#allocation2 + $0x60] sm:$0xff] %v3838
        %3871 = vst [vmem:[#allocation2 + $0x68] sm:$0xff] %v3839
        %3872 = vst [vmem:[#allocation2 + $0x70] sm:$0xff] %v3840
        %3873 = vst [vmem:[#allocation2 + $0x78] sm:$0xff] %v3841
        %3874 = vst [vmem:[#allocation2 + $0x80] sm:$0xff] %v3842
        %3875 = vst [vmem:[#allocation2 + $0x88] sm:$0xff] %v3843
        %3876 = vst [vmem:[#allocation2 + $0x90] sm:$0xff] %v3844
        %3877 = vst [vmem:[#allocation2 + $0x98] sm:$0xff] %v3845
        %3878 = vst [vmem:[#allocation2 + $0xa0] sm:$0xff] %v3846
        %3879 = vst [vmem:[#allocation2 + $0xa8] sm:$0xff] %v3847
        %3880 = vst [vmem:[#allocation2 + $0xb0] sm:$0xff] %v3848
        %3881 = vst [vmem:[#allocation2 + $0xb8] sm:$0xff] %v3849
        %3882 = vst [vmem:[#allocation2 + $0xc0] sm:$0xff] %v3850
        %3883 = vst [vmem:[#allocation2 + $0xc8] sm:$0xff] %v3851
        %3884 = vst [vmem:[#allocation2 + $0xd0] sm:$0xff] %v3852
        %3885 = vst [vmem:[#allocation2 + $0xd8] sm:$0xff] %v3853
        %3886 = vst [vmem:[#allocation2 + $0xe0] sm:$0xff] %v3854
        %3887 = vst [vmem:[#allocation2 + $0xe8] sm:$0xff] %v3855
        %3888 = vst [vmem:[#allocation2 + $0xf0] sm:$0xff] %v3856
        %3889 = vst [vmem:[#allocation2 + $0xf8] sm:$0xff] %v3857
        %v3890 = vld [vmem:[%s2981 + $0x2] sm:$0xff]
        %v3891 = vld [vmem:[%s2981 + $0xa] sm:$0xff]
        %v3892 = vld [vmem:[%s2981 + $0x1a] sm:$0xff]
        %v3893 = vld [vmem:[%s2981 + $0x22] sm:$0xff]
        %v3894 = vld [vmem:[%s2981 + $0x32] sm:$0xff]
        %v3895 = vld [vmem:[%s2981 + $0x3a] sm:$0xff]
        %v3896 = vld [vmem:[%s2981 + $0x4a] sm:$0xff]
        %v3897 = vld [vmem:[%s2981 + $0x52] sm:$0xff]
        %v3898 = vld [vmem:[%s2981 + $0x62] sm:$0xff]
        %v3899 = vld [vmem:[%s2981 + $0x6a] sm:$0xff]
        %v3900 = vld [vmem:[%s2981 + $0x7a] sm:$0xff]
        %v3901 = vld [vmem:[%s2981 + $0x82] sm:$0xff]
        %v3902 = vld [vmem:[%s2981 + $0x92] sm:$0xff]
        %v3903 = vld [vmem:[%s2981 + $0x9a] sm:$0xff]
        %v3904 = vld [vmem:[%s2981 + $0xaa] sm:$0xff]
        %v3905 = vld [vmem:[%s2981 + $0xb2] sm:$0xff]
        %v3906 = vld [vmem:[%s2981 + $0xc2] sm:$0xff]
        %v3907 = vld [vmem:[%s2981 + $0xca] sm:$0xff]
        %v3908 = vld [vmem:[%s2981 + $0xda] sm:$0xff]
        %v3909 = vld [vmem:[%s2981 + $0xe2] sm:$0xff]
        %v3910 = vld [vmem:[%s2981 + $0xf2] sm:$0xff]
        %v3911 = vld [vmem:[%s2981 + $0xfa] sm:$0xff]
        %v3912 = vld [vmem:[%s2981 + $0x10a] sm:$0xff]
        %v3913 = vld [vmem:[%s2981 + $0x112] sm:$0xff]
        %v3914 = vld [vmem:[%s2981 + $0x122] sm:$0xff]
        %v3915 = vld [vmem:[%s2981 + $0x12a] sm:$0xff]
        %v3916 = vld [vmem:[%s2981 + $0x13a] sm:$0xff]
        %v3917 = vld [vmem:[%s2981 + $0x142] sm:$0xff]
        %v3918 = vld [vmem:[%s2981 + $0x152] sm:$0xff]
        %v3919 = vld [vmem:[%s2981 + $0x15a] sm:$0xff]
        %v3920 = vld [vmem:[%s2981 + $0x16a] sm:$0xff]
        %v3921 = vld [vmem:[%s2981 + $0x172] sm:$0xff]
        %v3922 = vld [vmem:[#allocation2] sm:$0xff]
        %v3923 = vld [vmem:[#allocation2 + $0x8] sm:$0xff]
        %v3924 = vld [vmem:[#allocation2 + $0x10] sm:$0xff]
        %v3925 = vld [vmem:[#allocation2 + $0x18] sm:$0xff]
        %v3926 = vld [vmem:[#allocation2 + $0x20] sm:$0xff]
        %v3927 = vld [vmem:[#allocation2 + $0x28] sm:$0xff]
        %v3928 = vld [vmem:[#allocation2 + $0x30] sm:$0xff]
        %v3929 = vld [vmem:[#allocation2 + $0x38] sm:$0xff]
        %v3930 = vld [vmem:[#allocation2 + $0x40] sm:$0xff]
        %v3931 = vld [vmem:[#allocation2 + $0x48] sm:$0xff]
        %v3932 = vld [vmem:[#allocation2 + $0x50] sm:$0xff]
        %v3933 = vld [vmem:[#allocation2 + $0x58] sm:$0xff]
        %v3934 = vld [vmem:[#allocation2 + $0x60] sm:$0xff]
        %v3935 = vld [vmem:[#allocation2 + $0x68] sm:$0xff]
        %v3936 = vld [vmem:[#allocation2 + $0x70] sm:$0xff]
        %v3937 = vld [vmem:[#allocation2 + $0x78] sm:$0xff]
        %v3938 = vld [vmem:[#allocation2 + $0x80] sm:$0xff]
        %v3939 = vld [vmem:[#allocation2 + $0x88] sm:$0xff]
        %v3940 = vld [vmem:[#allocation2 + $0x90] sm:$0xff]
        %v3941 = vld [vmem:[#allocation2 + $0x98] sm:$0xff]
        %v3942 = vld [vmem:[#allocation2 + $0xa0] sm:$0xff]
        %v3943 = vld [vmem:[#allocation2 + $0xa8] sm:$0xff]
        %v3944 = vld [vmem:[#allocation2 + $0xb0] sm:$0xff]
        %v3945 = vld [vmem:[#allocation2 + $0xb8] sm:$0xff]
        %v3946 = vld [vmem:[#allocation2 + $0xc0] sm:$0xff]
        %v3947 = vld [vmem:[#allocation2 + $0xc8] sm:$0xff]
        %v3948 = vld [vmem:[#allocation2 + $0xd0] sm:$0xff]
        %v3949 = vld [vmem:[#allocation2 + $0xd8] sm:$0xff]
        %v3950 = vld [vmem:[#allocation2 + $0xe0] sm:$0xff]
        %v3951 = vld [vmem:[#allocation2 + $0xe8] sm:$0xff]
        %v3952 = vld [vmem:[#allocation2 + $0xf0] sm:$0xff]
        %v3953 = vld [vmem:[#allocation2 + $0xf8] sm:$0xff]
        %s3954 = scalar_lea.vmem %s1, 32
        %v3955 = vld [vmem:[%s3954] sm:$0xf]
        %v3957 = vsel %vm320, %v3890, 0
        %v3960 = vsel %vm320, %v3891, 0
        %v3963 = vsel %vm320, %v3892, 0
        %v3966 = vsel %vm320, %v3893, 0
        %v3969 = vsel %vm320, %v3894, 0
        %v3972 = vsel %vm320, %v3895, 0
        %v3975 = vsel %vm320, %v3896, 0
        %v3978 = vsel %vm320, %v3897, 0
        %v3981 = vsel %vm320, %v3898, 0
        %v3984 = vsel %vm320, %v3899, 0
        %v3987 = vsel %vm320, %v3900, 0
        %v3990 = vsel %vm320, %v3901, 0
        %v3993 = vsel %vm320, %v3902, 0
        %v3996 = vsel %vm320, %v3903, 0
        %v3999 = vsel %vm320, %v3904, 0
        %v4002 = vsel %vm320, %v3905, 0
        %v4005 = vsel %vm320, %v3906, 0
        %v4008 = vsel %vm320, %v3907, 0
        %v4011 = vsel %vm320, %v3908, 0
        %v4014 = vsel %vm320, %v3909, 0
        %v4017 = vsel %vm320, %v3910, 0
        %v4020 = vsel %vm320, %v3911, 0
        %v4023 = vsel %vm320, %v3912, 0
        %v4026 = vsel %vm320, %v3913, 0
        %v4029 = vsel %vm320, %v3914, 0
        %v4032 = vsel %vm320, %v3915, 0
        %v4035 = vsel %vm320, %v3916, 0
        %v4038 = vsel %vm320, %v3917, 0
        %v4041 = vsel %vm320, %v3918, 0
        %v4044 = vsel %vm320, %v3919, 0
        %v4047 = vsel %vm320, %v3920, 0
        %v4050 = vsel %vm320, %v3921, 0
        %v4053 = vsel %vm417, %v3955, 0
        %4055 = vmatprep.subr.mxu0 0.0
        %4056 = vmatpush1.msra.mxu0 %v4053
        %4057 = vmatprep.subr.mxu0 0.0
        %4058 = vmatpush1.msra.mxu0 0.0
        %4059 = vmatprep.subr.mxu0 0.0
        %4060 = vmatpush1.msra.mxu0 0.0
        %4061 = vmatprep.subr.mxu0 0.0
        %4062 = vmatpush1.msra.mxu0 0.0
        %4063 = vmatprep.subr.mxu0 0.0
        %4064 = vmatpush1.msra.mxu0 0.0
        %4065 = vmatprep.subr.mxu0 0.0
        %4066 = vmatpush1.msra.mxu0 0.0
        %4067 = vmatprep.subr.mxu0 0.0
        %4068 = vmatpush1.msra.mxu0 0.0
        %4069 = vmatprep.subr.mxu0 0.0
        %4070 = vmatpush1.msra.mxu0 0.0
        %4071 = vmatprep.subr.mxu0 0.0
        %4072 = vmatpush1.msra.mxu0 0.0
        %4073 = vmatprep.subr.mxu0 0.0
        %4074 = vmatpush1.msra.mxu0 0.0
        %4075 = vmatprep.subr.mxu0 0.0
        %4076 = vmatpush1.msra.mxu0 0.0
        %4077 = vmatprep.subr.mxu0 0.0
        %4078 = vmatpush1.msra.mxu0 0.0
        %4079 = vmatprep.subr.mxu0 0.0
        %4080 = vmatpush1.msra.mxu0 0.0
        %4081 = vmatprep.subr.mxu0 0.0
        %4082 = vmatpush1.msra.mxu0 0.0
        %4083 = vmatprep.subr.mxu0 0.0
        %4084 = vmatpush1.msra.mxu0 0.0
        %4085 = vmatprep.subr.mxu0 0.0
        %4086 = vmatpush1.msra.mxu0 0.0
        %4087 = vmatprep.subr.mxu0 0.0
        %4088 = vmatpush1.msra.mxu0 0.0
        %4089 = vmatprep.subr.mxu0 0.0
        %4090 = vmatpush1.msra.mxu0 0.0
        %4091 = vmatprep.subr.mxu0 0.0
        %4092 = vmatpush1.msra.mxu0 0.0
        %4093 = vmatprep.subr.mxu0 0.0
        %4094 = vmatpush1.msra.mxu0 0.0
        %4095 = vmatprep.subr.mxu0 0.0
        %4096 = vmatpush1.msra.mxu0 0.0
        %4097 = vmatprep.subr.mxu0 0.0
        %4098 = vmatpush1.msra.mxu0 0.0
        %4099 = vmatprep.subr.mxu0 0.0
        %4100 = vmatpush1.msra.mxu0 0.0
        %4101 = vmatprep.subr.mxu0 0.0
        %4102 = vmatpush1.msra.mxu0 0.0
        %4103 = vmatprep.subr.mxu0 0.0
        %4104 = vmatpush1.msra.mxu0 0.0
        %4105 = vmatprep.subr.mxu0 0.0
        %4106 = vmatpush1.msra.mxu0 0.0
        %4107 = vmatprep.subr.mxu0 0.0
        %4108 = vmatpush1.msra.mxu0 0.0
        %4109 = vmatprep.subr.mxu0 0.0
        %4110 = vmatpush1.msra.mxu0 0.0
        %4111 = vmatprep.subr.mxu0 0.0
        %4112 = vmatpush1.msra.mxu0 0.0
        %4113 = vmatprep.subr.mxu0 0.0
        %4114 = vmatpush1.msra.mxu0 0.0
        %4115 = vmatprep.subr.mxu0 0.0
        %4116 = vmatpush1.msra.mxu0 0.0
        %4117 = vmatprep.subr.mxu0 0.0
        %4118 = vmatpush1.msra.mxu0 0.0
        %4119 = vmatprep.mubr.f32.mxu0 0.0
        %4120 = vmatmul.mubr.f32.gmra.mrb[0].mxu0 %v3957
        %v4121 = vpop.f32.mrb[0].mxu0
        %v4122 = vadd.f32 0.0, %v4121
        %v4123 = vpop.f32.mrb[0].mxu0
        %4124 = vmatprep.mubr.f32.mxu0 0.0
        %4125 = vmatmul.mubr.f32.gmra.mrb[0].mxu0 %v3960
        %v4126 = vpop.f32.mrb[0].mxu0
        %v4127 = vadd.f32 0.0, %v4126
        %v4128 = vpop.f32.mrb[0].mxu0
        %4129 = vmatprep.mubr.f32.mxu0 0.0
        %4130 = vmatmul.mubr.f32.gmra.mrb[0].mxu0 %v3963
        %v4131 = vpop.f32.mrb[0].mxu0
        %v4132 = vadd.f32 0.0, %v4131
        %v4133 = vpop.f32.mrb[0].mxu0
        %4134 = vmatprep.mubr.f32.mxu0 0.0
        %4135 = vmatmul.mubr.f32.gmra.mrb[0].mxu0 %v3966
        %v4136 = vpop.f32.mrb[0].mxu0
        %v4137 = vadd.f32 0.0, %v4136
        %v4138 = vpop.f32.mrb[0].mxu0
        %4139 = vmatprep.mubr.f32.mxu0 0.0
        %4140 = vmatmul.mubr.f32.gmra.mrb[0].mxu0 %v3969
        %v4141 = vpop.f32.mrb[0].mxu0
        %v4142 = vadd.f32 0.0, %v4141
        %v4143 = vpop.f32.mrb[0].mxu0
        %4144 = vmatprep.mubr.f32.mxu0 0.0
        %4145 = vmatmul.mubr.f32.gmra.mrb[0].mxu0 %v3972
        %v4146 = vpop.f32.mrb[0].mxu0
        %v4147 = vadd.f32 0.0, %v4146
        %v4148 = vpop.f32.mrb[0].mxu0
        %4149 = vmatprep.mubr.f32.mxu0 0.0
        %4150 = vmatmul.mubr.f32.gmra.mrb[0].mxu0 %v3975
        %v4151 = vpop.f32.mrb[0].mxu0
        %v4152 = vadd.f32 0.0, %v4151
        %v4153 = vpop.f32.mrb[0].mxu0
        %4154 = vmatprep.mubr.f32.mxu0 0.0
        %4155 = vmatmul.mubr.f32.gmra.mrb[0].mxu0 %v3978
        %v4156 = vpop.f32.mrb[0].mxu0
        %v4157 = vadd.f32 0.0, %v4156
        %v4158 = vpop.f32.mrb[0].mxu0
        %4159 = vmatprep.mubr.f32.mxu0 0.0
        %4160 = vmatmul.mubr.f32.gmra.mrb[0].mxu0 %v3981
        %v4161 = vpop.f32.mrb[0].mxu0
        %v4162 = vadd.f32 0.0, %v4161
        %v4163 = vpop.f32.mrb[0].mxu0
        %4164 = vmatprep.mubr.f32.mxu0 0.0
        %4165 = vmatmul.mubr.f32.gmra.mrb[0].mxu0 %v3984
        %v4166 = vpop.f32.mrb[0].mxu0
        %v4167 = vadd.f32 0.0, %v4166
        %v4168 = vpop.f32.mrb[0].mxu0
        %4169 = vmatprep.mubr.f32.mxu0 0.0
        %4170 = vmatmul.mubr.f32.gmra.mrb[0].mxu0 %v3987
        %v4171 = vpop.f32.mrb[0].mxu0
        %v4172 = vadd.f32 0.0, %v4171
        %v4173 = vpop.f32.mrb[0].mxu0
        %4174 = vmatprep.mubr.f32.mxu0 0.0
        %4175 = vmatmul.mubr.f32.gmra.mrb[0].mxu0 %v3990
        %v4176 = vpop.f32.mrb[0].mxu0
        %v4177 = vadd.f32 0.0, %v4176
        %v4178 = vpop.f32.mrb[0].mxu0
        %4179 = vmatprep.mubr.f32.mxu0 0.0
        %4180 = vmatmul.mubr.f32.gmra.mrb[0].mxu0 %v3993
        %v4181 = vpop.f32.mrb[0].mxu0
        %v4182 = vadd.f32 0.0, %v4181
        %v4183 = vpop.f32.mrb[0].mxu0
        %4184 = vmatprep.mubr.f32.mxu0 0.0
        %4185 = vmatmul.mubr.f32.gmra.mrb[0].mxu0 %v3996
        %v4186 = vpop.f32.mrb[0].mxu0
        %v4187 = vadd.f32 0.0, %v4186
        %v4188 = vpop.f32.mrb[0].mxu0
        %4189 = vmatprep.mubr.f32.mxu0 0.0
        %4190 = vmatmul.mubr.f32.gmra.mrb[0].mxu0 %v3999
        %v4191 = vpop.f32.mrb[0].mxu0
        %v4192 = vadd.f32 0.0, %v4191
        %v4193 = vpop.f32.mrb[0].mxu0
        %4194 = vmatprep.mubr.f32.mxu0 0.0
        %4195 = vmatmul.mubr.f32.gmra.mrb[0].mxu0 %v4002
        %v4196 = vpop.f32.mrb[0].mxu0
        %v4197 = vadd.f32 0.0, %v4196
        %v4198 = vpop.f32.mrb[0].mxu0
        %4199 = vmatprep.mubr.f32.mxu0 0.0
        %4200 = vmatmul.mubr.f32.gmra.mrb[0].mxu0 %v4005
        %v4201 = vpop.f32.mrb[0].mxu0
        %v4202 = vadd.f32 0.0, %v4201
        %v4203 = vpop.f32.mrb[0].mxu0
        %4204 = vmatprep.mubr.f32.mxu0 0.0
        %4205 = vmatmul.mubr.f32.gmra.mrb[0].mxu0 %v4008
        %v4206 = vpop.f32.mrb[0].mxu0
        %v4207 = vadd.f32 0.0, %v4206
        %v4208 = vpop.f32.mrb[0].mxu0
        %4209 = vmatprep.mubr.f32.mxu0 0.0
        %4210 = vmatmul.mubr.f32.gmra.mrb[0].mxu0 %v4011
        %v4211 = vpop.f32.mrb[0].mxu0
        %v4212 = vadd.f32 0.0, %v4211
        %v4213 = vpop.f32.mrb[0].mxu0
        %4214 = vmatprep.mubr.f32.mxu0 0.0
        %4215 = vmatmul.mubr.f32.gmra.mrb[0].mxu0 %v4014
        %v4216 = vpop.f32.mrb[0].mxu0
        %v4217 = vadd.f32 0.0, %v4216
        %v4218 = vpop.f32.mrb[0].mxu0
        %4219 = vmatprep.mubr.f32.mxu0 0.0
        %4220 = vmatmul.mubr.f32.gmra.mrb[0].mxu0 %v4017
        %v4221 = vpop.f32.mrb[0].mxu0
        %v4222 = vadd.f32 0.0, %v4221
        %v4223 = vpop.f32.mrb[0].mxu0
        %4224 = vmatprep.mubr.f32.mxu0 0.0
        %4225 = vmatmul.mubr.f32.gmra.mrb[0].mxu0 %v4020
        %v4226 = vpop.f32.mrb[0].mxu0
        %v4227 = vadd.f32 0.0, %v4226
        %v4228 = vpop.f32.mrb[0].mxu0
        %4229 = vmatprep.mubr.f32.mxu0 0.0
        %4230 = vmatmul.mubr.f32.gmra.mrb[0].mxu0 %v4023
        %v4231 = vpop.f32.mrb[0].mxu0
        %v4232 = vadd.f32 0.0, %v4231
        %v4233 = vpop.f32.mrb[0].mxu0
        %4234 = vmatprep.mubr.f32.mxu0 0.0
        %4235 = vmatmul.mubr.f32.gmra.mrb[0].mxu0 %v4026
        %v4236 = vpop.f32.mrb[0].mxu0
        %v4237 = vadd.f32 0.0, %v4236
        %v4238 = vpop.f32.mrb[0].mxu0
        %4239 = vmatprep.mubr.f32.mxu0 0.0
        %4240 = vmatmul.mubr.f32.gmra.mrb[0].mxu0 %v4029
        %v4241 = vpop.f32.mrb[0].mxu0
        %v4242 = vadd.f32 0.0, %v4241
        %v4243 = vpop.f32.mrb[0].mxu0
        %4244 = vmatprep.mubr.f32.mxu0 0.0
        %4245 = vmatmul.mubr.f32.gmra.mrb[0].mxu0 %v4032
        %v4246 = vpop.f32.mrb[0].mxu0
        %v4247 = vadd.f32 0.0, %v4246
        %v4248 = vpop.f32.mrb[0].mxu0
        %4249 = vmatprep.mubr.f32.mxu0 0.0
        %4250 = vmatmul.mubr.f32.gmra.mrb[0].mxu0 %v4035
        %v4251 = vpop.f32.mrb[0].mxu0
        %v4252 = vadd.f32 0.0, %v4251
        %v4253 = vpop.f32.mrb[0].mxu0
        %4254 = vmatprep.mubr.f32.mxu0 0.0
        %4255 = vmatmul.mubr.f32.gmra.mrb[0].mxu0 %v4038
        %v4256 = vpop.f32.mrb[0].mxu0
        %v4257 = vadd.f32 0.0, %v4256
        %v4258 = vpop.f32.mrb[0].mxu0
        %4259 = vmatprep.mubr.f32.mxu0 0.0
        %4260 = vmatmul.mubr.f32.gmra.mrb[0].mxu0 %v4041
        %v4261 = vpop.f32.mrb[0].mxu0
        %v4262 = vadd.f32 0.0, %v4261
        %v4263 = vpop.f32.mrb[0].mxu0
        %4264 = vmatprep.mubr.f32.mxu0 0.0
        %4265 = vmatmul.mubr.f32.gmra.mrb[0].mxu0 %v4044
        %v4266 = vpop.f32.mrb[0].mxu0
        %v4267 = vadd.f32 0.0, %v4266
        %v4268 = vpop.f32.mrb[0].mxu0
        %4269 = vmatprep.mubr.f32.mxu0 0.0
        %4270 = vmatmul.mubr.f32.gmra.mrb[0].mxu0 %v4047
        %v4271 = vpop.f32.mrb[0].mxu0
        %v4272 = vadd.f32 0.0, %v4271
        %v4273 = vpop.f32.mrb[0].mxu0
        %4274 = vmatprep.mubr.f32.mxu0 0.0
        %4275 = vmatmul.mubr.f32.gmra.mrb[0].mxu0 %v4050
        %v4276 = vpop.f32.mrb[0].mxu0
        %v4277 = vadd.f32 0.0, %v4276
        %v4278 = vpop.f32.mrb[0].mxu0
        %4279 = vdwg.mxu0
        %v4280 = vadd.f32 %v3922, %v4122
        %v4281 = vadd.f32 %v3923, %v4127
        %v4282 = vadd.f32 %v3924, %v4132
        %v4283 = vadd.f32 %v3925, %v4137
        %v4284 = vadd.f32 %v3926, %v4142
        %v4285 = vadd.f32 %v3927, %v4147
        %v4286 = vadd.f32 %v3928, %v4152
        %v4287 = vadd.f32 %v3929, %v4157
        %v4288 = vadd.f32 %v3930, %v4162
        %v4289 = vadd.f32 %v3931, %v4167
        %v4290 = vadd.f32 %v3932, %v4172
        %v4291 = vadd.f32 %v3933, %v4177
        %v4292 = vadd.f32 %v3934, %v4182
        %v4293 = vadd.f32 %v3935, %v4187
        %v4294 = vadd.f32 %v3936, %v4192
        %v4295 = vadd.f32 %v3937, %v4197
        %v4296 = vadd.f32 %v3938, %v4202
        %v4297 = vadd.f32 %v3939, %v4207
        %v4298 = vadd.f32 %v3940, %v4212
        %v4299 = vadd.f32 %v3941, %v4217
        %v4300 = vadd.f32 %v3942, %v4222
        %v4301 = vadd.f32 %v3943, %v4227
        %v4302 = vadd.f32 %v3944, %v4232
        %v4303 = vadd.f32 %v3945, %v4237
        %v4304 = vadd.f32 %v3946, %v4242
        %v4305 = vadd.f32 %v3947, %v4247
        %v4306 = vadd.f32 %v3948, %v4252
        %v4307 = vadd.f32 %v3949, %v4257
        %v4308 = vadd.f32 %v3950, %v4262
        %v4309 = vadd.f32 %v3951, %v4267
        %v4310 = vadd.f32 %v3952, %v4272
        %v4311 = vadd.f32 %v3953, %v4277
        %4312 = vst [vmem:[#allocation2] sm:$0xff] %v4280
        %4313 = vst [vmem:[#allocation2 + $0x8] sm:$0xff] %v4281
        %4314 = vst [vmem:[#allocation2 + $0x10] sm:$0xff] %v4282
        %4315 = vst [vmem:[#allocation2 + $0x18] sm:$0xff] %v4283
        %4316 = vst [vmem:[#allocation2 + $0x20] sm:$0xff] %v4284
        %4317 = vst [vmem:[#allocation2 + $0x28] sm:$0xff] %v4285
        %4318 = vst [vmem:[#allocation2 + $0x30] sm:$0xff] %v4286
        %4319 = vst [vmem:[#allocation2 + $0x38] sm:$0xff] %v4287
        %4320 = vst [vmem:[#allocation2 + $0x40] sm:$0xff] %v4288
        %4321 = vst [vmem:[#allocation2 + $0x48] sm:$0xff] %v4289
        %4322 = vst [vmem:[#allocation2 + $0x50] sm:$0xff] %v4290
        %4323 = vst [vmem:[#allocation2 + $0x58] sm:$0xff] %v4291
        %4324 = vst [vmem:[#allocation2 + $0x60] sm:$0xff] %v4292
        %4325 = vst [vmem:[#allocation2 + $0x68] sm:$0xff] %v4293
        %4326 = vst [vmem:[#allocation2 + $0x70] sm:$0xff] %v4294
        %4327 = vst [vmem:[#allocation2 + $0x78] sm:$0xff] %v4295
        %4328 = vst [vmem:[#allocation2 + $0x80] sm:$0xff] %v4296
        %4329 = vst [vmem:[#allocation2 + $0x88] sm:$0xff] %v4297
        %4330 = vst [vmem:[#allocation2 + $0x90] sm:$0xff] %v4298
        %4331 = vst [vmem:[#allocation2 + $0x98] sm:$0xff] %v4299
        %4332 = vst [vmem:[#allocation2 + $0xa0] sm:$0xff] %v4300
        %4333 = vst [vmem:[#allocation2 + $0xa8] sm:$0xff] %v4301
        %4334 = vst [vmem:[#allocation2 + $0xb0] sm:$0xff] %v4302
        %4335 = vst [vmem:[#allocation2 + $0xb8] sm:$0xff] %v4303
        %4336 = vst [vmem:[#allocation2 + $0xc0] sm:$0xff] %v4304
        %4337 = vst [vmem:[#allocation2 + $0xc8] sm:$0xff] %v4305
        %4338 = vst [vmem:[#allocation2 + $0xd0] sm:$0xff] %v4306
        %4339 = vst [vmem:[#allocation2 + $0xd8] sm:$0xff] %v4307
        %4340 = vst [vmem:[#allocation2 + $0xe0] sm:$0xff] %v4308
        %4341 = vst [vmem:[#allocation2 + $0xe8] sm:$0xff] %v4309
        %4342 = vst [vmem:[#allocation2 + $0xf0] sm:$0xff] %v4310
        %4343 = vst [vmem:[#allocation2 + $0xf8] sm:$0xff] %v4311
        %v4344 = vld [vmem:[#allocation2] sm:$0xff]
        %v4345 = vld [vmem:[#allocation2 + $0x8] sm:$0xff]
        %v4346 = vld [vmem:[#allocation2 + $0x10] sm:$0xff]
        %v4347 = vld [vmem:[#allocation2 + $0x18] sm:$0xff]
        %v4348 = vld [vmem:[#allocation2 + $0x20] sm:$0xff]
        %v4349 = vld [vmem:[#allocation2 + $0x28] sm:$0xff]
        %v4350 = vld [vmem:[#allocation2 + $0x30] sm:$0xff]
        %v4351 = vld [vmem:[#allocation2 + $0x38] sm:$0xff]
        %v4352 = vld [vmem:[#allocation2 + $0x40] sm:$0xff]
        %v4353 = vld [vmem:[#allocation2 + $0x48] sm:$0xff]
        %v4354 = vld [vmem:[#allocation2 + $0x50] sm:$0xff]
        %v4355 = vld [vmem:[#allocation2 + $0x58] sm:$0xff]
        %v4356 = vld [vmem:[#allocation2 + $0x60] sm:$0xff]
        %v4357 = vld [vmem:[#allocation2 + $0x68] sm:$0xff]
        %v4358 = vld [vmem:[#allocation2 + $0x70] sm:$0xff]
        %v4359 = vld [vmem:[#allocation2 + $0x78] sm:$0xff]
        %v4360 = vld [vmem:[#allocation2 + $0x80] sm:$0xff]
        %v4361 = vld [vmem:[#allocation2 + $0x88] sm:$0xff]
        %v4362 = vld [vmem:[#allocation2 + $0x90] sm:$0xff]
        %v4363 = vld [vmem:[#allocation2 + $0x98] sm:$0xff]
        %v4364 = vld [vmem:[#allocation2 + $0xa0] sm:$0xff]
        %v4365 = vld [vmem:[#allocation2 + $0xa8] sm:$0xff]
        %v4366 = vld [vmem:[#allocation2 + $0xb0] sm:$0xff]
        %v4367 = vld [vmem:[#allocation2 + $0xb8] sm:$0xff]
        %v4368 = vld [vmem:[#allocation2 + $0xc0] sm:$0xff]
        %v4369 = vld [vmem:[#allocation2 + $0xc8] sm:$0xff]
        %v4370 = vld [vmem:[#allocation2 + $0xd0] sm:$0xff]
        %v4371 = vld [vmem:[#allocation2 + $0xd8] sm:$0xff]
        %v4372 = vld [vmem:[#allocation2 + $0xe0] sm:$0xff]
        %v4373 = vld [vmem:[#allocation2 + $0xe8] sm:$0xff]
        %v4374 = vld [vmem:[#allocation2 + $0xf0] sm:$0xff]
        %v4375 = vld [vmem:[#allocation2 + $0xf8] sm:$0xff]
        %v4376 = vadd.f32 %v4344, %v4345
        %v4377 = vadd.f32 %v4376, %v4346
        %v4378 = vadd.f32 %v4377, %v4347
        %v4379 = vadd.f32 %v4378, %v4348
        %v4380 = vadd.f32 %v4379, %v4349
        %v4381 = vadd.f32 %v4380, %v4350
        %v4382 = vadd.f32 %v4381, %v4351
        %v4383 = vadd.f32 %v4382, %v4352
        %v4384 = vadd.f32 %v4383, %v4353
        %v4385 = vadd.f32 %v4384, %v4354
        %v4386 = vadd.f32 %v4385, %v4355
        %v4387 = vadd.f32 %v4386, %v4356
        %v4388 = vadd.f32 %v4387, %v4357
        %v4389 = vadd.f32 %v4388, %v4358
        %v4390 = vadd.f32 %v4389, %v4359
        %v4391 = vadd.f32 %v4390, %v4360
        %v4392 = vadd.f32 %v4391, %v4361
        %v4393 = vadd.f32 %v4392, %v4362
        %v4394 = vadd.f32 %v4393, %v4363
        %v4395 = vadd.f32 %v4394, %v4364
        %v4396 = vadd.f32 %v4395, %v4365
        %v4397 = vadd.f32 %v4396, %v4366
        %v4398 = vadd.f32 %v4397, %v4367
        %v4399 = vadd.f32 %v4398, %v4368
        %v4400 = vadd.f32 %v4399, %v4369
        %v4401 = vadd.f32 %v4400, %v4370
        %v4402 = vadd.f32 %v4401, %v4371
        %v4403 = vadd.f32 %v4402, %v4372
        %v4404 = vadd.f32 %v4403, %v4373
        %v4405 = vadd.f32 %v4404, %v4374
        %v4406 = vadd.f32 %v4405, %v4375
        %v4407 = vrot.slane %v4406, 4
        %v4408 = vadd.f32 %v4406, %v4407
        %v4409 = vrot.slane %v4408, 2
        %v4410 = vadd.f32 %v4408, %v4409
        %v4411 = vrot.slane %v4410, 1
        %v4412 = vadd.f32 %v4410, %v4411
        %v4413 = vmul.f32 %v4344, %v4344
        %v4414 = vmul.f32 %v4345, %v4345
        %v4415 = vmul.f32 %v4346, %v4346
        %v4416 = vmul.f32 %v4347, %v4347
        %v4417 = vmul.f32 %v4348, %v4348
        %v4418 = vmul.f32 %v4349, %v4349
        %v4419 = vmul.f32 %v4350, %v4350
        %v4420 = vmul.f32 %v4351, %v4351
        %v4421 = vmul.f32 %v4352, %v4352
        %v4422 = vmul.f32 %v4353, %v4353
        %v4423 = vmul.f32 %v4354, %v4354
        %v4424 = vmul.f32 %v4355, %v4355
        %v4425 = vmul.f32 %v4356, %v4356
        %v4426 = vmul.f32 %v4357, %v4357
        %v4427 = vmul.f32 %v4358, %v4358
        %v4428 = vmul.f32 %v4359, %v4359
        %v4429 = vmul.f32 %v4360, %v4360
        %v4430 = vmul.f32 %v4361, %v4361
        %v4431 = vmul.f32 %v4362, %v4362
        %v4432 = vmul.f32 %v4363, %v4363
        %v4433 = vmul.f32 %v4364, %v4364
        %v4434 = vmul.f32 %v4365, %v4365
        %v4435 = vmul.f32 %v4366, %v4366
        %v4436 = vmul.f32 %v4367, %v4367
        %v4437 = vmul.f32 %v4368, %v4368
        %v4438 = vmul.f32 %v4369, %v4369
        %v4439 = vmul.f32 %v4370, %v4370
        %v4440 = vmul.f32 %v4371, %v4371
        %v4441 = vmul.f32 %v4372, %v4372
        %v4442 = vmul.f32 %v4373, %v4373
        %v4443 = vmul.f32 %v4374, %v4374
        %v4444 = vmul.f32 %v4375, %v4375
        %v4445 = vadd.f32 %v4413, %v4414
        %v4446 = vadd.f32 %v4445, %v4415
        %v4447 = vadd.f32 %v4446, %v4416
        %v4448 = vadd.f32 %v4447, %v4417
        %v4449 = vadd.f32 %v4448, %v4418
        %v4450 = vadd.f32 %v4449, %v4419
        %v4451 = vadd.f32 %v4450, %v4420
        %v4452 = vadd.f32 %v4451, %v4421
        %v4453 = vadd.f32 %v4452, %v4422
        %v4454 = vadd.f32 %v4453, %v4423
        %v4455 = vadd.f32 %v4454, %v4424
        %v4456 = vadd.f32 %v4455, %v4425
        %v4457 = vadd.f32 %v4456, %v4426
        %v4458 = vadd.f32 %v4457, %v4427
        %v4459 = vadd.f32 %v4458, %v4428
        %v4460 = vadd.f32 %v4459, %v4429
        %v4461 = vadd.f32 %v4460, %v4430
        %v4462 = vadd.f32 %v4461, %v4431
        %v4463 = vadd.f32 %v4462, %v4432
        %v4464 = vadd.f32 %v4463, %v4433
        %v4465 = vadd.f32 %v4464, %v4434
        %v4466 = vadd.f32 %v4465, %v4435
        %v4467 = vadd.f32 %v4466, %v4436
        %v4468 = vadd.f32 %v4467, %v4437
        %v4469 = vadd.f32 %v4468, %v4438
        %v4470 = vadd.f32 %v4469, %v4439
        %v4471 = vadd.f32 %v4470, %v4440
        %v4472 = vadd.f32 %v4471, %v4441
        %v4473 = vadd.f32 %v4472, %v4442
        %v4474 = vadd.f32 %v4473, %v4443
        %v4475 = vadd.f32 %v4474, %v4444
        %v4476 = vrot.slane %v4475, 4
        %v4477 = vadd.f32 %v4475, %v4476
        %v4478 = vrot.slane %v4477, 2
        %v4479 = vadd.f32 %v4477, %v4478
        %v4480 = vrot.slane %v4479, 1
        %v4481 = vadd.f32 %v4479, %v4480
        %v4482 = vld [vmem:[%s4] sm:$0xff]
        %v4483 = vld [vmem:[%s4 + $0x8] sm:$0xff]
        %v4484 = vld [vmem:[%s4 + $0x10] sm:$0xff]
        %v4485 = vld [vmem:[%s4 + $0x18] sm:$0xff]
        %v4486 = vld [vmem:[%s4 + $0x20] sm:$0xff]
        %v4487 = vld [vmem:[%s4 + $0x28] sm:$0xff]
        %v4488 = vld [vmem:[%s4 + $0x30] sm:$0xff]
        %v4489 = vld [vmem:[%s4 + $0x38] sm:$0xff]
        %v4490 = vld [vmem:[%s4 + $0x40] sm:$0xff]
        %v4491 = vld [vmem:[%s4 + $0x48] sm:$0xff]
        %v4492 = vld [vmem:[%s4 + $0x50] sm:$0xff]
        %v4493 = vld [vmem:[%s4 + $0x58] sm:$0xff]
        %v4494 = vld [vmem:[%s4 + $0x60] sm:$0xff]
        %v4495 = vld [vmem:[%s4 + $0x68] sm:$0xff]
        %v4496 = vld [vmem:[%s4 + $0x70] sm:$0xff]
        %v4497 = vld [vmem:[%s4 + $0x78] sm:$0xff]
        %4498 = vmatprep.subr.mxu0 0.0
        %4499 = vmatpush1.msra.mxu0 %v4482
        %4500 = vmatprep.subr.mxu0 0.0
        %4501 = vmatpush1.msra.mxu0 %v4483
        %4502 = vmatprep.subr.mxu0 0.0
        %4503 = vmatpush1.msra.mxu0 %v4484
        %4504 = vmatprep.subr.mxu0 0.0
        %4505 = vmatpush1.msra.mxu0 %v4485
        %4506 = vmatprep.subr.mxu0 0.0
        %4507 = vmatpush1.msra.mxu0 %v4486
        %4508 = vmatprep.subr.mxu0 0.0
        %4509 = vmatpush1.msra.mxu0 %v4487
        %4510 = vmatprep.subr.mxu0 0.0
        %4511 = vmatpush1.msra.mxu0 %v4488
        %4512 = vmatprep.subr.mxu0 0.0
        %4513 = vmatpush1.msra.mxu0 %v4489
        %4514 = vmatprep.subr.mxu0 0.0
        %4515 = vmatpush1.msra.mxu0 %v4490
        %4516 = vmatprep.subr.mxu0 0.0
        %4517 = vmatpush1.msra.mxu0 %v4491
        %4518 = vmatprep.subr.mxu0 0.0
        %4519 = vmatpush1.msra.mxu0 %v4492
        %4520 = vmatprep.subr.mxu0 0.0
        %4521 = vmatpush1.msra.mxu0 %v4493
        %4522 = vmatprep.subr.mxu0 0.0
        %4523 = vmatpush1.msra.mxu0 %v4494
        %4524 = vmatprep.subr.mxu0 0.0
        %4525 = vmatpush1.msra.mxu0 %v4495
        %4526 = vmatprep.subr.mxu0 0.0
        %4527 = vmatpush1.msra.mxu0 %v4496
        %4528 = vmatprep.subr.mxu0 0.0
        %4529 = vmatpush1.msra.mxu0 %v4497
        %4530 = vmatprep.subr.mxu0 0.0
        %4531 = vmatpush1.msra.mxu0 0.0
        %4532 = vmatprep.subr.mxu0 0.0
        %4533 = vmatpush1.msra.mxu0 0.0
        %4534 = vmatprep.subr.mxu0 0.0
        %4535 = vmatpush1.msra.mxu0 0.0
        %4536 = vmatprep.subr.mxu0 0.0
        %4537 = vmatpush1.msra.mxu0 0.0
        %4538 = vmatprep.subr.mxu0 0.0
        %4539 = vmatpush1.msra.mxu0 0.0
        %4540 = vmatprep.subr.mxu0 0.0
        %4541 = vmatpush1.msra.mxu0 0.0
        %4542 = vmatprep.subr.mxu0 0.0
        %4543 = vmatpush1.msra.mxu0 0.0
        %4544 = vmatprep.subr.mxu0 0.0
        %4545 = vmatpush1.msra.mxu0 0.0
        %4546 = vmatprep.subr.mxu0 0.0
        %4547 = vmatpush1.msra.mxu0 0.0
        %4548 = vmatprep.subr.mxu0 0.0
        %4549 = vmatpush1.msra.mxu0 0.0
        %4550 = vmatprep.subr.mxu0 0.0
        %4551 = vmatpush1.msra.mxu0 0.0
        %4552 = vmatprep.subr.mxu0 0.0
        %4553 = vmatpush1.msra.mxu0 0.0
        %4554 = vmatprep.subr.mxu0 0.0
        %4555 = vmatpush1.msra.mxu0 0.0
        %4556 = vmatprep.subr.mxu0 0.0
        %4557 = vmatpush1.msra.mxu0 0.0
        %4558 = vmatprep.subr.mxu0 0.0
        %4559 = vmatpush1.msra.mxu0 0.0
        %4560 = vmatprep.subr.mxu0 0.0
        %4561 = vmatpush1.msra.mxu0 0.0
        %4562 = vmatprep.mubr.f32.mxu0 0.0
        %4563 = vmatmul.mubr.f32.gmra.mrb[0].mxu0 %v4412
        %v4564 = vpop.f32.mrb[0].mxu0
        %v4565 = vadd.f32 0.0, %v4564
        %v4566 = vpop.f32.mrb[0].mxu0
        %4567 = vdwg.mxu0
        %4568 = vmatprep.subr.mxu0 0.0
        %4569 = vmatpush1.msra.mxu0 %v4482
        %4570 = vmatprep.subr.mxu0 0.0
        %4571 = vmatpush1.msra.mxu0 %v4483
        %4572 = vmatprep.subr.mxu0 0.0
        %4573 = vmatpush1.msra.mxu0 %v4484
        %4574 = vmatprep.subr.mxu0 0.0
        %4575 = vmatpush1.msra.mxu0 %v4485
        %4576 = vmatprep.subr.mxu0 0.0
        %4577 = vmatpush1.msra.mxu0 %v4486
        %4578 = vmatprep.subr.mxu0 0.0
        %4579 = vmatpush1.msra.mxu0 %v4487
        %4580 = vmatprep.subr.mxu0 0.0
        %4581 = vmatpush1.msra.mxu0 %v4488
        %4582 = vmatprep.subr.mxu0 0.0
        %4583 = vmatpush1.msra.mxu0 %v4489
        %4584 = vmatprep.subr.mxu0 0.0
        %4585 = vmatpush1.msra.mxu0 %v4490
        %4586 = vmatprep.subr.mxu0 0.0
        %4587 = vmatpush1.msra.mxu0 %v4491
        %4588 = vmatprep.subr.mxu0 0.0
        %4589 = vmatpush1.msra.mxu0 %v4492
        %4590 = vmatprep.subr.mxu0 0.0
        %4591 = vmatpush1.msra.mxu0 %v4493
        %4592 = vmatprep.subr.mxu0 0.0
        %4593 = vmatpush1.msra.mxu0 %v4494
        %4594 = vmatprep.subr.mxu0 0.0
        %4595 = vmatpush1.msra.mxu0 %v4495
        %4596 = vmatprep.subr.mxu0 0.0
        %4597 = vmatpush1.msra.mxu0 %v4496
        %4598 = vmatprep.subr.mxu0 0.0
        %4599 = vmatpush1.msra.mxu0 %v4497
        %4600 = vmatprep.subr.mxu0 0.0
        %4601 = vmatpush1.msra.mxu0 0.0
        %4602 = vmatprep.subr.mxu0 0.0
        %4603 = vmatpush1.msra.mxu0 0.0
        %4604 = vmatprep.subr.mxu0 0.0
        %4605 = vmatpush1.msra.mxu0 0.0
        %4606 = vmatprep.subr.mxu0 0.0
        %4607 = vmatpush1.msra.mxu0 0.0
        %4608 = vmatprep.subr.mxu0 0.0
        %4609 = vmatpush1.msra.mxu0 0.0
        %4610 = vmatprep.subr.mxu0 0.0
        %4611 = vmatpush1.msra.mxu0 0.0
        %4612 = vmatprep.subr.mxu0 0.0
        %4613 = vmatpush1.msra.mxu0 0.0
        %4614 = vmatprep.subr.mxu0 0.0
        %4615 = vmatpush1.msra.mxu0 0.0
        %4616 = vmatprep.subr.mxu0 0.0
        %4617 = vmatpush1.msra.mxu0 0.0
        %4618 = vmatprep.subr.mxu0 0.0
        %4619 = vmatpush1.msra.mxu0 0.0
        %4620 = vmatprep.subr.mxu0 0.0
        %4621 = vmatpush1.msra.mxu0 0.0
        %4622 = vmatprep.subr.mxu0 0.0
        %4623 = vmatpush1.msra.mxu0 0.0
        %4624 = vmatprep.subr.mxu0 0.0
        %4625 = vmatpush1.msra.mxu0 0.0
        %4626 = vmatprep.subr.mxu0 0.0
        %4627 = vmatpush1.msra.mxu0 0.0
        %4628 = vmatprep.subr.mxu0 0.0
        %4629 = vmatpush1.msra.mxu0 0.0
        %4630 = vmatprep.subr.mxu0 0.0
        %4631 = vmatpush1.msra.mxu0 0.0
        %4632 = vmatprep.mubr.f32.mxu0 0.0
        %4633 = vmatmul.mubr.f32.gmra.mrb[0].mxu0 %v4481
        %v4634 = vpop.f32.mrb[0].mxu0
        %v4635 = vadd.f32 0.0, %v4634
        %v4636 = vpop.f32.mrb[0].mxu0
        %4637 = vdwg.mxu0
        %v4638 = vmul.f32 %v4565, %v4565
        %v4639 = vsub.f32 %v4635, %v4638
        %v4640 = vadd.f32 %v4639, 1e-05
        %v4641 = vrsqrt.pop %v4640
        %v4642 = vld [vmem:[%s2] sm:$0x1]
        %v4643 = vmul.f32 %v4642, %v4641
        %v4644 = vld [vmem:[%s3] sm:$0x1]
        %v4645 = vmul.f32 %v4565, %v4643
        %v4646 = vsub.f32 %v4644, %v4645
        %v4648 = vlaneseq
        %v4649 = vshrl.u32 %v4648, 7
        %v4650 = vsub.s32 0, %v4649
        %v4651 = vrot.slane %v4643, %v4650
        %v4653 = vmul.f32 %v4344, %v4651
        %v4654 = vmul.f32 %v4345, %v4651
        %v4655 = vmul.f32 %v4346, %v4651
        %v4656 = vmul.f32 %v4347, %v4651
        %v4657 = vmul.f32 %v4348, %v4651
        %v4658 = vmul.f32 %v4349, %v4651
        %v4659 = vmul.f32 %v4350, %v4651
        %v4660 = vmul.f32 %v4351, %v4651
        %v4661 = vmul.f32 %v4352, %v4651
        %v4662 = vmul.f32 %v4353, %v4651
        %v4663 = vmul.f32 %v4354, %v4651
        %v4664 = vmul.f32 %v4355, %v4651
        %v4665 = vmul.f32 %v4356, %v4651
        %v4666 = vmul.f32 %v4357, %v4651
        %v4667 = vmul.f32 %v4358, %v4651
        %v4668 = vmul.f32 %v4359, %v4651
        %v4669 = vmul.f32 %v4360, %v4651
        %v4670 = vmul.f32 %v4361, %v4651
        %v4671 = vmul.f32 %v4362, %v4651
        %v4672 = vmul.f32 %v4363, %v4651
        %v4673 = vmul.f32 %v4364, %v4651
        %v4674 = vmul.f32 %v4365, %v4651
        %v4675 = vmul.f32 %v4366, %v4651
        %v4676 = vmul.f32 %v4367, %v4651
        %v4677 = vmul.f32 %v4368, %v4651
        %v4678 = vmul.f32 %v4369, %v4651
        %v4679 = vmul.f32 %v4370, %v4651
        %v4680 = vmul.f32 %v4371, %v4651
        %v4681 = vmul.f32 %v4372, %v4651
        %v4682 = vmul.f32 %v4373, %v4651
        %v4683 = vmul.f32 %v4374, %v4651
        %v4684 = vmul.f32 %v4375, %v4651
        %v4686 = vlaneseq
        %v4687 = vshrl.u32 %v4686, 7
        %v4688 = vsub.s32 0, %v4687
        %v4689 = vrot.slane %v4646, %v4688
        %v4691 = vadd.f32 %v4653, %v4689
        %v4692 = vadd.f32 %v4654, %v4689
        %v4693 = vadd.f32 %v4655, %v4689
        %v4694 = vadd.f32 %v4656, %v4689
        %v4695 = vadd.f32 %v4657, %v4689
        %v4696 = vadd.f32 %v4658, %v4689
        %v4697 = vadd.f32 %v4659, %v4689
        %v4698 = vadd.f32 %v4660, %v4689
        %v4699 = vadd.f32 %v4661, %v4689
        %v4700 = vadd.f32 %v4662, %v4689
        %v4701 = vadd.f32 %v4663, %v4689
        %v4702 = vadd.f32 %v4664, %v4689
        %v4703 = vadd.f32 %v4665, %v4689
        %v4704 = vadd.f32 %v4666, %v4689
        %v4705 = vadd.f32 %v4667, %v4689
        %v4706 = vadd.f32 %v4668, %v4689
        %v4707 = vadd.f32 %v4669, %v4689
        %v4708 = vadd.f32 %v4670, %v4689
        %v4709 = vadd.f32 %v4671, %v4689
        %v4710 = vadd.f32 %v4672, %v4689
        %v4711 = vadd.f32 %v4673, %v4689
        %v4712 = vadd.f32 %v4674, %v4689
        %v4713 = vadd.f32 %v4675, %v4689
        %v4714 = vadd.f32 %v4676, %v4689
        %v4715 = vadd.f32 %v4677, %v4689
        %v4716 = vadd.f32 %v4678, %v4689
        %v4717 = vadd.f32 %v4679, %v4689
        %v4718 = vadd.f32 %v4680, %v4689
        %v4719 = vadd.f32 %v4681, %v4689
        %v4720 = vadd.f32 %v4682, %v4689
        %v4721 = vadd.f32 %v4683, %v4689
        %v4722 = vadd.f32 %v4684, %v4689
        %4723 = vst [vmem:[%s217] sm:$0xff] %v4691
        %4724 = vst [vmem:[%s217 + $0x8] sm:$0xff] %v4692
        %4725 = vst [vmem:[%s217 + $0x10] sm:$0xff] %v4693
        %4726 = vst [vmem:[%s217 + $0x18] sm:$0xff] %v4694
        %4727 = vst [vmem:[%s217 + $0x20] sm:$0xff] %v4695
        %4728 = vst [vmem:[%s217 + $0x28] sm:$0xff] %v4696
        %4729 = vst [vmem:[%s217 + $0x30] sm:$0xff] %v4697
        %4730 = vst [vmem:[%s217 + $0x38] sm:$0xff] %v4698
        %4731 = vst [vmem:[%s217 + $0x40] sm:$0xff] %v4699
        %4732 = vst [vmem:[%s217 + $0x48] sm:$0xff] %v4700
        %4733 = vst [vmem:[%s217 + $0x50] sm:$0xff] %v4701
        %4734 = vst [vmem:[%s217 + $0x58] sm:$0xff] %v4702
        %4735 = vst [vmem:[%s217 + $0x60] sm:$0xff] %v4703
        %4736 = vst [vmem:[%s217 + $0x68] sm:$0xff] %v4704
        %4737 = vst [vmem:[%s217 + $0x70] sm:$0xff] %v4705
        %4738 = vst [vmem:[%s217 + $0x78] sm:$0xff] %v4706
        %4739 = vst [vmem:[%s217 + $0x80] sm:$0xff] %v4707
        %4740 = vst [vmem:[%s217 + $0x88] sm:$0xff] %v4708
        %4741 = vst [vmem:[%s217 + $0x90] sm:$0xff] %v4709
        %4742 = vst [vmem:[%s217 + $0x98] sm:$0xff] %v4710
        %4743 = vst [vmem:[%s217 + $0xa0] sm:$0xff] %v4711
        %4744 = vst [vmem:[%s217 + $0xa8] sm:$0xff] %v4712
        %4745 = vst [vmem:[%s217 + $0xb0] sm:$0xff] %v4713
        %4746 = vst [vmem:[%s217 + $0xb8] sm:$0xff] %v4714
        %4747 = vst [vmem:[%s217 + $0xc0] sm:$0xff] %v4715
        %4748 = vst [vmem:[%s217 + $0xc8] sm:$0xff] %v4716
        %4749 = vst [vmem:[%s217 + $0xd0] sm:$0xff] %v4717
        %4750 = vst [vmem:[%s217 + $0xd8] sm:$0xff] %v4718
        %4751 = vst [vmem:[%s217 + $0xe0] sm:$0xff] %v4719
        %4752 = vst [vmem:[%s217 + $0xe8] sm:$0xff] %v4720
        %4753 = vst [vmem:[%s217 + $0xf0] sm:$0xff] %v4721
        %4754 = vst [vmem:[%s217 + $0xf8] sm:$0xff] %v4722
        %s4755 = sand.u32 %s137, 1
        %s4756 = scalar_lea.sflag [#allocation4], %s4755
        %s4757 = sand.u32 %s137, 1
        %s4758 = smul.addr %s4757, 256
        %s4759 = scalar_lea.vmem [#allocation3], %s4758
        // Predicated region
        $region41: #{tpu_custom_call.1} parent=39 // pred_check
          %p4760 = pneg %p147
        $region42: #{tpu_custom_call.1} parent=39 // pred_check_branch
          %4762 = sbr.rel (%p4760) target = $region44
        $region43: #{tpu_custom_call.1} parent=39 // pred_region
          %s4764 = ssub.s32 4096, 4096
          %4765 = vsyncadd %s4756, %s4764
          %s4766 = smul.addr %s19, 32
          %s4767 = smul.addr %s4766, 128
          %s4768 = scalar_lea.hbm %s5, %s4767
          %s4769 = sshll.u32 %s4759, 4
          %s4770 = int_to_ptr.vmem [resolvable:$true] %s4769
          %4775 = dma.vmem_to_hbm [thread:$0]  %s4770, 4096, %s4768, %s4756, 128, 128, 8
        $region44: #{tpu_custom_call.1} parent=39 // pred_fallthru
          _
      $region40: #{tpu_custom_call.1} parent=5 // pred_fallthru
        _
      %p4776 = scmp.le.s32.totalorder 2, %s14
      // Predicated region
      $region45: #{tpu_custom_call.1} parent=5 // pred_check
        %p4777 = pneg %p4776
      $region46: #{tpu_custom_call.1} parent=5 // pred_check_branch
        %4779 = sbr.rel (%p4777) target = $region48
      $region47: #{tpu_custom_call.1} parent=5 // pred_region
        %s4780 = ssub.s32 %s14, 2
        // Predicated region
        $region49: #{tpu_custom_call.1} parent=47 // pred_check
          %p4781 = pneg %p153
        $region50: #{tpu_custom_call.1} parent=47 // pred_check_branch
          %4783 = sbr.rel (%p4781) target = $region52
        $region51: #{tpu_custom_call.1} parent=47 // pred_region
          %s4784 = sand.u32 %s138, 1
          %s4785 = scalar_lea.sflag [#allocation4], %s4784
          %s4786 = sand.u32 %s138, 1
          %s4787 = smul.addr %s4786, 256
          %s4788 = scalar_lea.vmem [#allocation3], %s4787
          %4789 = dma.done %s4785, 4096
        $region52: #{tpu_custom_call.1} parent=47 // pred_fallthru
          _
      $region48: #{tpu_custom_call.1} parent=5 // pred_fallthru
        _
    $region6: #{tpu_custom_call.1} parent=1 // loop_footer
      %s18 = sadd.s32 1, %s14
    $region7: #{tpu_custom_call.1} parent=1 // loop_footer_branch
      %13 = sbr.rel target = $region3
    $region8: #{tpu_custom_call.1} parent=1 // loop_exit
      _
    %4790 = vsyncpa [#allocation4], 1
    %s4791 = scalar_lea.sflag [#allocation4], 1
    %4792 = vsyncpa %s4791, 1

</llo_original>
